<compile_context>
chip_gen: v7x
topology: tpu7x:2x2x1
jax: 0.10.0
libtpu: 0.0.40
codegen_flags: <defaults>
</compile_context>

<pallas_src>
import jax
import jax.numpy as jnp
from jax.experimental import pallas as pl
from jax.experimental.pallas import tpu as pltpu

# ---- model hyper-parameters (small, TPU-tile friendly) ----------------------
B, S, H = 2, 8, 128          # batch, seq, hidden (H = 128 -> lane-dense)
NH, HD = 4, 32               # heads, head_dim
FF = 256                     # intermediate (FFN) size
VOCAB = 64
NUM_LABELS = 2               # 'offensive' task has 2 labels
NUM_LAYERS = 2
LN_EPS = 1e-5
LANE = 128                   # lane-dense padded width for the classifier output

# rows of the packed per-layer [6, H] vector bundle
_BO, _LN1G, _LN1B, _B2, _LN2G, _LN2B = range(6)


# ---- in-kernel helpers -------------------------------------------------------
def _layernorm(x, g, b):
    mu = jnp.mean(x, axis=-1, keepdims=True)
    var = jnp.mean((x - mu) ** 2, axis=-1, keepdims=True)
    return (x - mu) * jax.lax.rsqrt(var + LN_EPS) * g + b


def _gelu(x):
    # TODO(synk): HF RoBERTa uses the exact erf-GELU; tanh approximation used
    # here for Mosaic-safe lowering (numerically very close).
    c = 0.7978845608028654  # sqrt(2/pi)
    return 0.5 * x * (1.0 + jnp.tanh(c * (x + 0.044715 * x * x * x)))


# ---- fused kernel ------------------------------------------------------------
def roberta_fused_kernel(
        # embedding slab + embedding-LN params (constant across the layer grid)
        emb_ref, embg_ref, embb_ref,
        # per-layer stacked weights (blocked by the layer grid axis)
        wqkv_ref, bqkv_ref, wo_ref, w1_ref, b1_ref, w2_ref, vecs_ref,
        # classifier head (constant)
        cls_wd_ref, cls_bd_ref, cls_wo_ref, cls_bo_ref,
        # output
        logits_ref,
        # VMEM scratch: activation carried across the layer axis
        x_scr):
    l = pl.program_id(0)

    # -------- prologue: embedding LayerNorm (layer 0 only) --------------------
    @pl.when(l == 0)
    def _():
        x_scr[...] = _layernorm(emb_ref[...], embg_ref[...], embb_ref[...])

    x = x_scr[...]                                   # [B*S, H] f32
    xb = x.astype(jnp.bfloat16)

    vecs = vecs_ref[0]                               # [6, H] packed bias / LN params
    bo, ln1g, ln1b = vecs[_BO:_BO + 1], vecs[_LN1G:_LN1G + 1], vecs[_LN1B:_LN1B + 1]
    b2, ln2g, ln2b = vecs[_B2:_B2 + 1], vecs[_LN2G:_LN2G + 1], vecs[_LN2B:_LN2B + 1]

    # -------- self-attention --------------------------------------------------
    # fused QKV projection: one [B*S, H] x [H, 3H] matmul
    qkv = jnp.dot(xb, wqkv_ref[0],
                  preferred_element_type=jnp.float32) + bqkv_ref[0]       # [B*S, 3H]

    scale = 1.0 / (HD ** 0.5)
    ctx_parts = []
    for h in range(NH):                              # static unroll over heads
        qh = qkv[:, h * HD:(h + 1) * HD].reshape(B, S, HD).astype(jnp.bfloat16)
        kh = qkv[:, H + h * HD:H + (h + 1) * HD].reshape(B, S, HD).astype(jnp.bfloat16)
        vh = qkv[:, 2 * H + h * HD:2 * H + (h + 1) * HD].reshape(B, S, HD).astype(jnp.bfloat16)
        s = jnp.einsum('bqd,bkd->bqk', qh, kh,
                       preferred_element_type=jnp.float32) * scale        # [B, S, S]
        s = s - jnp.max(s, axis=-1, keepdims=True)
        p = jnp.exp(s)
        p = p * pl.reciprocal(jnp.sum(p, axis=-1, keepdims=True), approx=True)
        ctx_parts.append(jnp.einsum('bqk,bkd->bqd', p.astype(jnp.bfloat16), vh,
                                    preferred_element_type=jnp.float32))  # [B, S, HD]
    ctx = jnp.concatenate(ctx_parts, axis=-1).reshape(B * S, H)           # [B*S, H]

    attn = jnp.dot(ctx.astype(jnp.bfloat16), wo_ref[0],
                   preferred_element_type=jnp.float32) + bo
    h1 = _layernorm(x + attn, ln1g, ln1b)

    # -------- feed-forward ----------------------------------------------------
    ff = _gelu(jnp.dot(h1.astype(jnp.bfloat16), w1_ref[0],
                       preferred_element_type=jnp.float32) + b1_ref[0])
    ff = jnp.dot(ff.astype(jnp.bfloat16), w2_ref[0],
                 preferred_element_type=jnp.float32) + b2
    x_new = _layernorm(h1 + ff, ln2g, ln2b)
    x_scr[...] = x_new

    # -------- epilogue: classification head (last layer only) -----------------
    @pl.when(l == NUM_LAYERS - 1)
    def _():
        cls = x_new.reshape(B, S, H)[:, 0:1, :].reshape(B, H)   # <s> token per example
        pooled = jnp.tanh(jnp.dot(cls.astype(jnp.bfloat16), cls_wd_ref[...],
                                  preferred_element_type=jnp.float32) + cls_bd_ref[...])
        logits_ref[...] = jnp.dot(pooled.astype(jnp.bfloat16), cls_wo_ref[...],
                                  preferred_element_type=jnp.float32) + cls_bo_ref[...]


# ---- pallas_call wrapper -----------------------------------------------------
def _const_spec(shape):
    n = len(shape)
    return pl.BlockSpec(shape, lambda l, n=n: (0,) * n)


def _layer_spec(shape):
    n = len(shape)
    return pl.BlockSpec((1,) + shape, lambda l, n=n: (l,) + (0,) * n)


def roberta_forward(params, input_ids):
    # embedding gathers + sum are data-dependent glue; leave them to XLA
    word = params["word_emb"][input_ids]                       # [B, S, H]
    pos = params["pos_emb"][2 + jnp.arange(S)]                 # [S, H] (RoBERTa pad offset 2)
    emb = (word + pos[None, :, :] + params["type_emb"][None, :, :]).reshape(B * S, H)

    in_specs = [
        _const_spec((B * S, H)),       # summed embeddings
        _const_spec((1, H)),           # emb_ln_g
        _const_spec((1, H)),           # emb_ln_b
        _layer_spec((H, 3 * H)),       # wqkv
        _layer_spec((1, 3 * H)),       # bqkv
        _layer_spec((H, H)),           # wo
        _layer_spec((H, FF)),          # w1
        _layer_spec((1, FF)),          # b1
        _layer_spec((FF, H)),          # w2
        _layer_spec((6, H)),           # packed bias / LN vectors
        _const_spec((H, H)),           # cls_wd
        _const_spec((1, H)),           # cls_bd
        _const_spec((H, LANE)),        # cls_wo (lane-dense padded)
        _const_spec((1, LANE)),        # cls_bo
    ]

    logits_pad = pl.pallas_call(
        roberta_fused_kernel,
        out_shape=jax.ShapeDtypeStruct((B, LANE), jnp.float32),
        grid_spec=pltpu.PrefetchScalarGridSpec(
            num_scalar_prefetch=0,
            grid=(NUM_LAYERS,),
            in_specs=in_specs,
            out_specs=pl.BlockSpec((B, LANE), lambda l: (0, 0)),
            scratch_shapes=[pltpu.VMEM((B * S, H), jnp.float32)]),
        compiler_params=pltpu.CompilerParams(
            dimension_semantics=("arbitrary",)),
    )(emb, params["emb_ln_g"], params["emb_ln_b"],
      params["wqkv"], params["bqkv"], params["wo"],
      params["w1"], params["b1"], params["w2"], params["vecs"],
      params["cls_wd"], params["cls_bd"], params["cls_wo"], params["cls_bo"])

    return logits_pad[:, :NUM_LABELS]


# ---- parameters --------------------------------------------------------------
def init_params(key):
    def normal(k, shape, scale=0.02):
        return scale * jax.random.normal(k, shape, jnp.float32)

    keys = iter(jax.random.split(key, 32))

    wqkv = jnp.stack([
        jnp.concatenate([normal(next(keys), (H, H)) for _ in range(3)], axis=-1)
        for _ in range(NUM_LAYERS)])                               # [L, H, 3H]
    wo = jnp.stack([normal(next(keys), (H, H)) for _ in range(NUM_LAYERS)])
    w1 = jnp.stack([normal(next(keys), (H, FF)) for _ in range(NUM_LAYERS)])
    w2 = jnp.stack([normal(next(keys), (FF, H)) for _ in range(NUM_LAYERS)])

    # packed per-layer vectors: [bo, ln1_g, ln1_b, b2, ln2_g, ln2_b]
    vec_one = jnp.stack([jnp.zeros(H), jnp.ones(H), jnp.zeros(H),
                         jnp.zeros(H), jnp.ones(H), jnp.zeros(H)]).astype(jnp.float32)
    vecs = jnp.broadcast_to(vec_one, (NUM_LAYERS, 6, H)).astype(jnp.float32)

    cls_wo_small = normal(next(keys), (H, NUM_LABELS))
    cls_wo = jnp.zeros((H, LANE), jnp.float32).at[:, :NUM_LABELS].set(cls_wo_small)

    return {
        "word_emb": normal(next(keys), (VOCAB, H)),
        "pos_emb": normal(next(keys), (S + 2, H)),      # RoBERTa pad offset of 2
        "type_emb": normal(next(keys), (1, H)),
        "emb_ln_g": jnp.ones((1, H), jnp.float32),
        "emb_ln_b": jnp.zeros((1, H), jnp.float32),
        "wqkv": wqkv.astype(jnp.bfloat16),
        "bqkv": jnp.zeros((NUM_LAYERS, 1, 3 * H), jnp.float32),
        "wo": wo.astype(jnp.bfloat16),
        "w1": w1.astype(jnp.bfloat16),
        "b1": jnp.zeros((NUM_LAYERS, 1, FF), jnp.float32),
        "w2": w2.astype(jnp.bfloat16),
        "vecs": vecs,
        "cls_wd": normal(next(keys), (H, H)).astype(jnp.bfloat16),
        "cls_bd": jnp.zeros((1, H), jnp.float32),
        "cls_wo": cls_wo.astype(jnp.bfloat16),
        "cls_bo": jnp.zeros((1, LANE), jnp.float32),
    }


if __name__ == "__main__":
    key = jax.random.PRNGKey(0)
    pkey, dkey = jax.random.split(key)
    params = init_params(pkey)
    input_ids = jax.random.randint(dkey, (B, S), 0, VOCAB, dtype=jnp.int32)

    logits = jax.jit(roberta_forward)(params, input_ids)
    logits = jax.block_until_ready(logits)
    assert logits.shape == (B, NUM_LABELS)
    assert bool(jnp.all(jnp.isfinite(logits)))
    print("KERNEL_OK")
</pallas_src>

<mosaic_0001>
module attributes {stable_mosaic.version = 11 : i64} {
  func.func @roberta_fused_kernel(%arg0: i32, %arg1: memref<16x128xf32, #tpu.memory_space<vmem>>, %arg2: memref<1x128xf32, #tpu.memory_space<vmem>>, %arg3: memref<1x128xf32, #tpu.memory_space<vmem>>, %arg4: memref<1x128x384xbf16, #tpu.memory_space<vmem>>, %arg5: memref<1x1x384xf32, #tpu.memory_space<vmem>>, %arg6: memref<1x128x128xbf16, #tpu.memory_space<vmem>>, %arg7: memref<1x128x256xbf16, #tpu.memory_space<vmem>>, %arg8: memref<1x1x256xf32, #tpu.memory_space<vmem>>, %arg9: memref<1x256x128xbf16, #tpu.memory_space<vmem>>, %arg10: memref<1x6x128xf32, #tpu.memory_space<vmem>>, %arg11: memref<128x128xbf16, #tpu.memory_space<vmem>>, %arg12: memref<1x128xf32, #tpu.memory_space<vmem>>, %arg13: memref<128x128xbf16, #tpu.memory_space<vmem>>, %arg14: memref<1x128xf32, #tpu.memory_space<vmem>>, %arg15: memref<2x128xf32, #tpu.memory_space<vmem>>, %arg16: memref<16x128xf32, #tpu.memory_space<vmem>>) attributes {dimension_semantics = [#tpu.dimension_semantics<arbitrary>], iteration_bounds = array<i64: 2>, scalar_prefetch = 0 : i64, scratch_operands = 1 : i64, tpu.core_type = #tpu.core_type<tc>, window_params = [{pipeline_mode = #tpu.pipeline_mode<synchronous>, transform_indices = @transform_0, window_bounds = array<i64: 16, 128>}, {pipeline_mode = #tpu.pipeline_mode<synchronous>, transform_indices = @transform_1, window_bounds = array<i64: 1, 128>}, {pipeline_mode = #tpu.pipeline_mode<synchronous>, transform_indices = @transform_2, window_bounds = array<i64: 1, 128>}, {transform_indices = @transform_3, window_bounds = array<i64: 1, 128, 384>}, {transform_indices = @transform_4, window_bounds = array<i64: 1, 1, 384>}, {transform_indices = @transform_5, window_bounds = array<i64: 1, 128, 128>}, {transform_indices = @transform_6, window_bounds = array<i64: 1, 128, 256>}, {transform_indices = @transform_7, window_bounds = array<i64: 1, 1, 256>}, {transform_indices = @transform_8, window_bounds = array<i64: 1, 256, 128>}, {transform_indices = @transform_9, window_bounds = array<i64: 1, 6, 128>}, {pipeline_mode = #tpu.pipeline_mode<synchronous>, transform_indices = @transform_10, window_bounds = array<i64: 128, 128>}, {pipeline_mode = #tpu.pipeline_mode<synchronous>, transform_indices = @transform_11, window_bounds = array<i64: 1, 128>}, {pipeline_mode = #tpu.pipeline_mode<synchronous>, transform_indices = @transform_12, window_bounds = array<i64: 128, 128>}, {pipeline_mode = #tpu.pipeline_mode<synchronous>, transform_indices = @transform_13, window_bounds = array<i64: 1, 128>}, {pipeline_mode = #tpu.pipeline_mode<synchronous>, transform_indices = @transform_14, window_bounds = array<i64: 2, 128>}]} {
    %c0_i32 = arith.constant 0 : i32
    %0 = arith.cmpi eq, %arg0, %c0_i32 : i32
    %1 = arith.extui %0 : i1 to i32
    %c0_i32_0 = arith.constant 0 : i32
    %2 = arith.cmpi ne, %1, %c0_i32_0 : i32
    scf.if %2 {
      %c0_63 = arith.constant 0 : index
      %c0_64 = arith.constant 0 : index
      %201 = vector.load %arg1[%c0_63, %c0_64] : memref<16x128xf32, #tpu.memory_space<vmem>>, vector<16x128xf32>
      %c0_65 = arith.constant 0 : index
      %c0_66 = arith.constant 0 : index
      %202 = vector.load %arg2[%c0_65, %c0_66] : memref<1x128xf32, #tpu.memory_space<vmem>>, vector<1x128xf32>
      %c0_67 = arith.constant 0 : index
      %c0_68 = arith.constant 0 : index
      %203 = vector.load %arg3[%c0_67, %c0_68] : memref<1x128xf32, #tpu.memory_space<vmem>>, vector<1x128xf32>
      %cst_69 = arith.constant dense<0.000000e+00> : vector<16xf32>
      %204 = vector.multi_reduction <add>, %201, %cst_69 [1] : vector<16x128xf32> to vector<16xf32>
      %205 = vector.shape_cast %204 : vector<16xf32> to vector<16x1xf32>
      %cst_70 = arith.constant 1.280000e+02 : f32
      %206 = vector.broadcast %cst_70 : f32 to vector<16x1xf32>
      %207 = arith.divf %205, %206 : vector<16x1xf32>
      %208 = vector.broadcast %207 : vector<16x1xf32> to vector<16x128xf32>
      %209 = arith.subf %201, %208 : vector<16x128xf32>
      %210 = arith.mulf %209, %209 : vector<16x128xf32>
      %cst_71 = arith.constant dense<0.000000e+00> : vector<16xf32>
      %211 = vector.multi_reduction <add>, %210, %cst_71 [1] : vector<16x128xf32> to vector<16xf32>
      %212 = vector.shape_cast %211 : vector<16xf32> to vector<16x1xf32>
      %cst_72 = arith.constant 1.280000e+02 : f32
      %213 = vector.broadcast %cst_72 : f32 to vector<16x1xf32>
      %214 = arith.divf %212, %213 : vector<16x1xf32>
      %215 = vector.broadcast %207 : vector<16x1xf32> to vector<16x128xf32>
      %216 = arith.subf %201, %215 : vector<16x128xf32>
      %cst_73 = arith.constant 9.99999974E-6 : f32
      %217 = vector.broadcast %cst_73 : f32 to vector<16x1xf32>
      %218 = arith.addf %214, %217 : vector<16x1xf32>
      %219 = math.rsqrt %218 : vector<16x1xf32>
      %220 = vector.broadcast %219 : vector<16x1xf32> to vector<16x128xf32>
      %221 = arith.mulf %216, %220 : vector<16x128xf32>
      %222 = vector.broadcast %202 : vector<1x128xf32> to vector<16x128xf32>
      %223 = arith.mulf %221, %222 : vector<16x128xf32>
      %224 = vector.broadcast %203 : vector<1x128xf32> to vector<16x128xf32>
      %225 = arith.addf %223, %224 : vector<16x128xf32>
      %c0_74 = arith.constant 0 : index
      %c0_75 = arith.constant 0 : index
      %226 = vector.load %arg16[%c0_74, %c0_75] : memref<16x128xf32, #tpu.memory_space<vmem>>, vector<16x128xf32>
      tpu.vector_store %arg16[%c0_74, %c0_75], %225 {strides = array<i32>} : memref<16x128xf32, #tpu.memory_space<vmem>>, vector<16x128xf32>,
    } else {
    }
    %c0 = arith.constant 0 : index
    %c0_1 = arith.constant 0 : index
    %3 = vector.load %arg16[%c0, %c0_1] : memref<16x128xf32, #tpu.memory_space<vmem>>, vector<16x128xf32>
    %4 = arith.truncf %3 : vector<16x128xf32> to vector<16x128xbf16>
    %c0_2 = arith.constant 0 : index
    %c0_3 = arith.constant 0 : index
    %c0_4 = arith.constant 0 : index
    %5 = vector.load %arg10[%c0_2, %c0_3, %c0_4] : memref<1x6x128xf32, #tpu.memory_space<vmem>>, vector<1x6x128xf32>
    %6 = vector.shape_cast %5 : vector<1x6x128xf32> to vector<6x128xf32>
    %7 = vector.extract_strided_slice %6 {offsets = [0, 0], sizes = [1, 128], strides = [1, 1]} : vector<6x128xf32> to vector<1x128xf32>
    %8 = vector.extract_strided_slice %6 {offsets = [1, 0], sizes = [1, 128], strides = [1, 1]} : vector<6x128xf32> to vector<1x128xf32>
    %9 = vector.extract_strided_slice %6 {offsets = [2, 0], sizes = [1, 128], strides = [1, 1]} : vector<6x128xf32> to vector<1x128xf32>
    %10 = vector.extract_strided_slice %6 {offsets = [3, 0], sizes = [1, 128], strides = [1, 1]} : vector<6x128xf32> to vector<1x128xf32>
    %11 = vector.extract_strided_slice %6 {offsets = [4, 0], sizes = [1, 128], strides = [1, 1]} : vector<6x128xf32> to vector<1x128xf32>
    %12 = vector.extract_strided_slice %6 {offsets = [5, 0], sizes = [1, 128], strides = [1, 1]} : vector<6x128xf32> to vector<1x128xf32>
    %c0_5 = arith.constant 0 : index
    %c0_6 = arith.constant 0 : index
    %c0_7 = arith.constant 0 : index
    %13 = vector.load %arg4[%c0_5, %c0_6, %c0_7] : memref<1x128x384xbf16, #tpu.memory_space<vmem>>, vector<1x128x384xbf16>
    %14 = vector.shape_cast %13 : vector<1x128x384xbf16> to vector<128x384xbf16>
    %cst = arith.constant dense<0.000000e+00> : vector<16x384xf32>
    %15 = tpu.matmul %4, %14, %cst {dimension_numbers = #tpu.dot_dimension_numbers<[1], [0], [0], [1], [0, 0, 1, 1], [], []>} : vector<16x128xbf16>, vector<128x384xbf16>, vector<16x384xf32> -> vector<16x384xf32>
    %c0_8 = arith.constant 0 : index
    %c0_9 = arith.constant 0 : index
    %c0_10 = arith.constant 0 : index
    %16 = vector.load %arg5[%c0_8, %c0_9, %c0_10] : memref<1x1x384xf32, #tpu.memory_space<vmem>>, vector<1x1x384xf32>
    %17 = vector.shape_cast %16 : vector<1x1x384xf32> to vector<1x384xf32>
    %18 = vector.broadcast %17 : vector<1x384xf32> to vector<16x384xf32>
    %19 = arith.addf %15, %18 : vector<16x384xf32>
    %20 = vector.extract_strided_slice %19 {offsets = [0, 0], sizes = [16, 32], strides = [1, 1]} : vector<16x384xf32> to vector<16x32xf32>
    %21 = vector.shape_cast %20 : vector<16x32xf32> to vector<2x8x32xf32>
    %22 = arith.truncf %21 : vector<2x8x32xf32> to vector<2x8x32xbf16>
    %23 = vector.extract_strided_slice %19 {offsets = [0, 128], sizes = [16, 32], strides = [1, 1]} : vector<16x384xf32> to vector<16x32xf32>
    %24 = vector.shape_cast %23 : vector<16x32xf32> to vector<2x8x32xf32>
    %25 = arith.truncf %24 : vector<2x8x32xf32> to vector<2x8x32xbf16>
    %26 = vector.extract_strided_slice %19 {offsets = [0, 256], sizes = [16, 32], strides = [1, 1]} : vector<16x384xf32> to vector<16x32xf32>
    %27 = vector.shape_cast %26 : vector<16x32xf32> to vector<2x8x32xf32>
    %28 = arith.truncf %27 : vector<2x8x32xf32> to vector<2x8x32xbf16>
    "tpu.trace_start"() <{level = 10 : i32, message = "bqd,bkd->bqk"}> : () -> ()
    %cst_11 = arith.constant dense<0.000000e+00> : vector<2x8x8xf32>
    %29 = tpu.matmul %22, %25, %cst_11 {dimension_numbers = #tpu.dot_dimension_numbers<[2], [2], [1], [1], [0, 0, 0, 1, 1, 1], [0], [0]>} : vector<2x8x32xbf16>, vector<2x8x32xbf16>, vector<2x8x8xf32> -> vector<2x8x8xf32>
    "tpu.trace_stop"() : () -> ()
    %cst_12 = arith.constant 0.176776692 : f32
    %30 = vector.broadcast %cst_12 : f32 to vector<2x8x8xf32>
    %31 = arith.mulf %29, %30 : vector<2x8x8xf32>
    %cst_13 = arith.constant dense<0xFF800000> : vector<2x8xf32>
    %32 = vector.multi_reduction <maximumf>, %31, %cst_13 [2] : vector<2x8x8xf32> to vector<2x8xf32>
    %33 = vector.shape_cast %32 : vector<2x8xf32> to vector<2x8x1xf32>
    %34 = vector.broadcast %33 : vector<2x8x1xf32> to vector<2x8x8xf32>
    %35 = arith.subf %31, %34 : vector<2x8x8xf32>
    %36 = math.exp %35 : vector<2x8x8xf32>
    %cst_14 = arith.constant dense<0.000000e+00> : vector<2x8xf32>
    %37 = vector.multi_reduction <add>, %36, %cst_14 [2] : vector<2x8x8xf32> to vector<2x8xf32>
    %38 = vector.shape_cast %37 : vector<2x8xf32> to vector<2x8x1xf32>
    %39 = tpu.reciprocal %38 {approx = true} : vector<2x8x1xf32> -> vector<2x8x1xf32>
    %40 = vector.broadcast %39 : vector<2x8x1xf32> to vector<2x8x8xf32>
    %41 = arith.mulf %36, %40 : vector<2x8x8xf32>
    %42 = arith.truncf %41 : vector<2x8x8xf32> to vector<2x8x8xbf16>
    "tpu.trace_start"() <{level = 10 : i32, message = "bqk,bkd->bqd"}> : () -> ()
    %cst_15 = arith.constant dense<0.000000e+00> : vector<2x8x32xf32>
    %43 = tpu.matmul %42, %28, %cst_15 {dimension_numbers = #tpu.dot_dimension_numbers<[2], [1], [1], [2], [0, 0, 0, 1, 1, 2], [0], [0]>} : vector<2x8x8xbf16>, vector<2x8x32xbf16>, vector<2x8x32xf32> -> vector<2x8x32xf32>
    "tpu.trace_stop"() : () -> ()
    %44 = vector.extract_strided_slice %19 {offsets = [0, 32], sizes = [16, 32], strides = [1, 1]} : vector<16x384xf32> to vector<16x32xf32>
    %45 = vector.shape_cast %44 : vector<16x32xf32> to vector<2x8x32xf32>
    %46 = arith.truncf %45 : vector<2x8x32xf32> to vector<2x8x32xbf16>
    %47 = vector.extract_strided_slice %19 {offsets = [0, 160], sizes = [16, 32], strides = [1, 1]} : vector<16x384xf32> to vector<16x32xf32>
    %48 = vector.shape_cast %47 : vector<16x32xf32> to vector<2x8x32xf32>
    %49 = arith.truncf %48 : vector<2x8x32xf32> to vector<2x8x32xbf16>
    %50 = vector.extract_strided_slice %19 {offsets = [0, 288], sizes = [16, 32], strides = [1, 1]} : vector<16x384xf32> to vector<16x32xf32>
    %51 = vector.shape_cast %50 : vector<16x32xf32> to vector<2x8x32xf32>
    %52 = arith.truncf %51 : vector<2x8x32xf32> to vector<2x8x32xbf16>
    "tpu.trace_start"() <{level = 10 : i32, message = "bqd,bkd->bqk"}> : () -> ()
    %cst_16 = arith.constant dense<0.000000e+00> : vector<2x8x8xf32>
    %53 = tpu.matmul %46, %49, %cst_16 {dimension_numbers = #tpu.dot_dimension_numbers<[2], [2], [1], [1], [0, 0, 0, 1, 1, 1], [0], [0]>} : vector<2x8x32xbf16>, vector<2x8x32xbf16>, vector<2x8x8xf32> -> vector<2x8x8xf32>
    "tpu.trace_stop"() : () -> ()
    %cst_17 = arith.constant 0.176776692 : f32
    %54 = vector.broadcast %cst_17 : f32 to vector<2x8x8xf32>
    %55 = arith.mulf %53, %54 : vector<2x8x8xf32>
    %cst_18 = arith.constant dense<0xFF800000> : vector<2x8xf32>
    %56 = vector.multi_reduction <maximumf>, %55, %cst_18 [2] : vector<2x8x8xf32> to vector<2x8xf32>
    %57 = vector.shape_cast %56 : vector<2x8xf32> to vector<2x8x1xf32>
    %58 = vector.broadcast %57 : vector<2x8x1xf32> to vector<2x8x8xf32>
    %59 = arith.subf %55, %58 : vector<2x8x8xf32>
    %60 = math.exp %59 : vector<2x8x8xf32>
    %cst_19 = arith.constant dense<0.000000e+00> : vector<2x8xf32>
    %61 = vector.multi_reduction <add>, %60, %cst_19 [2] : vector<2x8x8xf32> to vector<2x8xf32>
    %62 = vector.shape_cast %61 : vector<2x8xf32> to vector<2x8x1xf32>
    %63 = tpu.reciprocal %62 {approx = true} : vector<2x8x1xf32> -> vector<2x8x1xf32>
    %64 = vector.broadcast %63 : vector<2x8x1xf32> to vector<2x8x8xf32>
    %65 = arith.mulf %60, %64 : vector<2x8x8xf32>
    %66 = arith.truncf %65 : vector<2x8x8xf32> to vector<2x8x8xbf16>
    "tpu.trace_start"() <{level = 10 : i32, message = "bqk,bkd->bqd"}> : () -> ()
    %cst_20 = arith.constant dense<0.000000e+00> : vector<2x8x32xf32>
    %67 = tpu.matmul %66, %52, %cst_20 {dimension_numbers = #tpu.dot_dimension_numbers<[2], [1], [1], [2], [0, 0, 0, 1, 1, 2], [0], [0]>} : vector<2x8x8xbf16>, vector<2x8x32xbf16>, vector<2x8x32xf32> -> vector<2x8x32xf32>
    "tpu.trace_stop"() : () -> ()
    %68 = vector.extract_strided_slice %19 {offsets = [0, 64], sizes = [16, 32], strides = [1, 1]} : vector<16x384xf32> to vector<16x32xf32>
    %69 = vector.shape_cast %68 : vector<16x32xf32> to vector<2x8x32xf32>
    %70 = arith.truncf %69 : vector<2x8x32xf32> to vector<2x8x32xbf16>
    %71 = vector.extract_strided_slice %19 {offsets = [0, 192], sizes = [16, 32], strides = [1, 1]} : vector<16x384xf32> to vector<16x32xf32>
    %72 = vector.shape_cast %71 : vector<16x32xf32> to vector<2x8x32xf32>
    %73 = arith.truncf %72 : vector<2x8x32xf32> to vector<2x8x32xbf16>
    %74 = vector.extract_strided_slice %19 {offsets = [0, 320], sizes = [16, 32], strides = [1, 1]} : vector<16x384xf32> to vector<16x32xf32>
    %75 = vector.shape_cast %74 : vector<16x32xf32> to vector<2x8x32xf32>
    %76 = arith.truncf %75 : vector<2x8x32xf32> to vector<2x8x32xbf16>
    "tpu.trace_start"() <{level = 10 : i32, message = "bqd,bkd->bqk"}> : () -> ()
    %cst_21 = arith.constant dense<0.000000e+00> : vector<2x8x8xf32>
    %77 = tpu.matmul %70, %73, %cst_21 {dimension_numbers = #tpu.dot_dimension_numbers<[2], [2], [1], [1], [0, 0, 0, 1, 1, 1], [0], [0]>} : vector<2x8x32xbf16>, vector<2x8x32xbf16>, vector<2x8x8xf32> -> vector<2x8x8xf32>
    "tpu.trace_stop"() : () -> ()
    %cst_22 = arith.constant 0.176776692 : f32
    %78 = vector.broadcast %cst_22 : f32 to vector<2x8x8xf32>
    %79 = arith.mulf %77, %78 : vector<2x8x8xf32>
    %cst_23 = arith.constant dense<0xFF800000> : vector<2x8xf32>
    %80 = vector.multi_reduction <maximumf>, %79, %cst_23 [2] : vector<2x8x8xf32> to vector<2x8xf32>
    %81 = vector.shape_cast %80 : vector<2x8xf32> to vector<2x8x1xf32>
    %82 = vector.broadcast %81 : vector<2x8x1xf32> to vector<2x8x8xf32>
    %83 = arith.subf %79, %82 : vector<2x8x8xf32>
    %84 = math.exp %83 : vector<2x8x8xf32>
    %cst_24 = arith.constant dense<0.000000e+00> : vector<2x8xf32>
    %85 = vector.multi_reduction <add>, %84, %cst_24 [2] : vector<2x8x8xf32> to vector<2x8xf32>
    %86 = vector.shape_cast %85 : vector<2x8xf32> to vector<2x8x1xf32>
    %87 = tpu.reciprocal %86 {approx = true} : vector<2x8x1xf32> -> vector<2x8x1xf32>
    %88 = vector.broadcast %87 : vector<2x8x1xf32> to vector<2x8x8xf32>
    %89 = arith.mulf %84, %88 : vector<2x8x8xf32>
    %90 = arith.truncf %89 : vector<2x8x8xf32> to vector<2x8x8xbf16>
    "tpu.trace_start"() <{level = 10 : i32, message = "bqk,bkd->bqd"}> : () -> ()
    %cst_25 = arith.constant dense<0.000000e+00> : vector<2x8x32xf32>
    %91 = tpu.matmul %90, %76, %cst_25 {dimension_numbers = #tpu.dot_dimension_numbers<[2], [1], [1], [2], [0, 0, 0, 1, 1, 2], [0], [0]>} : vector<2x8x8xbf16>, vector<2x8x32xbf16>, vector<2x8x32xf32> -> vector<2x8x32xf32>
    "tpu.trace_stop"() : () -> ()
    %92 = vector.extract_strided_slice %19 {offsets = [0, 96], sizes = [16, 32], strides = [1, 1]} : vector<16x384xf32> to vector<16x32xf32>
    %93 = vector.shape_cast %92 : vector<16x32xf32> to vector<2x8x32xf32>
    %94 = arith.truncf %93 : vector<2x8x32xf32> to vector<2x8x32xbf16>
    %95 = vector.extract_strided_slice %19 {offsets = [0, 224], sizes = [16, 32], strides = [1, 1]} : vector<16x384xf32> to vector<16x32xf32>
    %96 = vector.shape_cast %95 : vector<16x32xf32> to vector<2x8x32xf32>
    %97 = arith.truncf %96 : vector<2x8x32xf32> to vector<2x8x32xbf16>
    %98 = vector.extract_strided_slice %19 {offsets = [0, 352], sizes = [16, 32], strides = [1, 1]} : vector<16x384xf32> to vector<16x32xf32>
    %99 = vector.shape_cast %98 : vector<16x32xf32> to vector<2x8x32xf32>
    %100 = arith.truncf %99 : vector<2x8x32xf32> to vector<2x8x32xbf16>
    "tpu.trace_start"() <{level = 10 : i32, message = "bqd,bkd->bqk"}> : () -> ()
    %cst_26 = arith.constant dense<0.000000e+00> : vector<2x8x8xf32>
    %101 = tpu.matmul %94, %97, %cst_26 {dimension_numbers = #tpu.dot_dimension_numbers<[2], [2], [1], [1], [0, 0, 0, 1, 1, 1], [0], [0]>} : vector<2x8x32xbf16>, vector<2x8x32xbf16>, vector<2x8x8xf32> -> vector<2x8x8xf32>
    "tpu.trace_stop"() : () -> ()
    %cst_27 = arith.constant 0.176776692 : f32
    %102 = vector.broadcast %cst_27 : f32 to vector<2x8x8xf32>
    %103 = arith.mulf %101, %102 : vector<2x8x8xf32>
    %cst_28 = arith.constant dense<0xFF800000> : vector<2x8xf32>
    %104 = vector.multi_reduction <maximumf>, %103, %cst_28 [2] : vector<2x8x8xf32> to vector<2x8xf32>
    %105 = vector.shape_cast %104 : vector<2x8xf32> to vector<2x8x1xf32>
    %106 = vector.broadcast %105 : vector<2x8x1xf32> to vector<2x8x8xf32>
    %107 = arith.subf %103, %106 : vector<2x8x8xf32>
    %108 = math.exp %107 : vector<2x8x8xf32>
    %cst_29 = arith.constant dense<0.000000e+00> : vector<2x8xf32>
    %109 = vector.multi_reduction <add>, %108, %cst_29 [2] : vector<2x8x8xf32> to vector<2x8xf32>
    %110 = vector.shape_cast %109 : vector<2x8xf32> to vector<2x8x1xf32>
    %111 = tpu.reciprocal %110 {approx = true} : vector<2x8x1xf32> -> vector<2x8x1xf32>
    %112 = vector.broadcast %111 : vector<2x8x1xf32> to vector<2x8x8xf32>
    %113 = arith.mulf %108, %112 : vector<2x8x8xf32>
    %114 = arith.truncf %113 : vector<2x8x8xf32> to vector<2x8x8xbf16>
    "tpu.trace_start"() <{level = 10 : i32, message = "bqk,bkd->bqd"}> : () -> ()
    %cst_30 = arith.constant dense<0.000000e+00> : vector<2x8x32xf32>
    %115 = tpu.matmul %114, %100, %cst_30 {dimension_numbers = #tpu.dot_dimension_numbers<[2], [1], [1], [2], [0, 0, 0, 1, 1, 2], [0], [0]>} : vector<2x8x8xbf16>, vector<2x8x32xbf16>, vector<2x8x32xf32> -> vector<2x8x32xf32>
    "tpu.trace_stop"() : () -> ()
    %116 = tpu.concatenate %43, %67, %91, %115 in 2 : vector<2x8x32xf32>, vector<2x8x32xf32>, vector<2x8x32xf32>, vector<2x8x32xf32> -> vector<2x8x128xf32>
    %117 = vector.shape_cast %116 : vector<2x8x128xf32> to vector<16x128xf32>
    %118 = arith.truncf %117 : vector<16x128xf32> to vector<16x128xbf16>
    %c0_31 = arith.constant 0 : index
    %c0_32 = arith.constant 0 : index
    %c0_33 = arith.constant 0 : index
    %119 = vector.load %arg6[%c0_31, %c0_32, %c0_33] : memref<1x128x128xbf16, #tpu.memory_space<vmem>>, vector<1x128x128xbf16>
    %120 = vector.shape_cast %119 : vector<1x128x128xbf16> to vector<128x128xbf16>
    %cst_34 = arith.constant dense<0.000000e+00> : vector<16x128xf32>
    %121 = tpu.matmul %118, %120, %cst_34 {dimension_numbers = #tpu.dot_dimension_numbers<[1], [0], [0], [1], [0, 0, 1, 1], [], []>} : vector<16x128xbf16>, vector<128x128xbf16>, vector<16x128xf32> -> vector<16x128xf32>
    %122 = vector.broadcast %7 : vector<1x128xf32> to vector<16x128xf32>
    %123 = arith.addf %121, %122 : vector<16x128xf32>
    %124 = arith.addf %3, %123 : vector<16x128xf32>
    %cst_35 = arith.constant dense<0.000000e+00> : vector<16xf32>
    %125 = vector.multi_reduction <add>, %124, %cst_35 [1] : vector<16x128xf32> to vector<16xf32>
    %126 = vector.shape_cast %125 : vector<16xf32> to vector<16x1xf32>
    %cst_36 = arith.constant 1.280000e+02 : f32
    %127 = vector.broadcast %cst_36 : f32 to vector<16x1xf32>
    %128 = arith.divf %126, %127 : vector<16x1xf32>
    %129 = vector.broadcast %128 : vector<16x1xf32> to vector<16x128xf32>
    %130 = arith.subf %124, %129 : vector<16x128xf32>
    %131 = arith.mulf %130, %130 : vector<16x128xf32>
    %cst_37 = arith.constant dense<0.000000e+00> : vector<16xf32>
    %132 = vector.multi_reduction <add>, %131, %cst_37 [1] : vector<16x128xf32> to vector<16xf32>
    %133 = vector.shape_cast %132 : vector<16xf32> to vector<16x1xf32>
    %cst_38 = arith.constant 1.280000e+02 : f32
    %134 = vector.broadcast %cst_38 : f32 to vector<16x1xf32>
    %135 = arith.divf %133, %134 : vector<16x1xf32>
    %136 = vector.broadcast %128 : vector<16x1xf32> to vector<16x128xf32>
    %137 = arith.subf %124, %136 : vector<16x128xf32>
    %cst_39 = arith.constant 9.99999974E-6 : f32
    %138 = vector.broadcast %cst_39 : f32 to vector<16x1xf32>
    %139 = arith.addf %135, %138 : vector<16x1xf32>
    %140 = math.rsqrt %139 : vector<16x1xf32>
    %141 = vector.broadcast %140 : vector<16x1xf32> to vector<16x128xf32>
    %142 = arith.mulf %137, %141 : vector<16x128xf32>
    %143 = vector.broadcast %8 : vector<1x128xf32> to vector<16x128xf32>
    %144 = arith.mulf %142, %143 : vector<16x128xf32>
    %145 = vector.broadcast %9 : vector<1x128xf32> to vector<16x128xf32>
    %146 = arith.addf %144, %145 : vector<16x128xf32>
    %147 = arith.truncf %146 : vector<16x128xf32> to vector<16x128xbf16>
    %c0_40 = arith.constant 0 : index
    %c0_41 = arith.constant 0 : index
    %c0_42 = arith.constant 0 : index
    %148 = vector.load %arg7[%c0_40, %c0_41, %c0_42] : memref<1x128x256xbf16, #tpu.memory_space<vmem>>, vector<1x128x256xbf16>
    %149 = vector.shape_cast %148 : vector<1x128x256xbf16> to vector<128x256xbf16>
    %cst_43 = arith.constant dense<0.000000e+00> : vector<16x256xf32>
    %150 = tpu.matmul %147, %149, %cst_43 {dimension_numbers = #tpu.dot_dimension_numbers<[1], [0], [0], [1], [0, 0, 1, 1], [], []>} : vector<16x128xbf16>, vector<128x256xbf16>, vector<16x256xf32> -> vector<16x256xf32>
    %c0_44 = arith.constant 0 : index
    %c0_45 = arith.constant 0 : index
    %c0_46 = arith.constant 0 : index
    %151 = vector.load %arg8[%c0_44, %c0_45, %c0_46] : memref<1x1x256xf32, #tpu.memory_space<vmem>>, vector<1x1x256xf32>
    %152 = vector.shape_cast %151 : vector<1x1x256xf32> to vector<1x256xf32>
    %153 = vector.broadcast %152 : vector<1x256xf32> to vector<16x256xf32>
    %154 = arith.addf %150, %153 : vector<16x256xf32>
    %cst_47 = arith.constant 5.000000e-01 : f32
    %155 = vector.broadcast %cst_47 : f32 to vector<16x256xf32>
    %156 = arith.mulf %155, %154 : vector<16x256xf32>
    %cst_48 = arith.constant 4.471500e-02 : f32
    %157 = vector.broadcast %cst_48 : f32 to vector<16x256xf32>
    %158 = arith.mulf %157, %154 : vector<16x256xf32>
    %159 = arith.mulf %158, %154 : vector<16x256xf32>
    %160 = arith.mulf %159, %154 : vector<16x256xf32>
    %161 = arith.addf %154, %160 : vector<16x256xf32>
    %cst_49 = arith.constant 0.797884583 : f32
    %162 = vector.broadcast %cst_49 : f32 to vector<16x256xf32>
    %163 = arith.mulf %162, %161 : vector<16x256xf32>
    %164 = math.tanh %163 : vector<16x256xf32>
    %cst_50 = arith.constant 1.000000e+00 : f32
    %165 = vector.broadcast %cst_50 : f32 to vector<16x256xf32>
    %166 = arith.addf %165, %164 : vector<16x256xf32>
    %167 = arith.mulf %156, %166 : vector<16x256xf32>
    %168 = arith.truncf %167 : vector<16x256xf32> to vector<16x256xbf16>
    %c0_51 = arith.constant 0 : index
    %c0_52 = arith.constant 0 : index
    %c0_53 = arith.constant 0 : index
    %169 = vector.load %arg9[%c0_51, %c0_52, %c0_53] : memref<1x256x128xbf16, #tpu.memory_space<vmem>>, vector<1x256x128xbf16>
    %170 = vector.shape_cast %169 : vector<1x256x128xbf16> to vector<256x128xbf16>
    %cst_54 = arith.constant dense<0.000000e+00> : vector<16x128xf32>
    %171 = tpu.matmul %168, %170, %cst_54 {dimension_numbers = #tpu.dot_dimension_numbers<[1], [0], [0], [1], [0, 0, 1, 1], [], []>} : vector<16x256xbf16>, vector<256x128xbf16>, vector<16x128xf32> -> vector<16x128xf32>
    %172 = vector.broadcast %10 : vector<1x128xf32> to vector<16x128xf32>
    %173 = arith.addf %171, %172 : vector<16x128xf32>
    %174 = arith.addf %146, %173 : vector<16x128xf32>
    %cst_55 = arith.constant dense<0.000000e+00> : vector<16xf32>
    %175 = vector.multi_reduction <add>, %174, %cst_55 [1] : vector<16x128xf32> to vector<16xf32>
    %176 = vector.shape_cast %175 : vector<16xf32> to vector<16x1xf32>
    %cst_56 = arith.constant 1.280000e+02 : f32
    %177 = vector.broadcast %cst_56 : f32 to vector<16x1xf32>
    %178 = arith.divf %176, %177 : vector<16x1xf32>
    %179 = vector.broadcast %178 : vector<16x1xf32> to vector<16x128xf32>
    %180 = arith.subf %174, %179 : vector<16x128xf32>
    %181 = arith.mulf %180, %180 : vector<16x128xf32>
    %cst_57 = arith.constant dense<0.000000e+00> : vector<16xf32>
    %182 = vector.multi_reduction <add>, %181, %cst_57 [1] : vector<16x128xf32> to vector<16xf32>
    %183 = vector.shape_cast %182 : vector<16xf32> to vector<16x1xf32>
    %cst_58 = arith.constant 1.280000e+02 : f32
    %184 = vector.broadcast %cst_58 : f32 to vector<16x1xf32>
    %185 = arith.divf %183, %184 : vector<16x1xf32>
    %186 = vector.broadcast %178 : vector<16x1xf32> to vector<16x128xf32>
    %187 = arith.subf %174, %186 : vector<16x128xf32>
    %cst_59 = arith.constant 9.99999974E-6 : f32
    %188 = vector.broadcast %cst_59 : f32 to vector<16x1xf32>
    %189 = arith.addf %185, %188 : vector<16x1xf32>
    %190 = math.rsqrt %189 : vector<16x1xf32>
    %191 = vector.broadcast %190 : vector<16x1xf32> to vector<16x128xf32>
    %192 = arith.mulf %187, %191 : vector<16x128xf32>
    %193 = vector.broadcast %11 : vector<1x128xf32> to vector<16x128xf32>
    %194 = arith.mulf %192, %193 : vector<16x128xf32>
    %195 = vector.broadcast %12 : vector<1x128xf32> to vector<16x128xf32>
    %196 = arith.addf %194, %195 : vector<16x128xf32>
    %c0_60 = arith.constant 0 : index
    %c0_61 = arith.constant 0 : index
    %197 = vector.load %arg16[%c0_60, %c0_61] : memref<16x128xf32, #tpu.memory_space<vmem>>, vector<16x128xf32>
    tpu.vector_store %arg16[%c0_60, %c0_61], %196 {strides = array<i32>} : memref<16x128xf32, #tpu.memory_space<vmem>>, vector<16x128xf32>,
    %c1_i32 = arith.constant 1 : i32
    %198 = arith.cmpi eq, %arg0, %c1_i32 : i32
    %199 = arith.extui %198 : i1 to i32
    %c0_i32_62 = arith.constant 0 : i32
    %200 = arith.cmpi ne, %199, %c0_i32_62 : i32
    scf.if %200 {
      %201 = vector.shape_cast %196 : vector<16x128xf32> to vector<2x8x128xf32>
      %202 = vector.extract_strided_slice %201 {offsets = [0, 0, 0], sizes = [2, 1, 128], strides = [1, 1, 1]} : vector<2x8x128xf32> to vector<2x1x128xf32>
      %203 = vector.shape_cast %202 : vector<2x1x128xf32> to vector<2x128xf32>
      %204 = arith.truncf %203 : vector<2x128xf32> to vector<2x128xbf16>
      %c0_63 = arith.constant 0 : index
      %c0_64 = arith.constant 0 : index
      %205 = vector.load %arg11[%c0_63, %c0_64] : memref<128x128xbf16, #tpu.memory_space<vmem>>, vector<128x128xbf16>
      %cst_65 = arith.constant dense<0.000000e+00> : vector<2x128xf32>
      %206 = tpu.matmul %204, %205, %cst_65 {dimension_numbers = #tpu.dot_dimension_numbers<[1], [0], [0], [1], [0, 0, 1, 1], [], []>} : vector<2x128xbf16>, vector<128x128xbf16>, vector<2x128xf32> -> vector<2x128xf32>
      %c0_66 = arith.constant 0 : index
      %c0_67 = arith.constant 0 : index
      %207 = vector.load %arg12[%c0_66, %c0_67] : memref<1x128xf32, #tpu.memory_space<vmem>>, vector<1x128xf32>
      %208 = vector.broadcast %207 : vector<1x128xf32> to vector<2x128xf32>
      %209 = arith.addf %206, %208 : vector<2x128xf32>
      %210 = math.tanh %209 : vector<2x128xf32>
      %211 = arith.truncf %210 : vector<2x128xf32> to vector<2x128xbf16>
      %c0_68 = arith.constant 0 : index
      %c0_69 = arith.constant 0 : index
      %212 = vector.load %arg13[%c0_68, %c0_69] : memref<128x128xbf16, #tpu.memory_space<vmem>>, vector<128x128xbf16>
      %cst_70 = arith.constant dense<0.000000e+00> : vector<2x128xf32>
      %213 = tpu.matmul %211, %212, %cst_70 {dimension_numbers = #tpu.dot_dimension_numbers<[1], [0], [0], [1], [0, 0, 1, 1], [], []>} : vector<2x128xbf16>, vector<128x128xbf16>, vector<2x128xf32> -> vector<2x128xf32>
      %c0_71 = arith.constant 0 : index
      %c0_72 = arith.constant 0 : index
      %214 = vector.load %arg14[%c0_71, %c0_72] : memref<1x128xf32, #tpu.memory_space<vmem>>, vector<1x128xf32>
      %215 = vector.broadcast %214 : vector<1x128xf32> to vector<2x128xf32>
      %216 = arith.addf %213, %215 : vector<2x128xf32>
      %c0_73 = arith.constant 0 : index
      %c0_74 = arith.constant 0 : index
      %217 = vector.load %arg15[%c0_73, %c0_74] : memref<2x128xf32, #tpu.memory_space<vmem>>, vector<2x128xf32>
      tpu.vector_store %arg15[%c0_73, %c0_74], %216 {strides = array<i32>} : memref<2x128xf32, #tpu.memory_space<vmem>>, vector<2x128xf32>,
    } else {
    }
    return
  }
  func.func @transform_0(%arg0: i32) -> (i32, i32) {
    %c0_i32 = arith.constant 0 : i32
    %c0_i32_0 = arith.constant 0 : i32
    %c0_i32_1 = arith.constant 0 : i32
    return %c0_i32, %c0_i32_0 : i32, i32
  }
  func.func @transform_1(%arg0: i32) -> (i32, i32) {
    %c0_i32 = arith.constant 0 : i32
    %c0_i32_0 = arith.constant 0 : i32
    %c0_i32_1 = arith.constant 0 : i32
    return %c0_i32, %c0_i32_0 : i32, i32
  }
  func.func @transform_2(%arg0: i32) -> (i32, i32) {
    %c0_i32 = arith.constant 0 : i32
    %c0_i32_0 = arith.constant 0 : i32
    %c0_i32_1 = arith.constant 0 : i32
    return %c0_i32, %c0_i32_0 : i32, i32
  }
  func.func @transform_3(%arg0: i32) -> (i32, i32, i32) {
    %c0_i32 = arith.constant 0 : i32
    %c0_i32_0 = arith.constant 0 : i32
    %c0_i32_1 = arith.constant 0 : i32
    return %arg0, %c0_i32, %c0_i32_0 : i32, i32, i32
  }
  func.func @transform_4(%arg0: i32) -> (i32, i32, i32) {
    %c0_i32 = arith.constant 0 : i32
    %c0_i32_0 = arith.constant 0 : i32
    %c0_i32_1 = arith.constant 0 : i32
    return %arg0, %c0_i32, %c0_i32_0 : i32, i32, i32
  }
  func.func @transform_5(%arg0: i32) -> (i32, i32, i32) {
    %c0_i32 = arith.constant 0 : i32
    %c0_i32_0 = arith.constant 0 : i32
    %c0_i32_1 = arith.constant 0 : i32
    return %arg0, %c0_i32, %c0_i32_0 : i32, i32, i32
  }
  func.func @transform_6(%arg0: i32) -> (i32, i32, i32) {
    %c0_i32 = arith.constant 0 : i32
    %c0_i32_0 = arith.constant 0 : i32
    %c0_i32_1 = arith.constant 0 : i32
    return %arg0, %c0_i32, %c0_i32_0 : i32, i32, i32
  }
  func.func @transform_7(%arg0: i32) -> (i32, i32, i32) {
    %c0_i32 = arith.constant 0 : i32
    %c0_i32_0 = arith.constant 0 : i32
    %c0_i32_1 = arith.constant 0 : i32
    return %arg0, %c0_i32, %c0_i32_0 : i32, i32, i32
  }
  func.func @transform_8(%arg0: i32) -> (i32, i32, i32) {
    %c0_i32 = arith.constant 0 : i32
    %c0_i32_0 = arith.constant 0 : i32
    %c0_i32_1 = arith.constant 0 : i32
    return %arg0, %c0_i32, %c0_i32_0 : i32, i32, i32
  }
  func.func @transform_9(%arg0: i32) -> (i32, i32, i32) {
    %c0_i32 = arith.constant 0 : i32
    %c0_i32_0 = arith.constant 0 : i32
    %c0_i32_1 = arith.constant 0 : i32
    return %arg0, %c0_i32, %c0_i32_0 : i32, i32, i32
  }
  func.func @transform_10(%arg0: i32) -> (i32, i32) {
    %c0_i32 = arith.constant 0 : i32
    %c0_i32_0 = arith.constant 0 : i32
    %c0_i32_1 = arith.constant 0 : i32
    return %c0_i32, %c0_i32_0 : i32, i32
  }
  func.func @transform_11(%arg0: i32) -> (i32, i32) {
    %c0_i32 = arith.constant 0 : i32
    %c0_i32_0 = arith.constant 0 : i32
    %c0_i32_1 = arith.constant 0 : i32
    return %c0_i32, %c0_i32_0 : i32, i32
  }
  func.func @transform_12(%arg0: i32) -> (i32, i32) {
    %c0_i32 = arith.constant 0 : i32
    %c0_i32_0 = arith.constant 0 : i32
    %c0_i32_1 = arith.constant 0 : i32
    return %c0_i32, %c0_i32_0 : i32, i32
  }
  func.func @transform_13(%arg0: i32) -> (i32, i32) {
    %c0_i32 = arith.constant 0 : i32
    %c0_i32_0 = arith.constant 0 : i32
    %c0_i32_1 = arith.constant 0 : i32
    return %c0_i32, %c0_i32_0 : i32, i32
  }
  func.func @transform_14(%arg0: i32) -> (i32, i32) {
    %c0_i32 = arith.constant 0 : i32
    %c0_i32_0 = arith.constant 0 : i32
    %c0_i32_1 = arith.constant 0 : i32
    return %c0_i32, %c0_i32_0 : i32, i32
  }
}

</mosaic_0001>

<llo_original>
// kernel: roberta_forward.1
$region0: #{roberta_forward.1}
  #allocation0 [shape = 'u32[]', space=smem, size = 0x4, offset = 0x4, fixed_abs, tag = 'smem constant byte address 0x4 - core index']
  #allocation1 [shape = 'u32[144,128]{1,0:T(1,128)}', space=vmem, size = 0x12000, scoped, tag = 'internal scratch']
  #allocation2 [shape = 'f32[16,128]{1,0:T(8,128)}', space=vmem, size = 0x2000, scoped, tag = 'scratch operand']
  %s0 = inlined_call_operand.vmem [shape: f32[16,128], index: 0, kind: input, shape index: {}]
  %s1 = inlined_call_operand.vmem [shape: f32[1,128], index: 1, kind: input, shape index: {}]
  %s2 = inlined_call_operand.vmem [shape: f32[1,128], index: 2, kind: input, shape index: {}]
  %s3 = inlined_call_operand.hbm [shape: bf16[2,128,384], index: 3, kind: input, shape index: {}]
  %s4 = inlined_call_operand.vmem [shape: f32[2,1,384], index: 4, kind: input, shape index: {}]
  %s5 = inlined_call_operand.hbm [shape: bf16[2,128,128], index: 5, kind: input, shape index: {}]
  %s6 = inlined_call_operand.vmem [shape: bf16[2,128,256], index: 6, kind: input, shape index: {}]
  %s7 = inlined_call_operand.vmem [shape: f32[2,1,256], index: 7, kind: input, shape index: {}]
  %s8 = inlined_call_operand.hbm [shape: bf16[2,256,128], index: 8, kind: input, shape index: {}]
  %s9 = inlined_call_operand.vmem [shape: f32[2,6,128], index: 9, kind: input, shape index: {}]
  %s10 = inlined_call_operand.vmem [shape: bf16[128,128], index: 10, kind: input, shape index: {}]
  %s11 = inlined_call_operand.vmem [shape: f32[1,128], index: 11, kind: input, shape index: {}]
  %s12 = inlined_call_operand.hbm [shape: bf16[128,128], index: 12, kind: input, shape index: {}]
  %s13 = inlined_call_operand.vmem [shape: f32[1,128], index: 13, kind: input, shape index: {}]
  %s14 = inlined_call_operand.hbm [shape: f32[2,128], index: 14, kind: output, shape index: {}]
  %s15 = sld [smem:[#allocation0]]
  $region113: #{roberta_forward.1} parent=0
    _
  %s17 = ssub.s32 1, %s15
  %s18 = scalar_select 0, %s17, %s15
  $region1: #{roberta_forward.1} parent=0
    #allocation3 [shape = 'u8[196608]{0}', space=vmem, size = 0x30000, scoped, tag = 'input window, operand 3']
    #allocation4 [shape = 's32[2]{0}', space=sflag, size = 0x8, scoped, tag = 'scoped memory for roberta_forward.1']
    #allocation5 [shape = 's32[2]{0}', space=sflag, size = 0x8, scoped, tag = 'scoped memory for roberta_forward.1']
    #allocation6 [shape = 'u8[65536]{0}', space=vmem, size = 0x10000, scoped, tag = 'input window, operand 5']
    #allocation7 [shape = 's32[2]{0}', space=sflag, size = 0x8, scoped, tag = 'scoped memory for roberta_forward.1']
    #allocation8 [shape = 'u8[131072]{0}', space=vmem, size = 0x20000, scoped, tag = 'input window, operand 8']
    #allocation9 [shape = 'u8[32768]{0}', space=vmem, size = 0x8000, scoped, tag = 'input window, operand 12, single buffered']
    #allocation10 [shape = 's32[1]{0}', space=sflag, size = 0x4, scoped, tag = 'scoped memory for roberta_forward.1']
    #allocation11 [shape = 'u8[1024]{0}', space=vmem, size = 0x400, scoped, tag = 'output window, operand 0, single buffered']
    %19 = vsyncpa [#allocation4], 0
    %s20 = scalar_lea.sflag [#allocation4], 1
    %21 = vsyncpa %s20, 0
    %22 = vsyncpa [#allocation7], 0
    %s23 = scalar_lea.sflag [#allocation7], 1
    %24 = vsyncpa %s23, 0
    %25 = vsyncpa [#allocation10], 0
    %26 = vsyncpa [#allocation5], 0
    loop: start=0, step=1, limit=4
    $region2: #{roberta_forward.1} parent=1 // loop_pre_header
      _
    $region3: #{roberta_forward.1} parent=1 // loop_header
      %s28 = sphi 0, %s32
      %p29 = scmp.ge.s32.totalorder %s28, 4
      %s36 = sphi 0, %s36
      %s38 = sphi 0, %s36
      %s39 = sphi 0, %s38
      %s53 = sphi 0, %s39
      %s57 = sphi 0, %s57
      %s59 = sphi 0, %s57
      %s60 = sphi 0, %s59
      %s74 = sphi 0, %s60
      %s78 = sphi 0, %s78
      %s80 = sphi 0, %s78
      %s81 = sphi 0, %s80
      %s95 = sphi 0, %s81
      %s101 = sphi 0, %s103
      %s104 = sphi 0, %s101
      %s105 = sphi 0, %s104
      %s121 = sphi 0, %s105
      %s127 = sphi 0, %s129
      %s130 = sphi 0, %s127
      %s131 = sphi 0, %s130
      %s147 = sphi 0, %s131
      %s153 = sphi 0, %s155
      %s156 = sphi 0, %s153
      %s157 = sphi 0, %s156
      %s173 = sphi 0, %s157
      %s179 = sphi 0, %s181
      %s182 = sphi 0, %s179
      %s183 = sphi 0, %s182
      %s199 = sphi 0, %s183
      %s205 = sphi 0, %s207
      %s208 = sphi 0, %s205
      %s209 = sphi 0, %s208
      %s225 = sphi 0, %s209
      %s231 = sphi 0, %s233
      %s234 = sphi 0, %s231
      %s235 = sphi 0, %s234
      %s251 = sphi 0, %s235
      %s257 = sphi 0, %s259
      %s260 = sphi 0, %s257
      %s261 = sphi 0, %s260
      %s277 = sphi 0, %s261
      %s281 = sphi 0, %s281
      %s283 = sphi 0, %s281
      %s284 = sphi 0, %s283
      %s298 = sphi 0, %s284
      %s302 = sphi 0, %s302
      %s304 = sphi 0, %s302
      %s305 = sphi 0, %s304
      %s319 = sphi 0, %s305
      %s323 = sphi 0, %s323
      %s325 = sphi 0, %s323
      %s326 = sphi 0, %s325
      %s340 = sphi 0, %s326
      %s344 = sphi 0, %s344
      %s346 = sphi 0, %s344
      %s347 = sphi 0, %s346
      %s361 = sphi 0, %s347
      %s365 = sphi 0, %s365
      %s367 = sphi 0, %s365
      %s368 = sphi 0, %s367
      %s382 = sphi 0, %s368
    $region4: #{roberta_forward.1} parent=1 // loop_header_branch
      %31 = sbr.rel (%p29) target = $region8
    $region5: #{roberta_forward.1} parent=1 // loop_body
      %s33 = ssub.s32 %s28, 1
      %s34 = ssub.s32 %s28, 2
      %s35 = sadd.s32 %s28, 1
      %s37 = sadd.s32 %s36, 1
      %p40 = scmp.eq.s32.totalorder %s28, 1
      %p41 = scmp.ne.s32.totalorder %s36, %s38
      %p42 = scmp.eq.s32.totalorder %s28, 0
      %p43 = por %p41, %p42
      %p44 = scmp.ne.s32.totalorder %s36, %s38
      %p45 = scmp.eq.s32.totalorder %s33, 1
      %p46 = por %p44, %p45
      %p47 = scmp.ne.s32.totalorder %s38, %s39
      %p48 = scmp.eq.s32.totalorder %s33, 0
      %p49 = por %p47, %p48
      %p50 = scmp.ne.s32.totalorder %s38, %s39
      %p51 = scmp.eq.s32.totalorder %s34, 1
      %p52 = por %p50, %p51
      %p54 = scmp.ne.s32.totalorder %s39, %s53
      %p55 = scmp.eq.s32.totalorder %s34, 0
      %p56 = por %p54, %p55
      %s58 = sadd.s32 %s57, 1
      %p61 = scmp.eq.s32.totalorder %s28, 1
      %p62 = scmp.ne.s32.totalorder %s57, %s59
      %p63 = scmp.eq.s32.totalorder %s28, 0
      %p64 = por %p62, %p63
      %p65 = scmp.ne.s32.totalorder %s57, %s59
      %p66 = scmp.eq.s32.totalorder %s33, 1
      %p67 = por %p65, %p66
      %p68 = scmp.ne.s32.totalorder %s59, %s60
      %p69 = scmp.eq.s32.totalorder %s33, 0
      %p70 = por %p68, %p69
      %p71 = scmp.ne.s32.totalorder %s59, %s60
      %p72 = scmp.eq.s32.totalorder %s34, 1
      %p73 = por %p71, %p72
      %p75 = scmp.ne.s32.totalorder %s60, %s74
      %p76 = scmp.eq.s32.totalorder %s34, 0
      %p77 = por %p75, %p76
      %s79 = sadd.s32 %s78, 1
      %p82 = scmp.eq.s32.totalorder %s28, 1
      %p83 = scmp.ne.s32.totalorder %s78, %s80
      %p84 = scmp.eq.s32.totalorder %s28, 0
      %p85 = por %p83, %p84
      %p86 = scmp.ne.s32.totalorder %s78, %s80
      %p87 = scmp.eq.s32.totalorder %s33, 1
      %p88 = por %p86, %p87
      %p89 = scmp.ne.s32.totalorder %s80, %s81
      %p90 = scmp.eq.s32.totalorder %s33, 0
      %p91 = por %p89, %p90
      %p92 = scmp.ne.s32.totalorder %s80, %s81
      %p93 = scmp.eq.s32.totalorder %s34, 1
      %p94 = por %p92, %p93
      %p96 = scmp.ne.s32.totalorder %s81, %s95
      %p97 = scmp.eq.s32.totalorder %s34, 0
      %p98 = por %p96, %p97
      %s99 = ssub.s32 %s28, %s35
      %p100 = scmp.eq.s32.totalorder %s99, 0
      %s102 = sadd.s32 %s101, 1
      %s103 = scalar_select %p100, %s101, %s102
      %p106 = pneg %p100
      %p107 = scmp.eq.s32.totalorder %s28, 1
      %p108 = por %p106, %p107
      %p109 = scmp.ne.s32.totalorder %s101, %s104
      %p110 = scmp.eq.s32.totalorder %s28, 0
      %p111 = por %p109, %p110
      %p112 = scmp.ne.s32.totalorder %s101, %s104
      %p113 = scmp.eq.s32.totalorder %s33, 1
      %p114 = por %p112, %p113
      %p115 = scmp.ne.s32.totalorder %s104, %s105
      %p116 = scmp.eq.s32.totalorder %s33, 0
      %p117 = por %p115, %p116
      %p118 = scmp.ne.s32.totalorder %s104, %s105
      %p119 = scmp.eq.s32.totalorder %s34, 1
      %p120 = por %p118, %p119
      %p122 = scmp.ne.s32.totalorder %s105, %s121
      %p123 = scmp.eq.s32.totalorder %s34, 0
      %p124 = por %p122, %p123
      %s125 = ssub.s32 %s28, %s35
      %p126 = scmp.eq.s32.totalorder %s125, 0
      %s128 = sadd.s32 %s127, 1
      %s129 = scalar_select %p126, %s127, %s128
      %p132 = pneg %p126
      %p133 = scmp.eq.s32.totalorder %s28, 1
      %p134 = por %p132, %p133
      %p135 = scmp.ne.s32.totalorder %s127, %s130
      %p136 = scmp.eq.s32.totalorder %s28, 0
      %p137 = por %p135, %p136
      %p138 = scmp.ne.s32.totalorder %s127, %s130
      %p139 = scmp.eq.s32.totalorder %s33, 1
      %p140 = por %p138, %p139
      %p141 = scmp.ne.s32.totalorder %s130, %s131
      %p142 = scmp.eq.s32.totalorder %s33, 0
      %p143 = por %p141, %p142
      %p144 = scmp.ne.s32.totalorder %s130, %s131
      %p145 = scmp.eq.s32.totalorder %s34, 1
      %p146 = por %p144, %p145
      %p148 = scmp.ne.s32.totalorder %s131, %s147
      %p149 = scmp.eq.s32.totalorder %s34, 0
      %p150 = por %p148, %p149
      %s151 = ssub.s32 %s28, %s35
      %p152 = scmp.eq.s32.totalorder %s151, 0
      %s154 = sadd.s32 %s153, 1
      %s155 = scalar_select %p152, %s153, %s154
      %p158 = pneg %p152
      %p159 = scmp.eq.s32.totalorder %s28, 1
      %p160 = por %p158, %p159
      %p161 = scmp.ne.s32.totalorder %s153, %s156
      %p162 = scmp.eq.s32.totalorder %s28, 0
      %p163 = por %p161, %p162
      %p164 = scmp.ne.s32.totalorder %s153, %s156
      %p165 = scmp.eq.s32.totalorder %s33, 1
      %p166 = por %p164, %p165
      %p167 = scmp.ne.s32.totalorder %s156, %s157
      %p168 = scmp.eq.s32.totalorder %s33, 0
      %p169 = por %p167, %p168
      %p170 = scmp.ne.s32.totalorder %s156, %s157
      %p171 = scmp.eq.s32.totalorder %s34, 1
      %p172 = por %p170, %p171
      %p174 = scmp.ne.s32.totalorder %s157, %s173
      %p175 = scmp.eq.s32.totalorder %s34, 0
      %p176 = por %p174, %p175
      %s177 = ssub.s32 %s28, %s35
      %p178 = scmp.eq.s32.totalorder %s177, 0
      %s180 = sadd.s32 %s179, 1
      %s181 = scalar_select %p178, %s179, %s180
      %p184 = pneg %p178
      %p185 = scmp.eq.s32.totalorder %s28, 1
      %p186 = por %p184, %p185
      %p187 = scmp.ne.s32.totalorder %s179, %s182
      %p188 = scmp.eq.s32.totalorder %s28, 0
      %p189 = por %p187, %p188
      %p190 = scmp.ne.s32.totalorder %s179, %s182
      %p191 = scmp.eq.s32.totalorder %s33, 1
      %p192 = por %p190, %p191
      %p193 = scmp.ne.s32.totalorder %s182, %s183
      %p194 = scmp.eq.s32.totalorder %s33, 0
      %p195 = por %p193, %p194
      %p196 = scmp.ne.s32.totalorder %s182, %s183
      %p197 = scmp.eq.s32.totalorder %s34, 1
      %p198 = por %p196, %p197
      %p200 = scmp.ne.s32.totalorder %s183, %s199
      %p201 = scmp.eq.s32.totalorder %s34, 0
      %p202 = por %p200, %p201
      %s203 = ssub.s32 %s28, %s35
      %p204 = scmp.eq.s32.totalorder %s203, 0
      %s206 = sadd.s32 %s205, 1
      %s207 = scalar_select %p204, %s205, %s206
      %p210 = pneg %p204
      %p211 = scmp.eq.s32.totalorder %s28, 1
      %p212 = por %p210, %p211
      %p213 = scmp.ne.s32.totalorder %s205, %s208
      %p214 = scmp.eq.s32.totalorder %s28, 0
      %p215 = por %p213, %p214
      %p216 = scmp.ne.s32.totalorder %s205, %s208
      %p217 = scmp.eq.s32.totalorder %s33, 1
      %p218 = por %p216, %p217
      %p219 = scmp.ne.s32.totalorder %s208, %s209
      %p220 = scmp.eq.s32.totalorder %s33, 0
      %p221 = por %p219, %p220
      %p222 = scmp.ne.s32.totalorder %s208, %s209
      %p223 = scmp.eq.s32.totalorder %s34, 1
      %p224 = por %p222, %p223
      %p226 = scmp.ne.s32.totalorder %s209, %s225
      %p227 = scmp.eq.s32.totalorder %s34, 0
      %p228 = por %p226, %p227
      %s229 = ssub.s32 %s28, %s35
      %p230 = scmp.eq.s32.totalorder %s229, 0
      %s232 = sadd.s32 %s231, 1
      %s233 = scalar_select %p230, %s231, %s232
      %p236 = pneg %p230
      %p237 = scmp.eq.s32.totalorder %s28, 1
      %p238 = por %p236, %p237
      %p239 = scmp.ne.s32.totalorder %s231, %s234
      %p240 = scmp.eq.s32.totalorder %s28, 0
      %p241 = por %p239, %p240
      %p242 = scmp.ne.s32.totalorder %s231, %s234
      %p243 = scmp.eq.s32.totalorder %s33, 1
      %p244 = por %p242, %p243
      %p245 = scmp.ne.s32.totalorder %s234, %s235
      %p246 = scmp.eq.s32.totalorder %s33, 0
      %p247 = por %p245, %p246
      %p248 = scmp.ne.s32.totalorder %s234, %s235
      %p249 = scmp.eq.s32.totalorder %s34, 1
      %p250 = por %p248, %p249
      %p252 = scmp.ne.s32.totalorder %s235, %s251
      %p253 = scmp.eq.s32.totalorder %s34, 0
      %p254 = por %p252, %p253
      %s255 = ssub.s32 %s28, %s35
      %p256 = scmp.eq.s32.totalorder %s255, 0
      %s258 = sadd.s32 %s257, 1
      %s259 = scalar_select %p256, %s257, %s258
      %p262 = pneg %p256
      %p263 = scmp.eq.s32.totalorder %s28, 1
      %p264 = por %p262, %p263
      %p265 = scmp.ne.s32.totalorder %s257, %s260
      %p266 = scmp.eq.s32.totalorder %s28, 0
      %p267 = por %p265, %p266
      %p268 = scmp.ne.s32.totalorder %s257, %s260
      %p269 = scmp.eq.s32.totalorder %s33, 1
      %p270 = por %p268, %p269
      %p271 = scmp.ne.s32.totalorder %s260, %s261
      %p272 = scmp.eq.s32.totalorder %s33, 0
      %p273 = por %p271, %p272
      %p274 = scmp.ne.s32.totalorder %s260, %s261
      %p275 = scmp.eq.s32.totalorder %s34, 1
      %p276 = por %p274, %p275
      %p278 = scmp.ne.s32.totalorder %s261, %s277
      %p279 = scmp.eq.s32.totalorder %s34, 0
      %p280 = por %p278, %p279
      %s282 = sadd.s32 %s281, 1
      %p285 = scmp.eq.s32.totalorder %s28, 1
      %p286 = scmp.ne.s32.totalorder %s281, %s283
      %p287 = scmp.eq.s32.totalorder %s28, 0
      %p288 = por %p286, %p287
      %p289 = scmp.ne.s32.totalorder %s281, %s283
      %p290 = scmp.eq.s32.totalorder %s33, 1
      %p291 = por %p289, %p290
      %p292 = scmp.ne.s32.totalorder %s283, %s284
      %p293 = scmp.eq.s32.totalorder %s33, 0
      %p294 = por %p292, %p293
      %p295 = scmp.ne.s32.totalorder %s283, %s284
      %p296 = scmp.eq.s32.totalorder %s34, 1
      %p297 = por %p295, %p296
      %p299 = scmp.ne.s32.totalorder %s284, %s298
      %p300 = scmp.eq.s32.totalorder %s34, 0
      %p301 = por %p299, %p300
      %s303 = sadd.s32 %s302, 1
      %p306 = scmp.eq.s32.totalorder %s28, 1
      %p307 = scmp.ne.s32.totalorder %s302, %s304
      %p308 = scmp.eq.s32.totalorder %s28, 0
      %p309 = por %p307, %p308
      %p310 = scmp.ne.s32.totalorder %s302, %s304
      %p311 = scmp.eq.s32.totalorder %s33, 1
      %p312 = por %p310, %p311
      %p313 = scmp.ne.s32.totalorder %s304, %s305
      %p314 = scmp.eq.s32.totalorder %s33, 0
      %p315 = por %p313, %p314
      %p316 = scmp.ne.s32.totalorder %s304, %s305
      %p317 = scmp.eq.s32.totalorder %s34, 1
      %p318 = por %p316, %p317
      %p320 = scmp.ne.s32.totalorder %s305, %s319
      %p321 = scmp.eq.s32.totalorder %s34, 0
      %p322 = por %p320, %p321
      %s324 = sadd.s32 %s323, 1
      %p327 = scmp.eq.s32.totalorder %s28, 1
      %p328 = scmp.ne.s32.totalorder %s323, %s325
      %p329 = scmp.eq.s32.totalorder %s28, 0
      %p330 = por %p328, %p329
      %p331 = scmp.ne.s32.totalorder %s323, %s325
      %p332 = scmp.eq.s32.totalorder %s33, 1
      %p333 = por %p331, %p332
      %p334 = scmp.ne.s32.totalorder %s325, %s326
      %p335 = scmp.eq.s32.totalorder %s33, 0
      %p336 = por %p334, %p335
      %p337 = scmp.ne.s32.totalorder %s325, %s326
      %p338 = scmp.eq.s32.totalorder %s34, 1
      %p339 = por %p337, %p338
      %p341 = scmp.ne.s32.totalorder %s326, %s340
      %p342 = scmp.eq.s32.totalorder %s34, 0
      %p343 = por %p341, %p342
      %s345 = sadd.s32 %s344, 1
      %p348 = scmp.eq.s32.totalorder %s28, 1
      %p349 = scmp.ne.s32.totalorder %s344, %s346
      %p350 = scmp.eq.s32.totalorder %s28, 0
      %p351 = por %p349, %p350
      %p352 = scmp.ne.s32.totalorder %s344, %s346
      %p353 = scmp.eq.s32.totalorder %s33, 1
      %p354 = por %p352, %p353
      %p355 = scmp.ne.s32.totalorder %s346, %s347
      %p356 = scmp.eq.s32.totalorder %s33, 0
      %p357 = por %p355, %p356
      %p358 = scmp.ne.s32.totalorder %s346, %s347
      %p359 = scmp.eq.s32.totalorder %s34, 1
      %p360 = por %p358, %p359
      %p362 = scmp.ne.s32.totalorder %s347, %s361
      %p363 = scmp.eq.s32.totalorder %s34, 0
      %p364 = por %p362, %p363
      %s366 = sadd.s32 %s365, 1
      %p369 = scmp.eq.s32.totalorder %s28, 1
      %p370 = scmp.ne.s32.totalorder %s365, %s367
      %p371 = scmp.eq.s32.totalorder %s28, 0
      %p372 = por %p370, %p371
      %p373 = scmp.ne.s32.totalorder %s365, %s367
      %p374 = scmp.eq.s32.totalorder %s33, 1
      %p375 = por %p373, %p374
      %p376 = scmp.ne.s32.totalorder %s367, %s368
      %p377 = scmp.eq.s32.totalorder %s33, 0
      %p378 = por %p376, %p377
      %p379 = scmp.ne.s32.totalorder %s367, %s368
      %p380 = scmp.eq.s32.totalorder %s34, 1
      %p381 = por %p379, %p380
      %p383 = scmp.ne.s32.totalorder %s368, %s382
      %p384 = scmp.eq.s32.totalorder %s34, 0
      %p385 = por %p383, %p384
      %p386 = scmp.le.s32.totalorder 1, %s28
      %p387 = scmp.lt.s32.totalorder %s28, 3
      %p388 = pnand %p386, %p387
      %p389 = pneg %p388
      // Predicated region
      $region9: #{roberta_forward.1} parent=5 // pred_check
        _
      $region10: #{roberta_forward.1} parent=5 // pred_check_branch
        %391 = sbr.rel (%p388) target = $region12
      $region11: #{roberta_forward.1} parent=5 // pred_region
        %s392 = ssub.s32 %s28, 1
        // Predicated region
        $region13: #{roberta_forward.1} parent=11 // pred_check
          %p393 = pneg %p49
        $region14: #{roberta_forward.1} parent=11 // pred_check_branch
          %395 = sbr.rel (%p393) target = $region16
        $region15: #{roberta_forward.1} parent=11 // pred_region
          _
        $region16: #{roberta_forward.1} parent=11 // pred_fallthru
          _
        // Predicated region
        $region17: #{roberta_forward.1} parent=11 // pred_check
          %p396 = pneg %p70
        $region18: #{roberta_forward.1} parent=11 // pred_check_branch
          %398 = sbr.rel (%p396) target = $region20
        $region19: #{roberta_forward.1} parent=11 // pred_region
          _
        $region20: #{roberta_forward.1} parent=11 // pred_fallthru
          _
        // Predicated region
        $region21: #{roberta_forward.1} parent=11 // pred_check
          %p399 = pneg %p91
        $region22: #{roberta_forward.1} parent=11 // pred_check_branch
          %401 = sbr.rel (%p399) target = $region24
        $region23: #{roberta_forward.1} parent=11 // pred_region
          _
        $region24: #{roberta_forward.1} parent=11 // pred_fallthru
          _
        // Predicated region
        $region25: #{roberta_forward.1} parent=11 // pred_check
          %p402 = pneg %p294
        $region26: #{roberta_forward.1} parent=11 // pred_check_branch
          %404 = sbr.rel (%p402) target = $region28
        $region27: #{roberta_forward.1} parent=11 // pred_region
          _
        $region28: #{roberta_forward.1} parent=11 // pred_fallthru
          _
        // Predicated region
        $region29: #{roberta_forward.1} parent=11 // pred_check
          %p405 = pneg %p315
        $region30: #{roberta_forward.1} parent=11 // pred_check_branch
          %407 = sbr.rel (%p405) target = $region32
        $region31: #{roberta_forward.1} parent=11 // pred_region
          _
        $region32: #{roberta_forward.1} parent=11 // pred_fallthru
          _
        // Predicated region
        $region33: #{roberta_forward.1} parent=11 // pred_check
          %p408 = pneg %p336
        $region34: #{roberta_forward.1} parent=11 // pred_check_branch
          %410 = sbr.rel (%p408) target = $region36
        $region35: #{roberta_forward.1} parent=11 // pred_region
          %s412 = ssub.s32 1024, 1024
          %413 = vsyncadd [#allocation10], %s412
          %s414 = sshll.u32 [#allocation9], 4
          %s415 = int_to_ptr.vmem [resolvable:$true] %s414
          %420 = dma.hbm_to_vmem [thread:$0]  %s12, 1024, %s415, [#allocation10], 64, 64, 4
        $region36: #{roberta_forward.1} parent=11 // pred_fallthru
          _
        // Predicated region
        $region37: #{roberta_forward.1} parent=11 // pred_check
          %p421 = pneg %p357
        $region38: #{roberta_forward.1} parent=11 // pred_check_branch
          %423 = sbr.rel (%p421) target = $region40
        $region39: #{roberta_forward.1} parent=11 // pred_region
          _
        $region40: #{roberta_forward.1} parent=11 // pred_fallthru
          _
      $region12: #{roberta_forward.1} parent=5 // pred_fallthru
        _
      %p424 = scmp.lt.s32.totalorder %s28, 2
      // Predicated region
      $region41: #{roberta_forward.1} parent=5 // pred_check
        %p425 = pneg %p424
      $region42: #{roberta_forward.1} parent=5 // pred_check_branch
        %427 = sbr.rel (%p425) target = $region44
      $region43: #{roberta_forward.1} parent=5 // pred_region
        // Predicated region
        $region45: #{roberta_forward.1} parent=43 // pred_check
          %p428 = pneg %p111
        $region46: #{roberta_forward.1} parent=43 // pred_check_branch
          %430 = sbr.rel (%p428) target = $region48
        $region47: #{roberta_forward.1} parent=43 // pred_region
          %s431 = sand.u32 %s101, 1
          %s432 = scalar_lea.sflag [#allocation4], %s431
          %s433 = sand.u32 %s101, 1
          %s434 = smul.addr %s433, 192
          %s435 = scalar_lea.vmem [#allocation3], %s434
          %s437 = ssub.s32 3072, 3072
          %438 = vsyncadd %s432, %s437
          %s439 = smul.addr %s28, 48
          %s440 = smul.addr %s439, 64
          %s441 = scalar_lea.hbm %s3, %s440
          %s442 = sshll.u32 %s435, 4
          %s443 = int_to_ptr.vmem [resolvable:$true] %s442
          %448 = dma.hbm_to_vmem [thread:$0]  %s441, 3072, %s443, %s432, 192, 192, 12
        $region48: #{roberta_forward.1} parent=43 // pred_fallthru
          _
        // Predicated region
        $region49: #{roberta_forward.1} parent=43 // pred_check
          %p449 = pneg %p137
        $region50: #{roberta_forward.1} parent=43 // pred_check_branch
          %451 = sbr.rel (%p449) target = $region52
        $region51: #{roberta_forward.1} parent=43 // pred_region
          %p452 = scmp.lt.s32.totalorder %s28, 1
          %s453 = scalar_select %p452, %s28, 1
          %s454 = smul.addr %s453, 3
          %s455 = scalar_lea.vmem %s4, %s454
        $region52: #{roberta_forward.1} parent=43 // pred_fallthru
          _
        // Predicated region
        $region53: #{roberta_forward.1} parent=43 // pred_check
          %p456 = pneg %p163
        $region54: #{roberta_forward.1} parent=43 // pred_check_branch
          %458 = sbr.rel (%p456) target = $region56
        $region55: #{roberta_forward.1} parent=43 // pred_region
          %s459 = sand.u32 %s28, 1
          %s460 = scalar_lea.sflag [#allocation7], %s459
          %s461 = sand.u32 %s153, 1
          %s462 = smul.addr %s461, 64
          %s463 = scalar_lea.vmem [#allocation6], %s462
          %s465 = ssub.s32 1024, 1024
          %466 = vsyncadd %s460, %s465
          %s467 = smul.addr %s28, 16
          %s468 = smul.addr %s467, 64
          %s469 = scalar_lea.hbm %s5, %s468
          %s470 = sshll.u32 %s463, 4
          %s471 = int_to_ptr.vmem [resolvable:$true] %s470
          %476 = dma.hbm_to_vmem [thread:$0]  %s469, 1024, %s471, %s460, 64, 64, 4
        $region56: #{roberta_forward.1} parent=43 // pred_fallthru
          _
        // Predicated region
        $region57: #{roberta_forward.1} parent=43 // pred_check
          %p477 = pneg %p189
        $region58: #{roberta_forward.1} parent=43 // pred_check_branch
          %479 = sbr.rel (%p477) target = $region60
        $region59: #{roberta_forward.1} parent=43 // pred_region
          %p480 = scmp.lt.s32.totalorder %s28, 1
          %s481 = scalar_select %p480, %s28, 1
          %s482 = smul.addr %s481, 32
          %s483 = smul.addr %s482, 4
          %s484 = scalar_lea.vmem %s6, %s483
        $region60: #{roberta_forward.1} parent=43 // pred_fallthru
          _
        // Predicated region
        $region61: #{roberta_forward.1} parent=43 // pred_check
          %p485 = pneg %p215
        $region62: #{roberta_forward.1} parent=43 // pred_check_branch
          %487 = sbr.rel (%p485) target = $region64
        $region63: #{roberta_forward.1} parent=43 // pred_region
          %p488 = scmp.lt.s32.totalorder %s28, 1
          %s489 = scalar_select %p488, %s28, 1
          %s490 = smul.addr %s489, 2
          %s491 = scalar_lea.vmem %s7, %s490
        $region64: #{roberta_forward.1} parent=43 // pred_fallthru
          _
        // Predicated region
        $region65: #{roberta_forward.1} parent=43 // pred_check
          %p492 = pneg %p241
        $region66: #{roberta_forward.1} parent=43 // pred_check_branch
          %494 = sbr.rel (%p492) target = $region68
        $region67: #{roberta_forward.1} parent=43 // pred_region
          %s495 = sand.u32 %s28, 1
          %s496 = scalar_lea.sflag [#allocation7], %s495
          %s497 = sand.u32 %s231, 1
          %s498 = smul.addr %s497, 128
          %s499 = scalar_lea.vmem [#allocation8], %s498
          %s501 = ssub.s32 2048, 2048
          %502 = vsyncadd %s496, %s501
          %s503 = smul.addr %s28, 32
          %s504 = smul.addr %s503, 64
          %s505 = scalar_lea.hbm %s8, %s504
          %s506 = sshll.u32 %s499, 4
          %s507 = int_to_ptr.vmem [resolvable:$true] %s506
          %512 = dma.hbm_to_vmem [thread:$0]  %s505, 2048, %s507, %s496, 64, 64, 4
        $region68: #{roberta_forward.1} parent=43 // pred_fallthru
          _
        // Predicated region
        $region69: #{roberta_forward.1} parent=43 // pred_check
          %p513 = pneg %p267
        $region70: #{roberta_forward.1} parent=43 // pred_check_branch
          %515 = sbr.rel (%p513) target = $region72
        $region71: #{roberta_forward.1} parent=43 // pred_region
          %p516 = scmp.lt.s32.totalorder %s28, 1
          %s517 = scalar_select %p516, %s28, 1
          %s518 = smul.addr %s517, 8
          %s519 = scalar_lea.vmem %s9, %s518
        $region72: #{roberta_forward.1} parent=43 // pred_fallthru
          _
      $region44: #{roberta_forward.1} parent=5 // pred_fallthru
        _
      %p520 = scmp.le.s32.totalorder 1, %s28
      %p521 = scmp.lt.s32.totalorder %s28, 3
      %p522 = pnand %p520, %p521
      %p523 = pneg %p522
      // Predicated region
      $region73: #{roberta_forward.1} parent=5 // pred_check
        _
      $region74: #{roberta_forward.1} parent=5 // pred_check_branch
        %525 = sbr.rel (%p522) target = $region76
      $region75: #{roberta_forward.1} parent=5 // pred_region
        %s526 = ssub.s32 %s28, 1
        %s527 = sand.u32 %s104, 1
        %s528 = scalar_lea.sflag [#allocation4], %s527
        %s529 = sand.u32 %s104, 1
        %s530 = smul.addr %s529, 192
        %s531 = scalar_lea.vmem [#allocation3], %s530
        // Predicated region
        $region77: #{roberta_forward.1} parent=75 // pred_check
          %p532 = pneg %p117
        $region78: #{roberta_forward.1} parent=75 // pred_check_branch
          %534 = sbr.rel (%p532) target = $region80
        $region79: #{roberta_forward.1} parent=75 // pred_region
          %535 = dma.done %s528, 3072
        $region80: #{roberta_forward.1} parent=75 // pred_fallthru
          _
        %s536 = sand.u32 %s33, 1
        %s537 = scalar_lea.sflag [#allocation7], %s536
        %s538 = sand.u32 %s156, 1
        %s539 = smul.addr %s538, 64
        %s540 = scalar_lea.vmem [#allocation6], %s539
        // Predicated region
        $region81: #{roberta_forward.1} parent=75 // pred_check
          %p541 = pneg %p169
        $region82: #{roberta_forward.1} parent=75 // pred_check_branch
          %543 = sbr.rel (%p541) target = $region84
        $region83: #{roberta_forward.1} parent=75 // pred_region
          %544 = dma.done %s537, 1024
        $region84: #{roberta_forward.1} parent=75 // pred_fallthru
          _
        %s545 = sand.u32 %s33, 1
        %s546 = scalar_lea.sflag [#allocation7], %s545
        %s547 = sand.u32 %s234, 1
        %s548 = smul.addr %s547, 128
        %s549 = scalar_lea.vmem [#allocation8], %s548
        // Predicated region
        $region85: #{roberta_forward.1} parent=75 // pred_check
          %p550 = pneg %p247
        $region86: #{roberta_forward.1} parent=75 // pred_check_branch
          %552 = sbr.rel (%p550) target = $region88
        $region87: #{roberta_forward.1} parent=75 // pred_region
          %553 = dma.done %s546, 2048
        $region88: #{roberta_forward.1} parent=75 // pred_fallthru
          _
        // Predicated region
        $region89: #{roberta_forward.1} parent=75 // pred_check
          %p554 = pneg %p336
        $region90: #{roberta_forward.1} parent=75 // pred_check_branch
          %556 = sbr.rel (%p554) target = $region92
        $region91: #{roberta_forward.1} parent=75 // pred_region
          %557 = dma.done [#allocation10], 1024
        $region92: #{roberta_forward.1} parent=75 // pred_fallthru
          _
        %p558 = pneg %p49
        %p559 = pneg %p46
        %p560 = pneg %p70
        %p561 = pneg %p67
        %p562 = pneg %p91
        %p563 = pneg %p88
        %s564 = sand.u32 %s104, 1
        %s565 = scalar_lea.sflag [#allocation4], %s564
        %s566 = sand.u32 %s104, 1
        %s567 = smul.addr %s566, 192
        %s568 = scalar_lea.vmem [#allocation3], %s567
        %p569 = pneg %p117
        %p570 = pneg %p114
        %p571 = scmp.lt.s32.totalorder %s33, 1
        %s572 = scalar_select %p571, %s33, 1
        %s573 = smul.addr %s572, 3
        %s574 = scalar_lea.vmem %s4, %s573
        %p575 = pneg %p143
        %p576 = pneg %p140
        %s577 = sand.u32 %s33, 1
        %s578 = scalar_lea.sflag [#allocation7], %s577
        %s579 = sand.u32 %s156, 1
        %s580 = smul.addr %s579, 64
        %s581 = scalar_lea.vmem [#allocation6], %s580
        %p582 = pneg %p169
        %p583 = pneg %p166
        %p584 = scmp.lt.s32.totalorder %s33, 1
        %s585 = scalar_select %p584, %s33, 1
        %s586 = smul.addr %s585, 32
        %s587 = smul.addr %s586, 4
        %s588 = scalar_lea.vmem %s6, %s587
        %p589 = pneg %p195
        %p590 = pneg %p192
        %p591 = scmp.lt.s32.totalorder %s33, 1
        %s592 = scalar_select %p591, %s33, 1
        %s593 = smul.addr %s592, 2
        %s594 = scalar_lea.vmem %s7, %s593
        %p595 = pneg %p221
        %p596 = pneg %p218
        %s597 = sand.u32 %s33, 1
        %s598 = scalar_lea.sflag [#allocation7], %s597
        %s599 = sand.u32 %s234, 1
        %s600 = smul.addr %s599, 128
        %s601 = scalar_lea.vmem [#allocation8], %s600
        %p602 = pneg %p247
        %p603 = pneg %p244
        %p604 = scmp.lt.s32.totalorder %s33, 1
        %s605 = scalar_select %p604, %s33, 1
        %s606 = smul.addr %s605, 8
        %s607 = scalar_lea.vmem %s9, %s606
        %p608 = pneg %p273
        %p609 = pneg %p270
        %p610 = pneg %p294
        %p611 = pneg %p291
        %p612 = pneg %p315
        %p613 = pneg %p312
        %p614 = pneg %p336
        %p615 = pneg %p333
        %p616 = pneg %p357
        %p617 = pneg %p354
        %p618 = pneg %p378
        %p619 = pneg %p375
        %p620 = scmp.lt.s32.totalorder %s33, 1
        %s621 = scalar_select %p620, %s33, 1
        %s622 = smul.addr %s621, 3
        %s623 = scalar_lea.vmem %s4, %s622
        %p624 = scmp.lt.s32.totalorder %s33, 1
        %s625 = scalar_select %p624, %s33, 1
        %s626 = smul.addr %s625, 32
        %s627 = smul.addr %s626, 4
        %s628 = scalar_lea.vmem %s6, %s627
        %p629 = scmp.lt.s32.totalorder %s33, 1
        %s630 = scalar_select %p629, %s33, 1
        %s631 = smul.addr %s630, 2
        %s632 = scalar_lea.vmem %s7, %s631
        %p633 = scmp.lt.s32.totalorder %s33, 1
        %s634 = scalar_select %p633, %s33, 1
        %s635 = smul.addr %s634, 8
        %s636 = scalar_lea.vmem %s9, %s635
        %p638 = scmp.eq.s32.totalorder %s33, 0
        // Predicated region
        $region93: #{roberta_forward.1} parent=75 // pred_check
          %p639 = pneg %p638
        $region94: #{roberta_forward.1} parent=75 // pred_check_branch
          %641 = sbr.rel (%p639) target = $region96
        $region95: #{roberta_forward.1} parent=75 // pred_region
          %v642 = vld [vmem:[%s0] sm:$0xff]
          %v643 = vld [vmem:[%s0 + $0x8] sm:$0xff]
          %v644 = vld [vmem:[%s1] sm:$0x1]
          %v645 = vld [vmem:[%s2] sm:$0x1]
          %646 = vadd.xlane.f32.xlu0 %v642
          %v647 = vpop.xlane.xlu0 %646
          %648 = vadd.xlane.f32.xlu0 %v643
          %v649 = vpop.xlane.xlu0 %648
          %v650 = vrcp.pop 128.0
          %v651 = vmul.f32 %v647, %v650
          %v652 = vmul.f32 %v649, %v650
          %v653 = vsub.f32 %v642, %v651
          %v654 = vsub.f32 %v643, %v652
          %v655 = vmul.f32 %v653, %v653
          %v656 = vmul.f32 %v654, %v654
          %657 = vadd.xlane.f32.xlu0 %v655
          %v658 = vpop.xlane.xlu0 %657
          %659 = vadd.xlane.f32.xlu0 %v656
          %v660 = vpop.xlane.xlu0 %659
          %v661 = vmul.f32 %v658, %v650
          %v662 = vmul.f32 %v660, %v650
          %v663 = vadd.f32 %v661, 1e-05
          %v664 = vadd.f32 %v662, 1e-05
          %v665 = vrsqrt.pop %v663
          %v666 = vrsqrt.pop %v664
          %v667 = vmul.f32 %v653, %v665
          %v668 = vmul.f32 %v654, %v666
          %v670 = vlaneseq
          %v671 = vshrl.u32 %v670, 7
          %v672 = vsub.s32 0, %v671
          %v673 = vrot.slane %v644, %v672
          %v675 = vmul.f32 %v667, %v673
          %v676 = vmul.f32 %v668, %v673
          %v678 = vlaneseq
          %v679 = vshrl.u32 %v678, 7
          %v680 = vsub.s32 0, %v679
          %v681 = vrot.slane %v645, %v680
          %v683 = vadd.f32 %v675, %v681
          %v684 = vadd.f32 %v676, %v681
          %685 = vst [vmem:[#allocation2] sm:$0xff] %v683
          %686 = vst [vmem:[#allocation2 + $0x8] sm:$0xff] %v684
        $region96: #{roberta_forward.1} parent=75 // pred_fallthru
          _
        %v687 = vld [vmem:[#allocation2] sm:$0xff]
        %v688 = vld [vmem:[#allocation2 + $0x8] sm:$0xff]
        %v689 = vpack.c.bf16 %v688, %v687
        %v690 = vld [vmem:[%s636] sm:$0x3f]
        %v691 = vld [vmem:[%s531] sm:$0xff]
        %v692 = vld [vmem:[%s531 + $0x8] sm:$0xf]
        %v693 = vld [vmem:[%s531 + $0xc] sm:$0xff]
        %v694 = vld [vmem:[%s531 + $0x14] sm:$0xf]
        %v695 = vld [vmem:[%s531 + $0x18] sm:$0xff]
        %v696 = vld [vmem:[%s531 + $0x20] sm:$0xf]
        %v697 = vld [vmem:[%s531 + $0x24] sm:$0xff]
        %v698 = vld [vmem:[%s531 + $0x2c] sm:$0xf]
        %v699 = vld [vmem:[%s531 + $0x30] sm:$0xff]
        %v700 = vld [vmem:[%s531 + $0x38] sm:$0xf]
        %v701 = vld [vmem:[%s531 + $0x3c] sm:$0xff]
        %v702 = vld [vmem:[%s531 + $0x44] sm:$0xf]
        %v703 = vld [vmem:[%s531 + $0x48] sm:$0xff]
        %v704 = vld [vmem:[%s531 + $0x50] sm:$0xf]
        %v705 = vld [vmem:[%s531 + $0x54] sm:$0xff]
        %v706 = vld [vmem:[%s531 + $0x5c] sm:$0xf]
        %v707 = vld [vmem:[%s531 + $0x60] sm:$0xff]
        %v708 = vld [vmem:[%s531 + $0x68] sm:$0xf]
        %v709 = vld [vmem:[%s531 + $0x6c] sm:$0xff]
        %v710 = vld [vmem:[%s531 + $0x74] sm:$0xf]
        %v711 = vld [vmem:[%s531 + $0x78] sm:$0xff]
        %v712 = vld [vmem:[%s531 + $0x80] sm:$0xf]
        %v713 = vld [vmem:[%s531 + $0x84] sm:$0xff]
        %v714 = vld [vmem:[%s531 + $0x8c] sm:$0xf]
        %v715 = vld [vmem:[%s531 + $0x90] sm:$0xff]
        %v716 = vld [vmem:[%s531 + $0x98] sm:$0xf]
        %v717 = vld [vmem:[%s531 + $0x9c] sm:$0xff]
        %v718 = vld [vmem:[%s531 + $0xa4] sm:$0xf]
        %v719 = vld [vmem:[%s531 + $0xa8] sm:$0xff]
        %v720 = vld [vmem:[%s531 + $0xb0] sm:$0xf]
        %v721 = vld [vmem:[%s531 + $0xb4] sm:$0xff]
        %v722 = vld [vmem:[%s531 + $0xbc] sm:$0xf]
        %v723 = vld [vmem:[%s623] sm:$0x7]
        %v725 = vlaneseq
        %v726 = vshrl.u32 %v725, 7
        %v727 = vsub.s32 0, %v726
        %v728 = vrot.slane %v723, %v727
        %v729 = vlaneseq
        %v730 = vshrl.u32 %v729, 7
        %v731 = vsub.s32 1, %v730
        %v732 = vrot.slane %v723, %v731
        %v733 = vlaneseq
        %v734 = vshrl.u32 %v733, 7
        %v735 = vsub.s32 2, %v734
        %v736 = vrot.slane %v723, %v735
        %v772 = vunpack.c.l.b16 %v691
        %v773 = vunpack.c.h.b16 %v691
        %v774 = vunpack.c.l.b16 %v692
        %v775 = vunpack.c.l.b16 %v693
        %v776 = vunpack.c.h.b16 %v693
        %v777 = vunpack.c.l.b16 %v694
        %v778 = vunpack.c.l.b16 %v695
        %v779 = vunpack.c.h.b16 %v695
        %v780 = vunpack.c.l.b16 %v696
        %v781 = vunpack.c.l.b16 %v697
        %v782 = vunpack.c.h.b16 %v697
        %v783 = vunpack.c.l.b16 %v698
        %v784 = vunpack.c.l.b16 %v699
        %v785 = vunpack.c.h.b16 %v699
        %v786 = vunpack.c.l.b16 %v700
        %v787 = vunpack.c.l.b16 %v701
        %v788 = vunpack.c.h.b16 %v701
        %v789 = vunpack.c.l.b16 %v702
        %v790 = vunpack.c.l.b16 %v703
        %v791 = vunpack.c.h.b16 %v703
        %v792 = vunpack.c.l.b16 %v704
        %v793 = vunpack.c.l.b16 %v705
        %v794 = vunpack.c.h.b16 %v705
        %v795 = vunpack.c.l.b16 %v706
        %v796 = vunpack.c.l.b16 %v707
        %v797 = vunpack.c.h.b16 %v707
        %v798 = vunpack.c.l.b16 %v708
        %v799 = vunpack.c.l.b16 %v709
        %v800 = vunpack.c.h.b16 %v709
        %v801 = vunpack.c.l.b16 %v710
        %v802 = vunpack.c.l.b16 %v711
        %v803 = vunpack.c.h.b16 %v711
        %v804 = vunpack.c.l.b16 %v712
        %v805 = vunpack.c.l.b16 %v713
        %v806 = vunpack.c.h.b16 %v713
        %v807 = vunpack.c.l.b16 %v714
        %v808 = vunpack.c.l.b16 %v715
        %v809 = vunpack.c.h.b16 %v715
        %v810 = vunpack.c.l.b16 %v716
        %v811 = vunpack.c.l.b16 %v717
        %v812 = vunpack.c.h.b16 %v717
        %v813 = vunpack.c.l.b16 %v718
        %v814 = vunpack.c.l.b16 %v719
        %v815 = vunpack.c.h.b16 %v719
        %v816 = vunpack.c.l.b16 %v720
        %v817 = vunpack.c.l.b16 %v721
        %v818 = vunpack.c.h.b16 %v721
        %v819 = vunpack.c.l.b16 %v722
        %v820 = vpack.c.b16 %v775, %v772
        %v821 = vpack.c.b16 %v776, %v773
        %v822 = vpack.c.b16 %v777, %v774
        %v823 = vpack.c.b16 %v781, %v778
        %v824 = vpack.c.b16 %v782, %v779
        %v825 = vpack.c.b16 %v783, %v780
        %v826 = vpack.c.b16 %v787, %v784
        %v827 = vpack.c.b16 %v788, %v785
        %v828 = vpack.c.b16 %v789, %v786
        %v829 = vpack.c.b16 %v793, %v790
        %v830 = vpack.c.b16 %v794, %v791
        %v831 = vpack.c.b16 %v795, %v792
        %v832 = vpack.c.b16 %v799, %v796
        %v833 = vpack.c.b16 %v800, %v797
        %v834 = vpack.c.b16 %v801, %v798
        %v835 = vpack.c.b16 %v805, %v802
        %v836 = vpack.c.b16 %v806, %v803
        %v837 = vpack.c.b16 %v807, %v804
        %v838 = vpack.c.b16 %v811, %v808
        %v839 = vpack.c.b16 %v812, %v809
        %v840 = vpack.c.b16 %v813, %v810
        %v841 = vpack.c.b16 %v817, %v814
        %v842 = vpack.c.b16 %v818, %v815
        %v843 = vpack.c.b16 %v819, %v816
        %868 = vmatprep.subr.bf16.mxu0 %v821
        %869 = vmatpush1.bf16.msra.mxu0 %v820
        %870 = vmatprep.subr.bf16.mxu0 %v824
        %871 = vmatpush1.bf16.msra.mxu0 %v823
        %872 = vmatprep.subr.bf16.mxu0 %v827
        %873 = vmatpush1.bf16.msra.mxu0 %v826
        %874 = vmatprep.subr.bf16.mxu0 %v830
        %875 = vmatpush1.bf16.msra.mxu0 %v829
        %876 = vmatprep.subr.bf16.mxu0 %v833
        %877 = vmatpush1.bf16.msra.mxu0 %v832
        %878 = vmatprep.subr.bf16.mxu0 %v836
        %879 = vmatpush1.bf16.msra.mxu0 %v835
        %880 = vmatprep.subr.bf16.mxu0 %v839
        %881 = vmatpush1.bf16.msra.mxu0 %v838
        %882 = vmatprep.subr.bf16.mxu0 %v842
        %883 = vmatpush1.bf16.msra.mxu0 %v841
        %884 = vmatprep.subr.bf16.mxu0 0
        %885 = vmatpush1.bf16.msra.mxu0 0
        %886 = vmatprep.subr.bf16.mxu0 0
        %887 = vmatpush1.bf16.msra.mxu0 0
        %888 = vmatprep.subr.bf16.mxu0 0
        %889 = vmatpush1.bf16.msra.mxu0 0
        %890 = vmatprep.subr.bf16.mxu0 0
        %891 = vmatpush1.bf16.msra.mxu0 0
        %892 = vmatprep.subr.bf16.mxu0 0
        %893 = vmatpush1.bf16.msra.mxu0 0
        %894 = vmatprep.subr.bf16.mxu0 0
        %895 = vmatpush1.bf16.msra.mxu0 0
        %896 = vmatprep.subr.bf16.mxu0 0
        %897 = vmatpush1.bf16.msra.mxu0 0
        %898 = vmatprep.subr.bf16.mxu0 0
        %899 = vmatpush1.bf16.msra.mxu0 0
        %900 = vmatprep.mubr.bf16.mxu0 0
        %901 = vmatmul.mubr.bf16.gmra.mrb[0].mxu0 %v689
        %v902 = vpop.f32.mrb[0].mxu0
        %v903 = vadd.f32 %v728, %v902
        %v904 = vpop.f32.mrb[0].mxu0
        %v905 = vadd.f32 %v732, %v904
        %v906 = vpop.f32.mrb[0].mxu0
        %v907 = vadd.f32 %v728, %v906
        %v908 = vpop.f32.mrb[0].mxu0
        %v909 = vadd.f32 %v732, %v908
        %910 = vdwg.mxu0
        %911 = vmatprep.subr.bf16.mxu0 0
        %912 = vmatpush1.bf16.msra.mxu0 %v822
        %913 = vmatprep.subr.bf16.mxu0 0
        %914 = vmatpush1.bf16.msra.mxu0 %v825
        %915 = vmatprep.subr.bf16.mxu0 0
        %916 = vmatpush1.bf16.msra.mxu0 %v828
        %917 = vmatprep.subr.bf16.mxu0 0
        %918 = vmatpush1.bf16.msra.mxu0 %v831
        %919 = vmatprep.subr.bf16.mxu0 0
        %920 = vmatpush1.bf16.msra.mxu0 %v834
        %921 = vmatprep.subr.bf16.mxu0 0
        %922 = vmatpush1.bf16.msra.mxu0 %v837
        %923 = vmatprep.subr.bf16.mxu0 0
        %924 = vmatpush1.bf16.msra.mxu0 %v840
        %925 = vmatprep.subr.bf16.mxu0 0
        %926 = vmatpush1.bf16.msra.mxu0 %v843
        %927 = vmatprep.subr.bf16.mxu0 0
        %928 = vmatpush1.bf16.msra.mxu0 0
        %929 = vmatprep.subr.bf16.mxu0 0
        %930 = vmatpush1.bf16.msra.mxu0 0
        %931 = vmatprep.subr.bf16.mxu0 0
        %932 = vmatpush1.bf16.msra.mxu0 0
        %933 = vmatprep.subr.bf16.mxu0 0
        %934 = vmatpush1.bf16.msra.mxu0 0
        %935 = vmatprep.subr.bf16.mxu0 0
        %936 = vmatpush1.bf16.msra.mxu0 0
        %937 = vmatprep.subr.bf16.mxu0 0
        %938 = vmatpush1.bf16.msra.mxu0 0
        %939 = vmatprep.subr.bf16.mxu0 0
        %940 = vmatpush1.bf16.msra.mxu0 0
        %941 = vmatprep.subr.bf16.mxu0 0
        %942 = vmatpush1.bf16.msra.mxu0 0
        %943 = vmatprep.mubr.bf16.mxu0 0
        %944 = vmatmul.mubr.bf16.gmra.mrb[0].mxu0 %v689
        %v945 = vpop.f32.mrb[0].mxu0
        %v946 = vadd.f32 %v736, %v945
        %v947 = vpop.f32.mrb[0].mxu0
        %v948 = vpop.f32.mrb[0].mxu0
        %v949 = vadd.f32 %v736, %v948
        %v950 = vpop.f32.mrb[0].mxu0
        %951 = vdwg.mxu0
        %v952 = vpack.c.bf16 %v903, %v903
        %v953 = vpack.c.bf16 %v907, %v907
        %v954 = vpack.c.bf16 %v905, %v905
        %v955 = vpack.c.bf16 %v909, %v909
        %v956 = vpack.c.bf16 %v946, %v946
        %v957 = vpack.c.bf16 %v949, %v949
        %vm958 = vcmask 261120
        %v960 = vsel %vm958, %v952, 0
        %v963 = vsel %vm958, %v954, 0
        %965 = vmatprep.subr.bf16.mxu0 0
        %966 = vmatpush1.bf16.xpose.msra.mxu0 %v963
        %967 = vmatprep.subr.bf16.mxu0 0
        %968 = vmatpush1.bf16.xpose.msra.mxu0 0
        %969 = vmatprep.subr.bf16.mxu0 0
        %970 = vmatpush1.bf16.xpose.msra.mxu0 0
        %971 = vmatprep.subr.bf16.mxu0 0
        %972 = vmatpush1.bf16.xpose.msra.mxu0 0
        %973 = vmatprep.subr.bf16.mxu0 0
        %974 = vmatpush1.bf16.xpose.msra.mxu0 0
        %975 = vmatprep.subr.bf16.mxu0 0
        %976 = vmatpush1.bf16.xpose.msra.mxu0 0
        %977 = vmatprep.subr.bf16.mxu0 0
        %978 = vmatpush1.bf16.xpose.msra.mxu0 0
        %979 = vmatprep.subr.bf16.mxu0 0
        %980 = vmatpush1.bf16.xpose.msra.mxu0 0
        %981 = vmatprep.subr.bf16.mxu0 0
        %982 = vmatpush1.bf16.xpose.msra.mxu0 0
        %983 = vmatprep.subr.bf16.mxu0 0
        %984 = vmatpush1.bf16.xpose.msra.mxu0 0
        %985 = vmatprep.subr.bf16.mxu0 0
        %986 = vmatpush1.bf16.xpose.msra.mxu0 0
        %987 = vmatprep.subr.bf16.mxu0 0
        %988 = vmatpush1.bf16.xpose.msra.mxu0 0
        %989 = vmatprep.subr.bf16.mxu0 0
        %990 = vmatpush1.bf16.xpose.msra.mxu0 0
        %991 = vmatprep.subr.bf16.mxu0 0
        %992 = vmatpush1.bf16.xpose.msra.mxu0 0
        %993 = vmatprep.subr.bf16.mxu0 0
        %994 = vmatpush1.bf16.xpose.msra.mxu0 0
        %995 = vmatprep.subr.bf16.mxu0 0
        %996 = vmatpush1.bf16.xpose.msra.mxu0 0
        %997 = vmatprep.mubr.bf16.mxu0 0
        %998 = vmatmul.mubr.bf16.gmra.mrb[0].mxu0 %v960
        %v999 = vpop.f32.mrb[0].mxu0
        %v1000 = vadd.f32 0.0, %v999
        %v1001 = vpop.f32.mrb[0].mxu0
        %v1002 = vpop.f32.mrb[0].mxu0
        %v1003 = vpop.f32.mrb[0].mxu0
        %1004 = vdwg.mxu0
        %v1006 = vsel %vm958, %v953, 0
        %v1009 = vsel %vm958, %v955, 0
        %1011 = vmatprep.subr.bf16.mxu0 0
        %1012 = vmatpush1.bf16.xpose.msra.mxu0 %v1009
        %1013 = vmatprep.subr.bf16.mxu0 0
        %1014 = vmatpush1.bf16.xpose.msra.mxu0 0
        %1015 = vmatprep.subr.bf16.mxu0 0
        %1016 = vmatpush1.bf16.xpose.msra.mxu0 0
        %1017 = vmatprep.subr.bf16.mxu0 0
        %1018 = vmatpush1.bf16.xpose.msra.mxu0 0
        %1019 = vmatprep.subr.bf16.mxu0 0
        %1020 = vmatpush1.bf16.xpose.msra.mxu0 0
        %1021 = vmatprep.subr.bf16.mxu0 0
        %1022 = vmatpush1.bf16.xpose.msra.mxu0 0
        %1023 = vmatprep.subr.bf16.mxu0 0
        %1024 = vmatpush1.bf16.xpose.msra.mxu0 0
        %1025 = vmatprep.subr.bf16.mxu0 0
        %1026 = vmatpush1.bf16.xpose.msra.mxu0 0
        %1027 = vmatprep.subr.bf16.mxu0 0
        %1028 = vmatpush1.bf16.xpose.msra.mxu0 0
        %1029 = vmatprep.subr.bf16.mxu0 0
        %1030 = vmatpush1.bf16.xpose.msra.mxu0 0
        %1031 = vmatprep.subr.bf16.mxu0 0
        %1032 = vmatpush1.bf16.xpose.msra.mxu0 0
        %1033 = vmatprep.subr.bf16.mxu0 0
        %1034 = vmatpush1.bf16.xpose.msra.mxu0 0
        %1035 = vmatprep.subr.bf16.mxu0 0
        %1036 = vmatpush1.bf16.xpose.msra.mxu0 0
        %1037 = vmatprep.subr.bf16.mxu0 0
        %1038 = vmatpush1.bf16.xpose.msra.mxu0 0
        %1039 = vmatprep.subr.bf16.mxu0 0
        %1040 = vmatpush1.bf16.xpose.msra.mxu0 0
        %1041 = vmatprep.subr.bf16.mxu0 0
        %1042 = vmatpush1.bf16.xpose.msra.mxu0 0
        %1043 = vmatprep.mubr.bf16.mxu0 0
        %1044 = vmatmul.mubr.bf16.gmra.mrb[0].mxu0 %v1006
        %v1045 = vpop.f32.mrb[0].mxu0
        %v1046 = vadd.f32 0.0, %v1045
        %v1047 = vpop.f32.mrb[0].mxu0
        %v1048 = vpop.f32.mrb[0].mxu0
        %v1049 = vpop.f32.mrb[0].mxu0
        %1050 = vdwg.mxu0
        %v1051 = vmul.f32 %v1000, 0.17677669
        %v1052 = vmul.f32 %v1046, 0.17677669
        %vm1053 = vcmask 64512
        %v1054 = vsel %vm1053, %v1051, -inf
        %1055 = vmax.xlane.f32.xlu0 %v1054
        %v1056 = vpop.xlane.xlu0 %1055
        %v1057 = vsel %vm1053, %v1052, -inf
        %1058 = vmax.xlane.f32.xlu0 %v1057
        %v1059 = vpop.xlane.xlu0 %1058
        %v1060 = vsub.f32 %v1051, %v1056
        %v1061 = vsub.f32 %v1052, %v1059
        %v1062 = vmul.f32 %v1060, 1.442695
        %v1063 = vpow.pop %v1062
        %v1064 = vmul.f32 %v1061, 1.442695
        %v1065 = vpow.pop %v1064
        %v1066 = vsel %vm1053, %v1063, 0.0
        %1067 = vadd.xlane.f32.xlu0 %v1066
        %v1068 = vpop.xlane.xlu0 %1067
        %v1069 = vsel %vm1053, %v1065, 0.0
        %1070 = vadd.xlane.f32.xlu0 %v1069
        %v1071 = vpop.xlane.xlu0 %1070
        %v1072 = vrcp.pop %v1068
        %v1073 = vrcp.pop %v1071
        %v1074 = vmul.f32 %v1063, %v1072
        %v1075 = vmul.f32 %v1065, %v1073
        %v1076 = vpack.c.bf16 %v1074, %v1074
        %v1077 = vpack.c.bf16 %v1075, %v1075
        %v1079 = vsel %vm1053, %v1076, 0
        %vm1081 = vcmask 1043456
        %v1083 = vsel %vm1081, %v956, 0
        %1085 = vmatprep.subr.bf16.mxu0 0
        %1086 = vmatpush1.bf16.msra.mxu0 %v1083
        %1087 = vmatprep.subr.bf16.mxu0 0
        %1088 = vmatpush1.bf16.msra.mxu0 0
        %1089 = vmatprep.subr.bf16.mxu0 0
        %1090 = vmatpush1.bf16.msra.mxu0 0
        %1091 = vmatprep.subr.bf16.mxu0 0
        %1092 = vmatpush1.bf16.msra.mxu0 0
        %1093 = vmatprep.subr.bf16.mxu0 0
        %1094 = vmatpush1.bf16.msra.mxu0 0
        %1095 = vmatprep.subr.bf16.mxu0 0
        %1096 = vmatpush1.bf16.msra.mxu0 0
        %1097 = vmatprep.subr.bf16.mxu0 0
        %1098 = vmatpush1.bf16.msra.mxu0 0
        %1099 = vmatprep.subr.bf16.mxu0 0
        %1100 = vmatpush1.bf16.msra.mxu0 0
        %1101 = vmatprep.subr.bf16.mxu0 0
        %1102 = vmatpush1.bf16.msra.mxu0 0
        %1103 = vmatprep.subr.bf16.mxu0 0
        %1104 = vmatpush1.bf16.msra.mxu0 0
        %1105 = vmatprep.subr.bf16.mxu0 0
        %1106 = vmatpush1.bf16.msra.mxu0 0
        %1107 = vmatprep.subr.bf16.mxu0 0
        %1108 = vmatpush1.bf16.msra.mxu0 0
        %1109 = vmatprep.subr.bf16.mxu0 0
        %1110 = vmatpush1.bf16.msra.mxu0 0
        %1111 = vmatprep.subr.bf16.mxu0 0
        %1112 = vmatpush1.bf16.msra.mxu0 0
        %1113 = vmatprep.subr.bf16.mxu0 0
        %1114 = vmatpush1.bf16.msra.mxu0 0
        %1115 = vmatprep.subr.bf16.mxu0 0
        %1116 = vmatpush1.bf16.msra.mxu0 0
        %1117 = vmatprep.mubr.bf16.mxu0 0
        %1118 = vmatmul.mubr.bf16.gmra.mrb[0].mxu0 %v1079
        %v1119 = vpop.f32.mrb[0].mxu0
        %v1120 = vadd.f32 0.0, %v1119
        %v1121 = vpop.f32.mrb[0].mxu0
        %v1122 = vpop.f32.mrb[0].mxu0
        %v1123 = vpop.f32.mrb[0].mxu0
        %1124 = vdwg.mxu0
        %v1126 = vsel %vm1053, %v1077, 0
        %v1129 = vsel %vm1081, %v957, 0
        %1131 = vmatprep.subr.bf16.mxu0 0
        %1132 = vmatpush1.bf16.msra.mxu0 %v1129
        %1133 = vmatprep.subr.bf16.mxu0 0
        %1134 = vmatpush1.bf16.msra.mxu0 0
        %1135 = vmatprep.subr.bf16.mxu0 0
        %1136 = vmatpush1.bf16.msra.mxu0 0
        %1137 = vmatprep.subr.bf16.mxu0 0
        %1138 = vmatpush1.bf16.msra.mxu0 0
        %1139 = vmatprep.subr.bf16.mxu0 0
        %1140 = vmatpush1.bf16.msra.mxu0 0
        %1141 = vmatprep.subr.bf16.mxu0 0
        %1142 = vmatpush1.bf16.msra.mxu0 0
        %1143 = vmatprep.subr.bf16.mxu0 0
        %1144 = vmatpush1.bf16.msra.mxu0 0
        %1145 = vmatprep.subr.bf16.mxu0 0
        %1146 = vmatpush1.bf16.msra.mxu0 0
        %1147 = vmatprep.subr.bf16.mxu0 0
        %1148 = vmatpush1.bf16.msra.mxu0 0
        %1149 = vmatprep.subr.bf16.mxu0 0
        %1150 = vmatpush1.bf16.msra.mxu0 0
        %1151 = vmatprep.subr.bf16.mxu0 0
        %1152 = vmatpush1.bf16.msra.mxu0 0
        %1153 = vmatprep.subr.bf16.mxu0 0
        %1154 = vmatpush1.bf16.msra.mxu0 0
        %1155 = vmatprep.subr.bf16.mxu0 0
        %1156 = vmatpush1.bf16.msra.mxu0 0
        %1157 = vmatprep.subr.bf16.mxu0 0
        %1158 = vmatpush1.bf16.msra.mxu0 0
        %1159 = vmatprep.subr.bf16.mxu0 0
        %1160 = vmatpush1.bf16.msra.mxu0 0
        %1161 = vmatprep.subr.bf16.mxu0 0
        %1162 = vmatpush1.bf16.msra.mxu0 0
        %1163 = vmatprep.mubr.bf16.mxu0 0
        %1164 = vmatmul.mubr.bf16.gmra.mrb[0].mxu0 %v1126
        %v1165 = vpop.f32.mrb[0].mxu0
        %v1166 = vadd.f32 0.0, %v1165
        %v1167 = vpop.f32.mrb[0].mxu0
        %v1168 = vpop.f32.mrb[0].mxu0
        %v1169 = vpop.f32.mrb[0].mxu0
        %1170 = vdwg.mxu0
        %1172 = vrot.lane.b32.xlu0 %v952, 96
        %v1173 = vpop.permute.xlu0 %1172
        %1175 = vrot.lane.b32.xlu0 %v954, 96
        %v1176 = vpop.permute.xlu0 %1175
        %v1178 = vsel %vm958, %v1173, 0
        %v1181 = vsel %vm958, %v1176, 0
        %1183 = vmatprep.subr.bf16.mxu0 0
        %1184 = vmatpush1.bf16.xpose.msra.mxu0 %v1181
        %1185 = vmatprep.subr.bf16.mxu0 0
        %1186 = vmatpush1.bf16.xpose.msra.mxu0 0
        %1187 = vmatprep.subr.bf16.mxu0 0
        %1188 = vmatpush1.bf16.xpose.msra.mxu0 0
        %1189 = vmatprep.subr.bf16.mxu0 0
        %1190 = vmatpush1.bf16.xpose.msra.mxu0 0
        %1191 = vmatprep.subr.bf16.mxu0 0
        %1192 = vmatpush1.bf16.xpose.msra.mxu0 0
        %1193 = vmatprep.subr.bf16.mxu0 0
        %1194 = vmatpush1.bf16.xpose.msra.mxu0 0
        %1195 = vmatprep.subr.bf16.mxu0 0
        %1196 = vmatpush1.bf16.xpose.msra.mxu0 0
        %1197 = vmatprep.subr.bf16.mxu0 0
        %1198 = vmatpush1.bf16.xpose.msra.mxu0 0
        %1199 = vmatprep.subr.bf16.mxu0 0
        %1200 = vmatpush1.bf16.xpose.msra.mxu0 0
        %1201 = vmatprep.subr.bf16.mxu0 0
        %1202 = vmatpush1.bf16.xpose.msra.mxu0 0
        %1203 = vmatprep.subr.bf16.mxu0 0
        %1204 = vmatpush1.bf16.xpose.msra.mxu0 0
        %1205 = vmatprep.subr.bf16.mxu0 0
        %1206 = vmatpush1.bf16.xpose.msra.mxu0 0
        %1207 = vmatprep.subr.bf16.mxu0 0
        %1208 = vmatpush1.bf16.xpose.msra.mxu0 0
        %1209 = vmatprep.subr.bf16.mxu0 0
        %1210 = vmatpush1.bf16.xpose.msra.mxu0 0
        %1211 = vmatprep.subr.bf16.mxu0 0
        %1212 = vmatpush1.bf16.xpose.msra.mxu0 0
        %1213 = vmatprep.subr.bf16.mxu0 0
        %1214 = vmatpush1.bf16.xpose.msra.mxu0 0
        %1215 = vmatprep.mubr.bf16.mxu0 0
        %1216 = vmatmul.mubr.bf16.gmra.mrb[0].mxu0 %v1178
        %v1217 = vpop.f32.mrb[0].mxu0
        %v1218 = vadd.f32 0.0, %v1217
        %v1219 = vpop.f32.mrb[0].mxu0
        %v1220 = vpop.f32.mrb[0].mxu0
        %v1221 = vpop.f32.mrb[0].mxu0
        %1222 = vdwg.mxu0
        %1224 = vrot.lane.b32.xlu0 %v953, 96
        %v1225 = vpop.permute.xlu0 %1224
        %1227 = vrot.lane.b32.xlu0 %v955, 96
        %v1228 = vpop.permute.xlu0 %1227
        %v1230 = vsel %vm958, %v1225, 0
        %v1233 = vsel %vm958, %v1228, 0
        %1235 = vmatprep.subr.bf16.mxu0 0
        %1236 = vmatpush1.bf16.xpose.msra.mxu0 %v1233
        %1237 = vmatprep.subr.bf16.mxu0 0
        %1238 = vmatpush1.bf16.xpose.msra.mxu0 0
        %1239 = vmatprep.subr.bf16.mxu0 0
        %1240 = vmatpush1.bf16.xpose.msra.mxu0 0
        %1241 = vmatprep.subr.bf16.mxu0 0
        %1242 = vmatpush1.bf16.xpose.msra.mxu0 0
        %1243 = vmatprep.subr.bf16.mxu0 0
        %1244 = vmatpush1.bf16.xpose.msra.mxu0 0
        %1245 = vmatprep.subr.bf16.mxu0 0
        %1246 = vmatpush1.bf16.xpose.msra.mxu0 0
        %1247 = vmatprep.subr.bf16.mxu0 0
        %1248 = vmatpush1.bf16.xpose.msra.mxu0 0
        %1249 = vmatprep.subr.bf16.mxu0 0
        %1250 = vmatpush1.bf16.xpose.msra.mxu0 0
        %1251 = vmatprep.subr.bf16.mxu0 0
        %1252 = vmatpush1.bf16.xpose.msra.mxu0 0
        %1253 = vmatprep.subr.bf16.mxu0 0
        %1254 = vmatpush1.bf16.xpose.msra.mxu0 0
        %1255 = vmatprep.subr.bf16.mxu0 0
        %1256 = vmatpush1.bf16.xpose.msra.mxu0 0
        %1257 = vmatprep.subr.bf16.mxu0 0
        %1258 = vmatpush1.bf16.xpose.msra.mxu0 0
        %1259 = vmatprep.subr.bf16.mxu0 0
        %1260 = vmatpush1.bf16.xpose.msra.mxu0 0
        %1261 = vmatprep.subr.bf16.mxu0 0
        %1262 = vmatpush1.bf16.xpose.msra.mxu0 0
        %1263 = vmatprep.subr.bf16.mxu0 0
        %1264 = vmatpush1.bf16.xpose.msra.mxu0 0
        %1265 = vmatprep.subr.bf16.mxu0 0
        %1266 = vmatpush1.bf16.xpose.msra.mxu0 0
        %1267 = vmatprep.mubr.bf16.mxu0 0
        %1268 = vmatmul.mubr.bf16.gmra.mrb[0].mxu0 %v1230
        %v1269 = vpop.f32.mrb[0].mxu0
        %v1270 = vadd.f32 0.0, %v1269
        %v1271 = vpop.f32.mrb[0].mxu0
        %v1272 = vpop.f32.mrb[0].mxu0
        %v1273 = vpop.f32.mrb[0].mxu0
        %1274 = vdwg.mxu0
        %v1275 = vmul.f32 %v1218, 0.17677669
        %v1276 = vmul.f32 %v1270, 0.17677669
        %v1277 = vsel %vm1053, %v1275, -inf
        %1278 = vmax.xlane.f32.xlu0 %v1277
        %v1279 = vpop.xlane.xlu0 %1278
        %v1280 = vsel %vm1053, %v1276, -inf
        %1281 = vmax.xlane.f32.xlu0 %v1280
        %v1282 = vpop.xlane.xlu0 %1281
        %v1283 = vsub.f32 %v1275, %v1279
        %v1284 = vsub.f32 %v1276, %v1282
        %v1285 = vmul.f32 %v1283, 1.442695
        %v1286 = vpow.pop %v1285
        %v1287 = vmul.f32 %v1284, 1.442695
        %v1288 = vpow.pop %v1287
        %v1289 = vsel %vm1053, %v1286, 0.0
        %1290 = vadd.xlane.f32.xlu0 %v1289
        %v1291 = vpop.xlane.xlu0 %1290
        %v1292 = vsel %vm1053, %v1288, 0.0
        %1293 = vadd.xlane.f32.xlu0 %v1292
        %v1294 = vpop.xlane.xlu0 %1293
        %v1295 = vrcp.pop %v1291
        %v1296 = vrcp.pop %v1294
        %v1297 = vmul.f32 %v1286, %v1295
        %v1298 = vmul.f32 %v1288, %v1296
        %v1299 = vpack.c.bf16 %v1297, %v1297
        %v1300 = vpack.c.bf16 %v1298, %v1298
        %1302 = vrot.lane.b32.xlu0 %v956, 96
        %v1303 = vpop.permute.xlu0 %1302
        %v1305 = vsel %vm1053, %v1299, 0
        %v1308 = vsel %vm1081, %v1303, 0
        %1310 = vmatprep.subr.bf16.mxu0 0
        %1311 = vmatpush1.bf16.msra.mxu0 %v1308
        %1312 = vmatprep.subr.bf16.mxu0 0
        %1313 = vmatpush1.bf16.msra.mxu0 0
        %1314 = vmatprep.subr.bf16.mxu0 0
        %1315 = vmatpush1.bf16.msra.mxu0 0
        %1316 = vmatprep.subr.bf16.mxu0 0
        %1317 = vmatpush1.bf16.msra.mxu0 0
        %1318 = vmatprep.subr.bf16.mxu0 0
        %1319 = vmatpush1.bf16.msra.mxu0 0
        %1320 = vmatprep.subr.bf16.mxu0 0
        %1321 = vmatpush1.bf16.msra.mxu0 0
        %1322 = vmatprep.subr.bf16.mxu0 0
        %1323 = vmatpush1.bf16.msra.mxu0 0
        %1324 = vmatprep.subr.bf16.mxu0 0
        %1325 = vmatpush1.bf16.msra.mxu0 0
        %1326 = vmatprep.subr.bf16.mxu0 0
        %1327 = vmatpush1.bf16.msra.mxu0 0
        %1328 = vmatprep.subr.bf16.mxu0 0
        %1329 = vmatpush1.bf16.msra.mxu0 0
        %1330 = vmatprep.subr.bf16.mxu0 0
        %1331 = vmatpush1.bf16.msra.mxu0 0
        %1332 = vmatprep.subr.bf16.mxu0 0
        %1333 = vmatpush1.bf16.msra.mxu0 0
        %1334 = vmatprep.subr.bf16.mxu0 0
        %1335 = vmatpush1.bf16.msra.mxu0 0
        %1336 = vmatprep.subr.bf16.mxu0 0
        %1337 = vmatpush1.bf16.msra.mxu0 0
        %1338 = vmatprep.subr.bf16.mxu0 0
        %1339 = vmatpush1.bf16.msra.mxu0 0
        %1340 = vmatprep.subr.bf16.mxu0 0
        %1341 = vmatpush1.bf16.msra.mxu0 0
        %1342 = vmatprep.mubr.bf16.mxu0 0
        %1343 = vmatmul.mubr.bf16.gmra.mrb[0].mxu0 %v1305
        %v1344 = vpop.f32.mrb[0].mxu0
        %v1345 = vadd.f32 0.0, %v1344
        %v1346 = vpop.f32.mrb[0].mxu0
        %v1347 = vpop.f32.mrb[0].mxu0
        %v1348 = vpop.f32.mrb[0].mxu0
        %1349 = vdwg.mxu0
        %1351 = vrot.lane.b32.xlu0 %v957, 96
        %v1352 = vpop.permute.xlu0 %1351
        %v1354 = vsel %vm1053, %v1300, 0
        %v1357 = vsel %vm1081, %v1352, 0
        %1359 = vmatprep.subr.bf16.mxu0 0
        %1360 = vmatpush1.bf16.msra.mxu0 %v1357
        %1361 = vmatprep.subr.bf16.mxu0 0
        %1362 = vmatpush1.bf16.msra.mxu0 0
        %1363 = vmatprep.subr.bf16.mxu0 0
        %1364 = vmatpush1.bf16.msra.mxu0 0
        %1365 = vmatprep.subr.bf16.mxu0 0
        %1366 = vmatpush1.bf16.msra.mxu0 0
        %1367 = vmatprep.subr.bf16.mxu0 0
        %1368 = vmatpush1.bf16.msra.mxu0 0
        %1369 = vmatprep.subr.bf16.mxu0 0
        %1370 = vmatpush1.bf16.msra.mxu0 0
        %1371 = vmatprep.subr.bf16.mxu0 0
        %1372 = vmatpush1.bf16.msra.mxu0 0
        %1373 = vmatprep.subr.bf16.mxu0 0
        %1374 = vmatpush1.bf16.msra.mxu0 0
        %1375 = vmatprep.subr.bf16.mxu0 0
        %1376 = vmatpush1.bf16.msra.mxu0 0
        %1377 = vmatprep.subr.bf16.mxu0 0
        %1378 = vmatpush1.bf16.msra.mxu0 0
        %1379 = vmatprep.subr.bf16.mxu0 0
        %1380 = vmatpush1.bf16.msra.mxu0 0
        %1381 = vmatprep.subr.bf16.mxu0 0
        %1382 = vmatpush1.bf16.msra.mxu0 0
        %1383 = vmatprep.subr.bf16.mxu0 0
        %1384 = vmatpush1.bf16.msra.mxu0 0
        %1385 = vmatprep.subr.bf16.mxu0 0
        %1386 = vmatpush1.bf16.msra.mxu0 0
        %1387 = vmatprep.subr.bf16.mxu0 0
        %1388 = vmatpush1.bf16.msra.mxu0 0
        %1389 = vmatprep.subr.bf16.mxu0 0
        %1390 = vmatpush1.bf16.msra.mxu0 0
        %1391 = vmatprep.mubr.bf16.mxu0 0
        %1392 = vmatmul.mubr.bf16.gmra.mrb[0].mxu0 %v1354
        %v1393 = vpop.f32.mrb[0].mxu0
        %v1394 = vadd.f32 0.0, %v1393
        %v1395 = vpop.f32.mrb[0].mxu0
        %v1396 = vpop.f32.mrb[0].mxu0
        %v1397 = vpop.f32.mrb[0].mxu0
        %1398 = vdwg.mxu0
        %1399 = vrot.lane.b32.xlu0 %v952, 64
        %v1400 = vpop.permute.xlu0 %1399
        %1401 = vrot.lane.b32.xlu0 %v954, 64
        %v1402 = vpop.permute.xlu0 %1401
        %v1404 = vsel %vm958, %v1400, 0
        %v1407 = vsel %vm958, %v1402, 0
        %1409 = vmatprep.subr.bf16.mxu0 0
        %1410 = vmatpush1.bf16.xpose.msra.mxu0 %v1407
        %1411 = vmatprep.subr.bf16.mxu0 0
        %1412 = vmatpush1.bf16.xpose.msra.mxu0 0
        %1413 = vmatprep.subr.bf16.mxu0 0
        %1414 = vmatpush1.bf16.xpose.msra.mxu0 0
        %1415 = vmatprep.subr.bf16.mxu0 0
        %1416 = vmatpush1.bf16.xpose.msra.mxu0 0
        %1417 = vmatprep.subr.bf16.mxu0 0
        %1418 = vmatpush1.bf16.xpose.msra.mxu0 0
        %1419 = vmatprep.subr.bf16.mxu0 0
        %1420 = vmatpush1.bf16.xpose.msra.mxu0 0
        %1421 = vmatprep.subr.bf16.mxu0 0
        %1422 = vmatpush1.bf16.xpose.msra.mxu0 0
        %1423 = vmatprep.subr.bf16.mxu0 0
        %1424 = vmatpush1.bf16.xpose.msra.mxu0 0
        %1425 = vmatprep.subr.bf16.mxu0 0
        %1426 = vmatpush1.bf16.xpose.msra.mxu0 0
        %1427 = vmatprep.subr.bf16.mxu0 0
        %1428 = vmatpush1.bf16.xpose.msra.mxu0 0
        %1429 = vmatprep.subr.bf16.mxu0 0
        %1430 = vmatpush1.bf16.xpose.msra.mxu0 0
        %1431 = vmatprep.subr.bf16.mxu0 0
        %1432 = vmatpush1.bf16.xpose.msra.mxu0 0
        %1433 = vmatprep.subr.bf16.mxu0 0
        %1434 = vmatpush1.bf16.xpose.msra.mxu0 0
        %1435 = vmatprep.subr.bf16.mxu0 0
        %1436 = vmatpush1.bf16.xpose.msra.mxu0 0
        %1437 = vmatprep.subr.bf16.mxu0 0
        %1438 = vmatpush1.bf16.xpose.msra.mxu0 0
        %1439 = vmatprep.subr.bf16.mxu0 0
        %1440 = vmatpush1.bf16.xpose.msra.mxu0 0
        %1441 = vmatprep.mubr.bf16.mxu0 0
        %1442 = vmatmul.mubr.bf16.gmra.mrb[0].mxu0 %v1404
        %v1443 = vpop.f32.mrb[0].mxu0
        %v1444 = vadd.f32 0.0, %v1443
        %v1445 = vpop.f32.mrb[0].mxu0
        %v1446 = vpop.f32.mrb[0].mxu0
        %v1447 = vpop.f32.mrb[0].mxu0
        %1448 = vdwg.mxu0
        %1449 = vrot.lane.b32.xlu0 %v953, 64
        %v1450 = vpop.permute.xlu0 %1449
        %1451 = vrot.lane.b32.xlu0 %v955, 64
        %v1452 = vpop.permute.xlu0 %1451
        %v1454 = vsel %vm958, %v1450, 0
        %v1457 = vsel %vm958, %v1452, 0
        %1459 = vmatprep.subr.bf16.mxu0 0
        %1460 = vmatpush1.bf16.xpose.msra.mxu0 %v1457
        %1461 = vmatprep.subr.bf16.mxu0 0
        %1462 = vmatpush1.bf16.xpose.msra.mxu0 0
        %1463 = vmatprep.subr.bf16.mxu0 0
        %1464 = vmatpush1.bf16.xpose.msra.mxu0 0
        %1465 = vmatprep.subr.bf16.mxu0 0
        %1466 = vmatpush1.bf16.xpose.msra.mxu0 0
        %1467 = vmatprep.subr.bf16.mxu0 0
        %1468 = vmatpush1.bf16.xpose.msra.mxu0 0
        %1469 = vmatprep.subr.bf16.mxu0 0
        %1470 = vmatpush1.bf16.xpose.msra.mxu0 0
        %1471 = vmatprep.subr.bf16.mxu0 0
        %1472 = vmatpush1.bf16.xpose.msra.mxu0 0
        %1473 = vmatprep.subr.bf16.mxu0 0
        %1474 = vmatpush1.bf16.xpose.msra.mxu0 0
        %1475 = vmatprep.subr.bf16.mxu0 0
        %1476 = vmatpush1.bf16.xpose.msra.mxu0 0
        %1477 = vmatprep.subr.bf16.mxu0 0
        %1478 = vmatpush1.bf16.xpose.msra.mxu0 0
        %1479 = vmatprep.subr.bf16.mxu0 0
        %1480 = vmatpush1.bf16.xpose.msra.mxu0 0
        %1481 = vmatprep.subr.bf16.mxu0 0
        %1482 = vmatpush1.bf16.xpose.msra.mxu0 0
        %1483 = vmatprep.subr.bf16.mxu0 0
        %1484 = vmatpush1.bf16.xpose.msra.mxu0 0
        %1485 = vmatprep.subr.bf16.mxu0 0
        %1486 = vmatpush1.bf16.xpose.msra.mxu0 0
        %1487 = vmatprep.subr.bf16.mxu0 0
        %1488 = vmatpush1.bf16.xpose.msra.mxu0 0
        %1489 = vmatprep.subr.bf16.mxu0 0
        %1490 = vmatpush1.bf16.xpose.msra.mxu0 0
        %1491 = vmatprep.mubr.bf16.mxu0 0
        %1492 = vmatmul.mubr.bf16.gmra.mrb[0].mxu0 %v1454
        %v1493 = vpop.f32.mrb[0].mxu0
        %v1494 = vadd.f32 0.0, %v1493
        %v1495 = vpop.f32.mrb[0].mxu0
        %v1496 = vpop.f32.mrb[0].mxu0
        %v1497 = vpop.f32.mrb[0].mxu0
        %1498 = vdwg.mxu0
        %v1499 = vmul.f32 %v1444, 0.17677669
        %v1500 = vmul.f32 %v1494, 0.17677669
        %v1501 = vsel %vm1053, %v1499, -inf
        %1502 = vmax.xlane.f32.xlu0 %v1501
        %v1503 = vpop.xlane.xlu0 %1502
        %v1504 = vsel %vm1053, %v1500, -inf
        %1505 = vmax.xlane.f32.xlu0 %v1504
        %v1506 = vpop.xlane.xlu0 %1505
        %v1507 = vsub.f32 %v1499, %v1503
        %v1508 = vsub.f32 %v1500, %v1506
        %v1509 = vmul.f32 %v1507, 1.442695
        %v1510 = vpow.pop %v1509
        %v1511 = vmul.f32 %v1508, 1.442695
        %v1512 = vpow.pop %v1511
        %v1513 = vsel %vm1053, %v1510, 0.0
        %1514 = vadd.xlane.f32.xlu0 %v1513
        %v1515 = vpop.xlane.xlu0 %1514
        %v1516 = vsel %vm1053, %v1512, 0.0
        %1517 = vadd.xlane.f32.xlu0 %v1516
        %v1518 = vpop.xlane.xlu0 %1517
        %v1519 = vrcp.pop %v1515
        %v1520 = vrcp.pop %v1518
        %v1521 = vmul.f32 %v1510, %v1519
        %v1522 = vmul.f32 %v1512, %v1520
        %v1523 = vpack.c.bf16 %v1521, %v1521
        %v1524 = vpack.c.bf16 %v1522, %v1522
        %1525 = vrot.lane.b32.xlu0 %v956, 64
        %v1526 = vpop.permute.xlu0 %1525
        %v1528 = vsel %vm1053, %v1523, 0
        %v1531 = vsel %vm1081, %v1526, 0
        %1533 = vmatprep.subr.bf16.mxu0 0
        %1534 = vmatpush1.bf16.msra.mxu0 %v1531
        %1535 = vmatprep.subr.bf16.mxu0 0
        %1536 = vmatpush1.bf16.msra.mxu0 0
        %1537 = vmatprep.subr.bf16.mxu0 0
        %1538 = vmatpush1.bf16.msra.mxu0 0
        %1539 = vmatprep.subr.bf16.mxu0 0
        %1540 = vmatpush1.bf16.msra.mxu0 0
        %1541 = vmatprep.subr.bf16.mxu0 0
        %1542 = vmatpush1.bf16.msra.mxu0 0
        %1543 = vmatprep.subr.bf16.mxu0 0
        %1544 = vmatpush1.bf16.msra.mxu0 0
        %1545 = vmatprep.subr.bf16.mxu0 0
        %1546 = vmatpush1.bf16.msra.mxu0 0
        %1547 = vmatprep.subr.bf16.mxu0 0
        %1548 = vmatpush1.bf16.msra.mxu0 0
        %1549 = vmatprep.subr.bf16.mxu0 0
        %1550 = vmatpush1.bf16.msra.mxu0 0
        %1551 = vmatprep.subr.bf16.mxu0 0
        %1552 = vmatpush1.bf16.msra.mxu0 0
        %1553 = vmatprep.subr.bf16.mxu0 0
        %1554 = vmatpush1.bf16.msra.mxu0 0
        %1555 = vmatprep.subr.bf16.mxu0 0
        %1556 = vmatpush1.bf16.msra.mxu0 0
        %1557 = vmatprep.subr.bf16.mxu0 0
        %1558 = vmatpush1.bf16.msra.mxu0 0
        %1559 = vmatprep.subr.bf16.mxu0 0
        %1560 = vmatpush1.bf16.msra.mxu0 0
        %1561 = vmatprep.subr.bf16.mxu0 0
        %1562 = vmatpush1.bf16.msra.mxu0 0
        %1563 = vmatprep.subr.bf16.mxu0 0
        %1564 = vmatpush1.bf16.msra.mxu0 0
        %1565 = vmatprep.mubr.bf16.mxu0 0
        %1566 = vmatmul.mubr.bf16.gmra.mrb[0].mxu0 %v1528
        %v1567 = vpop.f32.mrb[0].mxu0
        %v1568 = vadd.f32 0.0, %v1567
        %v1569 = vpop.f32.mrb[0].mxu0
        %v1570 = vpop.f32.mrb[0].mxu0
        %v1571 = vpop.f32.mrb[0].mxu0
        %1572 = vdwg.mxu0
        %1573 = vrot.lane.b32.xlu0 %v957, 64
        %v1574 = vpop.permute.xlu0 %1573
        %v1576 = vsel %vm1053, %v1524, 0
        %v1579 = vsel %vm1081, %v1574, 0
        %1581 = vmatprep.subr.bf16.mxu0 0
        %1582 = vmatpush1.bf16.msra.mxu0 %v1579
        %1583 = vmatprep.subr.bf16.mxu0 0
        %1584 = vmatpush1.bf16.msra.mxu0 0
        %1585 = vmatprep.subr.bf16.mxu0 0
        %1586 = vmatpush1.bf16.msra.mxu0 0
        %1587 = vmatprep.subr.bf16.mxu0 0
        %1588 = vmatpush1.bf16.msra.mxu0 0
        %1589 = vmatprep.subr.bf16.mxu0 0
        %1590 = vmatpush1.bf16.msra.mxu0 0
        %1591 = vmatprep.subr.bf16.mxu0 0
        %1592 = vmatpush1.bf16.msra.mxu0 0
        %1593 = vmatprep.subr.bf16.mxu0 0
        %1594 = vmatpush1.bf16.msra.mxu0 0
        %1595 = vmatprep.subr.bf16.mxu0 0
        %1596 = vmatpush1.bf16.msra.mxu0 0
        %1597 = vmatprep.subr.bf16.mxu0 0
        %1598 = vmatpush1.bf16.msra.mxu0 0
        %1599 = vmatprep.subr.bf16.mxu0 0
        %1600 = vmatpush1.bf16.msra.mxu0 0
        %1601 = vmatprep.subr.bf16.mxu0 0
        %1602 = vmatpush1.bf16.msra.mxu0 0
        %1603 = vmatprep.subr.bf16.mxu0 0
        %1604 = vmatpush1.bf16.msra.mxu0 0
        %1605 = vmatprep.subr.bf16.mxu0 0
        %1606 = vmatpush1.bf16.msra.mxu0 0
        %1607 = vmatprep.subr.bf16.mxu0 0
        %1608 = vmatpush1.bf16.msra.mxu0 0
        %1609 = vmatprep.subr.bf16.mxu0 0
        %1610 = vmatpush1.bf16.msra.mxu0 0
        %1611 = vmatprep.subr.bf16.mxu0 0
        %1612 = vmatpush1.bf16.msra.mxu0 0
        %1613 = vmatprep.mubr.bf16.mxu0 0
        %1614 = vmatmul.mubr.bf16.gmra.mrb[0].mxu0 %v1576
        %v1615 = vpop.f32.mrb[0].mxu0
        %v1616 = vadd.f32 0.0, %v1615
        %v1617 = vpop.f32.mrb[0].mxu0
        %v1618 = vpop.f32.mrb[0].mxu0
        %v1619 = vpop.f32.mrb[0].mxu0
        %1620 = vdwg.mxu0
        %1621 = vrot.lane.b32.xlu0 %v952, 32
        %v1622 = vpop.permute.xlu0 %1621
        %1623 = vrot.lane.b32.xlu0 %v954, 32
        %v1624 = vpop.permute.xlu0 %1623
        %v1626 = vsel %vm958, %v1622, 0
        %v1629 = vsel %vm958, %v1624, 0
        %1631 = vmatprep.subr.bf16.mxu0 0
        %1632 = vmatpush1.bf16.xpose.msra.mxu0 %v1629
        %1633 = vmatprep.subr.bf16.mxu0 0
        %1634 = vmatpush1.bf16.xpose.msra.mxu0 0
        %1635 = vmatprep.subr.bf16.mxu0 0
        %1636 = vmatpush1.bf16.xpose.msra.mxu0 0
        %1637 = vmatprep.subr.bf16.mxu0 0
        %1638 = vmatpush1.bf16.xpose.msra.mxu0 0
        %1639 = vmatprep.subr.bf16.mxu0 0
        %1640 = vmatpush1.bf16.xpose.msra.mxu0 0
        %1641 = vmatprep.subr.bf16.mxu0 0
        %1642 = vmatpush1.bf16.xpose.msra.mxu0 0
        %1643 = vmatprep.subr.bf16.mxu0 0
        %1644 = vmatpush1.bf16.xpose.msra.mxu0 0
        %1645 = vmatprep.subr.bf16.mxu0 0
        %1646 = vmatpush1.bf16.xpose.msra.mxu0 0
        %1647 = vmatprep.subr.bf16.mxu0 0
        %1648 = vmatpush1.bf16.xpose.msra.mxu0 0
        %1649 = vmatprep.subr.bf16.mxu0 0
        %1650 = vmatpush1.bf16.xpose.msra.mxu0 0
        %1651 = vmatprep.subr.bf16.mxu0 0
        %1652 = vmatpush1.bf16.xpose.msra.mxu0 0
        %1653 = vmatprep.subr.bf16.mxu0 0
        %1654 = vmatpush1.bf16.xpose.msra.mxu0 0
        %1655 = vmatprep.subr.bf16.mxu0 0
        %1656 = vmatpush1.bf16.xpose.msra.mxu0 0
        %1657 = vmatprep.subr.bf16.mxu0 0
        %1658 = vmatpush1.bf16.xpose.msra.mxu0 0
        %1659 = vmatprep.subr.bf16.mxu0 0
        %1660 = vmatpush1.bf16.xpose.msra.mxu0 0
        %1661 = vmatprep.subr.bf16.mxu0 0
        %1662 = vmatpush1.bf16.xpose.msra.mxu0 0
        %1663 = vmatprep.mubr.bf16.mxu0 0
        %1664 = vmatmul.mubr.bf16.gmra.mrb[0].mxu0 %v1626
        %v1665 = vpop.f32.mrb[0].mxu0
        %v1666 = vadd.f32 0.0, %v1665
        %v1667 = vpop.f32.mrb[0].mxu0
        %v1668 = vpop.f32.mrb[0].mxu0
        %v1669 = vpop.f32.mrb[0].mxu0
        %1670 = vdwg.mxu0
        %1671 = vrot.lane.b32.xlu0 %v953, 32
        %v1672 = vpop.permute.xlu0 %1671
        %1673 = vrot.lane.b32.xlu0 %v955, 32
        %v1674 = vpop.permute.xlu0 %1673
        %v1676 = vsel %vm958, %v1672, 0
        %v1679 = vsel %vm958, %v1674, 0
        %1681 = vmatprep.subr.bf16.mxu0 0
        %1682 = vmatpush1.bf16.xpose.msra.mxu0 %v1679
        %1683 = vmatprep.subr.bf16.mxu0 0
        %1684 = vmatpush1.bf16.xpose.msra.mxu0 0
        %1685 = vmatprep.subr.bf16.mxu0 0
        %1686 = vmatpush1.bf16.xpose.msra.mxu0 0
        %1687 = vmatprep.subr.bf16.mxu0 0
        %1688 = vmatpush1.bf16.xpose.msra.mxu0 0
        %1689 = vmatprep.subr.bf16.mxu0 0
        %1690 = vmatpush1.bf16.xpose.msra.mxu0 0
        %1691 = vmatprep.subr.bf16.mxu0 0
        %1692 = vmatpush1.bf16.xpose.msra.mxu0 0
        %1693 = vmatprep.subr.bf16.mxu0 0
        %1694 = vmatpush1.bf16.xpose.msra.mxu0 0
        %1695 = vmatprep.subr.bf16.mxu0 0
        %1696 = vmatpush1.bf16.xpose.msra.mxu0 0
        %1697 = vmatprep.subr.bf16.mxu0 0
        %1698 = vmatpush1.bf16.xpose.msra.mxu0 0
        %1699 = vmatprep.subr.bf16.mxu0 0
        %1700 = vmatpush1.bf16.xpose.msra.mxu0 0
        %1701 = vmatprep.subr.bf16.mxu0 0
        %1702 = vmatpush1.bf16.xpose.msra.mxu0 0
        %1703 = vmatprep.subr.bf16.mxu0 0
        %1704 = vmatpush1.bf16.xpose.msra.mxu0 0
        %1705 = vmatprep.subr.bf16.mxu0 0
        %1706 = vmatpush1.bf16.xpose.msra.mxu0 0
        %1707 = vmatprep.subr.bf16.mxu0 0
        %1708 = vmatpush1.bf16.xpose.msra.mxu0 0
        %1709 = vmatprep.subr.bf16.mxu0 0
        %1710 = vmatpush1.bf16.xpose.msra.mxu0 0
        %1711 = vmatprep.subr.bf16.mxu0 0
        %1712 = vmatpush1.bf16.xpose.msra.mxu0 0
        %1713 = vmatprep.mubr.bf16.mxu0 0
        %1714 = vmatmul.mubr.bf16.gmra.mrb[0].mxu0 %v1676
        %v1715 = vpop.f32.mrb[0].mxu0
        %v1716 = vadd.f32 0.0, %v1715
        %v1717 = vpop.f32.mrb[0].mxu0
        %v1718 = vpop.f32.mrb[0].mxu0
        %v1719 = vpop.f32.mrb[0].mxu0
        %1720 = vdwg.mxu0
        %v1721 = vmul.f32 %v1666, 0.17677669
        %v1722 = vmul.f32 %v1716, 0.17677669
        %v1723 = vsel %vm1053, %v1721, -inf
        %1724 = vmax.xlane.f32.xlu0 %v1723
        %v1725 = vpop.xlane.xlu0 %1724
        %v1726 = vsel %vm1053, %v1722, -inf
        %1727 = vmax.xlane.f32.xlu0 %v1726
        %v1728 = vpop.xlane.xlu0 %1727
        %v1729 = vsub.f32 %v1721, %v1725
        %v1730 = vsub.f32 %v1722, %v1728
        %v1731 = vmul.f32 %v1729, 1.442695
        %v1732 = vpow.pop %v1731
        %v1733 = vmul.f32 %v1730, 1.442695
        %v1734 = vpow.pop %v1733
        %v1735 = vsel %vm1053, %v1732, 0.0
        %1736 = vadd.xlane.f32.xlu0 %v1735
        %v1737 = vpop.xlane.xlu0 %1736
        %v1738 = vsel %vm1053, %v1734, 0.0
        %1739 = vadd.xlane.f32.xlu0 %v1738
        %v1740 = vpop.xlane.xlu0 %1739
        %v1741 = vrcp.pop %v1737
        %v1742 = vrcp.pop %v1740
        %v1743 = vmul.f32 %v1732, %v1741
        %v1744 = vmul.f32 %v1734, %v1742
        %v1745 = vpack.c.bf16 %v1743, %v1743
        %v1746 = vpack.c.bf16 %v1744, %v1744
        %1747 = vrot.lane.b32.xlu0 %v956, 32
        %v1748 = vpop.permute.xlu0 %1747
        %v1750 = vsel %vm1053, %v1745, 0
        %v1753 = vsel %vm1081, %v1748, 0
        %1755 = vmatprep.subr.bf16.mxu0 0
        %1756 = vmatpush1.bf16.msra.mxu0 %v1753
        %1757 = vmatprep.subr.bf16.mxu0 0
        %1758 = vmatpush1.bf16.msra.mxu0 0
        %1759 = vmatprep.subr.bf16.mxu0 0
        %1760 = vmatpush1.bf16.msra.mxu0 0
        %1761 = vmatprep.subr.bf16.mxu0 0
        %1762 = vmatpush1.bf16.msra.mxu0 0
        %1763 = vmatprep.subr.bf16.mxu0 0
        %1764 = vmatpush1.bf16.msra.mxu0 0
        %1765 = vmatprep.subr.bf16.mxu0 0
        %1766 = vmatpush1.bf16.msra.mxu0 0
        %1767 = vmatprep.subr.bf16.mxu0 0
        %1768 = vmatpush1.bf16.msra.mxu0 0
        %1769 = vmatprep.subr.bf16.mxu0 0
        %1770 = vmatpush1.bf16.msra.mxu0 0
        %1771 = vmatprep.subr.bf16.mxu0 0
        %1772 = vmatpush1.bf16.msra.mxu0 0
        %1773 = vmatprep.subr.bf16.mxu0 0
        %1774 = vmatpush1.bf16.msra.mxu0 0
        %1775 = vmatprep.subr.bf16.mxu0 0
        %1776 = vmatpush1.bf16.msra.mxu0 0
        %1777 = vmatprep.subr.bf16.mxu0 0
        %1778 = vmatpush1.bf16.msra.mxu0 0
        %1779 = vmatprep.subr.bf16.mxu0 0
        %1780 = vmatpush1.bf16.msra.mxu0 0
        %1781 = vmatprep.subr.bf16.mxu0 0
        %1782 = vmatpush1.bf16.msra.mxu0 0
        %1783 = vmatprep.subr.bf16.mxu0 0
        %1784 = vmatpush1.bf16.msra.mxu0 0
        %1785 = vmatprep.subr.bf16.mxu0 0
        %1786 = vmatpush1.bf16.msra.mxu0 0
        %1787 = vmatprep.mubr.bf16.mxu0 0
        %1788 = vmatmul.mubr.bf16.gmra.mrb[0].mxu0 %v1750
        %v1789 = vpop.f32.mrb[0].mxu0
        %v1790 = vadd.f32 0.0, %v1789
        %v1791 = vpop.f32.mrb[0].mxu0
        %v1792 = vpop.f32.mrb[0].mxu0
        %v1793 = vpop.f32.mrb[0].mxu0
        %1794 = vdwg.mxu0
        %1795 = vrot.lane.b32.xlu0 %v957, 32
        %v1796 = vpop.permute.xlu0 %1795
        %v1798 = vsel %vm1053, %v1746, 0
        %v1801 = vsel %vm1081, %v1796, 0
        %1803 = vmatprep.subr.bf16.mxu0 0
        %1804 = vmatpush1.bf16.msra.mxu0 %v1801
        %1805 = vmatprep.subr.bf16.mxu0 0
        %1806 = vmatpush1.bf16.msra.mxu0 0
        %1807 = vmatprep.subr.bf16.mxu0 0
        %1808 = vmatpush1.bf16.msra.mxu0 0
        %1809 = vmatprep.subr.bf16.mxu0 0
        %1810 = vmatpush1.bf16.msra.mxu0 0
        %1811 = vmatprep.subr.bf16.mxu0 0
        %1812 = vmatpush1.bf16.msra.mxu0 0
        %1813 = vmatprep.subr.bf16.mxu0 0
        %1814 = vmatpush1.bf16.msra.mxu0 0
        %1815 = vmatprep.subr.bf16.mxu0 0
        %1816 = vmatpush1.bf16.msra.mxu0 0
        %1817 = vmatprep.subr.bf16.mxu0 0
        %1818 = vmatpush1.bf16.msra.mxu0 0
        %1819 = vmatprep.subr.bf16.mxu0 0
        %1820 = vmatpush1.bf16.msra.mxu0 0
        %1821 = vmatprep.subr.bf16.mxu0 0
        %1822 = vmatpush1.bf16.msra.mxu0 0
        %1823 = vmatprep.subr.bf16.mxu0 0
        %1824 = vmatpush1.bf16.msra.mxu0 0
        %1825 = vmatprep.subr.bf16.mxu0 0
        %1826 = vmatpush1.bf16.msra.mxu0 0
        %1827 = vmatprep.subr.bf16.mxu0 0
        %1828 = vmatpush1.bf16.msra.mxu0 0
        %1829 = vmatprep.subr.bf16.mxu0 0
        %1830 = vmatpush1.bf16.msra.mxu0 0
        %1831 = vmatprep.subr.bf16.mxu0 0
        %1832 = vmatpush1.bf16.msra.mxu0 0
        %1833 = vmatprep.subr.bf16.mxu0 0
        %1834 = vmatpush1.bf16.msra.mxu0 0
        %1835 = vmatprep.mubr.bf16.mxu0 0
        %1836 = vmatmul.mubr.bf16.gmra.mrb[0].mxu0 %v1798
        %v1837 = vpop.f32.mrb[0].mxu0
        %v1838 = vadd.f32 0.0, %v1837
        %v1839 = vpop.f32.mrb[0].mxu0
        %v1840 = vpop.f32.mrb[0].mxu0
        %v1841 = vpop.f32.mrb[0].mxu0
        %1842 = vdwg.mxu0
        %1845 = vrot.lane.b32.xlu0 %v1345, 32
        %v1846 = vpop.permute.xlu0 %1845
        %1847 = vrot.lane.b32.xlu0 %v1394, 32
        %v1848 = vpop.permute.xlu0 %1847
        %1853 = vrot.lane.b32.xlu0 %v1568, 64
        %v1854 = vpop.permute.xlu0 %1853
        %1855 = vrot.lane.b32.xlu0 %v1616, 64
        %v1856 = vpop.permute.xlu0 %1855
        %1861 = vrot.lane.b32.xlu0 %v1790, 96
        %v1862 = vpop.permute.xlu0 %1861
        %1863 = vrot.lane.b32.xlu0 %v1838, 96
        %v1864 = vpop.permute.xlu0 %1863
        %v1867 = vsel %vm958, %v1120, %v1846
        %v1868 = vsel %vm958, %v1166, %v1848
        %vm1869 = vcmask 523264
        %v1870 = vsel %vm1869, %v1867, %v1854
        %v1871 = vsel %vm1869, %v1868, %v1856
        %vm1872 = vcmask 785408
        %v1873 = vsel %vm1872, %v1870, %v1862
        %v1874 = vsel %vm1872, %v1871, %v1864
        %v1875 = vpack.c.bf16 %v1874, %v1873
        %v1876 = vld [vmem:[%s540] sm:$0xf]
        %v1877 = vld [vmem:[%s540 + $0x4] sm:$0xf]
        %v1878 = vld [vmem:[%s540 + $0x8] sm:$0xf]
        %v1879 = vld [vmem:[%s540 + $0xc] sm:$0xf]
        %v1880 = vld [vmem:[%s540 + $0x10] sm:$0xf]
        %v1881 = vld [vmem:[%s540 + $0x14] sm:$0xf]
        %v1882 = vld [vmem:[%s540 + $0x18] sm:$0xf]
        %v1883 = vld [vmem:[%s540 + $0x1c] sm:$0xf]
        %v1884 = vld [vmem:[%s540 + $0x20] sm:$0xf]
        %v1885 = vld [vmem:[%s540 + $0x24] sm:$0xf]
        %v1886 = vld [vmem:[%s540 + $0x28] sm:$0xf]
        %v1887 = vld [vmem:[%s540 + $0x2c] sm:$0xf]
        %v1888 = vld [vmem:[%s540 + $0x30] sm:$0xf]
        %v1889 = vld [vmem:[%s540 + $0x34] sm:$0xf]
        %v1890 = vld [vmem:[%s540 + $0x38] sm:$0xf]
        %v1891 = vld [vmem:[%s540 + $0x3c] sm:$0xf]
        %v1892 = vlaneseq
        %v1893 = vshrl.u32 %v1892, 7
        %v1894 = vsub.s32 0, %v1893
        %v1895 = vrot.slane %v690, %v1894
        %v1912 = vunpack.c.l.b16 %v1876
        %v1913 = vunpack.c.l.b16 %v1877
        %v1914 = vunpack.c.l.b16 %v1878
        %v1915 = vunpack.c.l.b16 %v1879
        %v1916 = vunpack.c.l.b16 %v1880
        %v1917 = vunpack.c.l.b16 %v1881
        %v1918 = vunpack.c.l.b16 %v1882
        %v1919 = vunpack.c.l.b16 %v1883
        %v1920 = vunpack.c.l.b16 %v1884
        %v1921 = vunpack.c.l.b16 %v1885
        %v1922 = vunpack.c.l.b16 %v1886
        %v1923 = vunpack.c.l.b16 %v1887
        %v1924 = vunpack.c.l.b16 %v1888
        %v1925 = vunpack.c.l.b16 %v1889
        %v1926 = vunpack.c.l.b16 %v1890
        %v1927 = vunpack.c.l.b16 %v1891
        %v1928 = vpack.c.b16 %v1913, %v1912
        %v1929 = vpack.c.b16 %v1915, %v1914
        %v1930 = vpack.c.b16 %v1917, %v1916
        %v1931 = vpack.c.b16 %v1919, %v1918
        %v1932 = vpack.c.b16 %v1921, %v1920
        %v1933 = vpack.c.b16 %v1923, %v1922
        %v1934 = vpack.c.b16 %v1925, %v1924
        %v1935 = vpack.c.b16 %v1927, %v1926
        %1944 = vmatprep.subr.bf16.mxu0 0
        %1945 = vmatpush1.bf16.msra.mxu0 %v1928
        %1946 = vmatprep.subr.bf16.mxu0 0
        %1947 = vmatpush1.bf16.msra.mxu0 %v1929
        %1948 = vmatprep.subr.bf16.mxu0 0
        %1949 = vmatpush1.bf16.msra.mxu0 %v1930
        %1950 = vmatprep.subr.bf16.mxu0 0
        %1951 = vmatpush1.bf16.msra.mxu0 %v1931
        %1952 = vmatprep.subr.bf16.mxu0 0
        %1953 = vmatpush1.bf16.msra.mxu0 %v1932
        %1954 = vmatprep.subr.bf16.mxu0 0
        %1955 = vmatpush1.bf16.msra.mxu0 %v1933
        %1956 = vmatprep.subr.bf16.mxu0 0
        %1957 = vmatpush1.bf16.msra.mxu0 %v1934
        %1958 = vmatprep.subr.bf16.mxu0 0
        %1959 = vmatpush1.bf16.msra.mxu0 %v1935
        %1960 = vmatprep.subr.bf16.mxu0 0
        %1961 = vmatpush1.bf16.msra.mxu0 0
        %1962 = vmatprep.subr.bf16.mxu0 0
        %1963 = vmatpush1.bf16.msra.mxu0 0
        %1964 = vmatprep.subr.bf16.mxu0 0
        %1965 = vmatpush1.bf16.msra.mxu0 0
        %1966 = vmatprep.subr.bf16.mxu0 0
        %1967 = vmatpush1.bf16.msra.mxu0 0
        %1968 = vmatprep.subr.bf16.mxu0 0
        %1969 = vmatpush1.bf16.msra.mxu0 0
        %1970 = vmatprep.subr.bf16.mxu0 0
        %1971 = vmatpush1.bf16.msra.mxu0 0
        %1972 = vmatprep.subr.bf16.mxu0 0
        %1973 = vmatpush1.bf16.msra.mxu0 0
        %1974 = vmatprep.subr.bf16.mxu0 0
        %1975 = vmatpush1.bf16.msra.mxu0 0
        %1976 = vmatprep.mubr.bf16.mxu0 0
        %1977 = vmatmul.mubr.bf16.gmra.mrb[0].mxu0 %v1875
        %v1978 = vpop.f32.mrb[0].mxu0
        %v1979 = vadd.f32 %v1895, %v1978
        %v1980 = vpop.f32.mrb[0].mxu0
        %v1981 = vpop.f32.mrb[0].mxu0
        %v1982 = vadd.f32 %v1895, %v1981
        %v1983 = vpop.f32.mrb[0].mxu0
        %1984 = vdwg.mxu0
        %v1985 = vadd.f32 %v687, %v1979
        %v1986 = vadd.f32 %v688, %v1982
        %1987 = vadd.xlane.f32.xlu0 %v1985
        %v1988 = vpop.xlane.xlu0 %1987
        %1989 = vadd.xlane.f32.xlu0 %v1986
        %v1990 = vpop.xlane.xlu0 %1989
        %v1991 = vrcp.pop 128.0
        %v1992 = vmul.f32 %v1988, %v1991
        %v1993 = vmul.f32 %v1990, %v1991
        %v1994 = vsub.f32 %v1985, %v1992
        %v1995 = vsub.f32 %v1986, %v1993
        %v1996 = vmul.f32 %v1994, %v1994
        %v1997 = vmul.f32 %v1995, %v1995
        %1998 = vadd.xlane.f32.xlu0 %v1996
        %v1999 = vpop.xlane.xlu0 %1998
        %2000 = vadd.xlane.f32.xlu0 %v1997
        %v2001 = vpop.xlane.xlu0 %2000
        %v2002 = vmul.f32 %v1999, %v1991
        %v2003 = vmul.f32 %v2001, %v1991
        %v2004 = vadd.f32 %v2002, 1e-05
        %v2005 = vadd.f32 %v2003, 1e-05
        %v2006 = vrsqrt.pop %v2004
        %v2007 = vrsqrt.pop %v2005
        %v2008 = vmul.f32 %v1994, %v2006
        %v2009 = vmul.f32 %v1995, %v2007
        %v2010 = vlaneseq
        %v2011 = vshrl.u32 %v2010, 7
        %v2012 = vsub.s32 1, %v2011
        %v2013 = vrot.slane %v690, %v2012
        %v2014 = vmul.f32 %v2008, %v2013
        %v2015 = vmul.f32 %v2009, %v2013
        %v2016 = vlaneseq
        %v2017 = vshrl.u32 %v2016, 7
        %v2018 = vsub.s32 2, %v2017
        %v2019 = vrot.slane %v690, %v2018
        %v2020 = vadd.f32 %v2014, %v2019
        %v2021 = vadd.f32 %v2015, %v2019
        %v2022 = vpack.c.bf16 %v2021, %v2020
        %v2023 = vld [vmem:[%s628] sm:$0xff]
        %v2024 = vld [vmem:[%s628 + $0x8] sm:$0xff]
        %v2025 = vld [vmem:[%s628 + $0x10] sm:$0xff]
        %v2026 = vld [vmem:[%s628 + $0x18] sm:$0xff]
        %v2027 = vld [vmem:[%s628 + $0x20] sm:$0xff]
        %v2028 = vld [vmem:[%s628 + $0x28] sm:$0xff]
        %v2029 = vld [vmem:[%s628 + $0x30] sm:$0xff]
        %v2030 = vld [vmem:[%s628 + $0x38] sm:$0xff]
        %v2031 = vld [vmem:[%s628 + $0x40] sm:$0xff]
        %v2032 = vld [vmem:[%s628 + $0x48] sm:$0xff]
        %v2033 = vld [vmem:[%s628 + $0x50] sm:$0xff]
        %v2034 = vld [vmem:[%s628 + $0x58] sm:$0xff]
        %v2035 = vld [vmem:[%s628 + $0x60] sm:$0xff]
        %v2036 = vld [vmem:[%s628 + $0x68] sm:$0xff]
        %v2037 = vld [vmem:[%s628 + $0x70] sm:$0xff]
        %v2038 = vld [vmem:[%s628 + $0x78] sm:$0xff]
        %v2039 = vld [vmem:[%s632] sm:$0x3]
        %v2041 = vlaneseq
        %v2042 = vshrl.u32 %v2041, 7
        %v2043 = vsub.s32 0, %v2042
        %v2044 = vrot.slane %v2039, %v2043
        %v2045 = vlaneseq
        %v2046 = vshrl.u32 %v2045, 7
        %v2047 = vsub.s32 1, %v2046
        %v2048 = vrot.slane %v2039, %v2047
        %v2067 = vunpack.c.l.b16 %v2023
        %v2068 = vunpack.c.h.b16 %v2023
        %v2069 = vunpack.c.l.b16 %v2024
        %v2070 = vunpack.c.h.b16 %v2024
        %v2071 = vunpack.c.l.b16 %v2025
        %v2072 = vunpack.c.h.b16 %v2025
        %v2073 = vunpack.c.l.b16 %v2026
        %v2074 = vunpack.c.h.b16 %v2026
        %v2075 = vunpack.c.l.b16 %v2027
        %v2076 = vunpack.c.h.b16 %v2027
        %v2077 = vunpack.c.l.b16 %v2028
        %v2078 = vunpack.c.h.b16 %v2028
        %v2079 = vunpack.c.l.b16 %v2029
        %v2080 = vunpack.c.h.b16 %v2029
        %v2081 = vunpack.c.l.b16 %v2030
        %v2082 = vunpack.c.h.b16 %v2030
        %v2083 = vunpack.c.l.b16 %v2031
        %v2084 = vunpack.c.h.b16 %v2031
        %v2085 = vunpack.c.l.b16 %v2032
        %v2086 = vunpack.c.h.b16 %v2032
        %v2087 = vunpack.c.l.b16 %v2033
        %v2088 = vunpack.c.h.b16 %v2033
        %v2089 = vunpack.c.l.b16 %v2034
        %v2090 = vunpack.c.h.b16 %v2034
        %v2091 = vunpack.c.l.b16 %v2035
        %v2092 = vunpack.c.h.b16 %v2035
        %v2093 = vunpack.c.l.b16 %v2036
        %v2094 = vunpack.c.h.b16 %v2036
        %v2095 = vunpack.c.l.b16 %v2037
        %v2096 = vunpack.c.h.b16 %v2037
        %v2097 = vunpack.c.l.b16 %v2038
        %v2098 = vunpack.c.h.b16 %v2038
        %v2099 = vpack.c.b16 %v2069, %v2067
        %v2100 = vpack.c.b16 %v2070, %v2068
        %v2101 = vpack.c.b16 %v2073, %v2071
        %v2102 = vpack.c.b16 %v2074, %v2072
        %v2103 = vpack.c.b16 %v2077, %v2075
        %v2104 = vpack.c.b16 %v2078, %v2076
        %v2105 = vpack.c.b16 %v2081, %v2079
        %v2106 = vpack.c.b16 %v2082, %v2080
        %v2107 = vpack.c.b16 %v2085, %v2083
        %v2108 = vpack.c.b16 %v2086, %v2084
        %v2109 = vpack.c.b16 %v2089, %v2087
        %v2110 = vpack.c.b16 %v2090, %v2088
        %v2111 = vpack.c.b16 %v2093, %v2091
        %v2112 = vpack.c.b16 %v2094, %v2092
        %v2113 = vpack.c.b16 %v2097, %v2095
        %v2114 = vpack.c.b16 %v2098, %v2096
        %2131 = vmatprep.subr.bf16.mxu0 %v2100
        %2132 = vmatpush1.bf16.msra.mxu0 %v2099
        %2133 = vmatprep.subr.bf16.mxu0 %v2102
        %2134 = vmatpush1.bf16.msra.mxu0 %v2101
        %2135 = vmatprep.subr.bf16.mxu0 %v2104
        %2136 = vmatpush1.bf16.msra.mxu0 %v2103
        %2137 = vmatprep.subr.bf16.mxu0 %v2106
        %2138 = vmatpush1.bf16.msra.mxu0 %v2105
        %2139 = vmatprep.subr.bf16.mxu0 %v2108
        %2140 = vmatpush1.bf16.msra.mxu0 %v2107
        %2141 = vmatprep.subr.bf16.mxu0 %v2110
        %2142 = vmatpush1.bf16.msra.mxu0 %v2109
        %2143 = vmatprep.subr.bf16.mxu0 %v2112
        %2144 = vmatpush1.bf16.msra.mxu0 %v2111
        %2145 = vmatprep.subr.bf16.mxu0 %v2114
        %2146 = vmatpush1.bf16.msra.mxu0 %v2113
        %2147 = vmatprep.subr.bf16.mxu0 0
        %2148 = vmatpush1.bf16.msra.mxu0 0
        %2149 = vmatprep.subr.bf16.mxu0 0
        %2150 = vmatpush1.bf16.msra.mxu0 0
        %2151 = vmatprep.subr.bf16.mxu0 0
        %2152 = vmatpush1.bf16.msra.mxu0 0
        %2153 = vmatprep.subr.bf16.mxu0 0
        %2154 = vmatpush1.bf16.msra.mxu0 0
        %2155 = vmatprep.subr.bf16.mxu0 0
        %2156 = vmatpush1.bf16.msra.mxu0 0
        %2157 = vmatprep.subr.bf16.mxu0 0
        %2158 = vmatpush1.bf16.msra.mxu0 0
        %2159 = vmatprep.subr.bf16.mxu0 0
        %2160 = vmatpush1.bf16.msra.mxu0 0
        %2161 = vmatprep.subr.bf16.mxu0 0
        %2162 = vmatpush1.bf16.msra.mxu0 0
        %2163 = vmatprep.mubr.bf16.mxu0 0
        %2164 = vmatmul.mubr.bf16.gmra.mrb[0].mxu0 %v2022
        %v2165 = vpop.f32.mrb[0].mxu0
        %v2166 = vadd.f32 %v2044, %v2165
        %v2167 = vpop.f32.mrb[0].mxu0
        %v2168 = vadd.f32 %v2048, %v2167
        %v2169 = vpop.f32.mrb[0].mxu0
        %v2170 = vadd.f32 %v2044, %v2169
        %v2171 = vpop.f32.mrb[0].mxu0
        %v2172 = vadd.f32 %v2048, %v2171
        %2173 = vdwg.mxu0
        %v2174 = vmul.f32 %v2166, 0.5
        %v2175 = vmul.f32 %v2168, 0.5
        %v2176 = vmul.f32 %v2170, 0.5
        %v2177 = vmul.f32 %v2172, 0.5
        %v2178 = vmul.f32 %v2166, 0.044715
        %v2179 = vmul.f32 %v2168, 0.044715
        %v2180 = vmul.f32 %v2170, 0.044715
        %v2181 = vmul.f32 %v2172, 0.044715
        %v2182 = vmul.f32 %v2178, %v2166
        %v2183 = vmul.f32 %v2179, %v2168
        %v2184 = vmul.f32 %v2180, %v2170
        %v2185 = vmul.f32 %v2181, %v2172
        %v2186 = vmul.f32 %v2182, %v2166
        %v2187 = vmul.f32 %v2183, %v2168
        %v2188 = vmul.f32 %v2184, %v2170
        %v2189 = vmul.f32 %v2185, %v2172
        %v2190 = vadd.f32 %v2166, %v2186
        %v2191 = vadd.f32 %v2168, %v2187
        %v2192 = vadd.f32 %v2170, %v2188
        %v2193 = vadd.f32 %v2172, %v2189
        %v2194 = vmul.f32 %v2190, 0.7978846
        %v2195 = vmul.f32 %v2191, 0.7978846
        %v2196 = vmul.f32 %v2192, 0.7978846
        %v2197 = vmul.f32 %v2193, 0.7978846
        %v2198 = vtanh.pop %v2194
        %v2199 = vtanh.pop %v2195
        %v2200 = vtanh.pop %v2196
        %v2201 = vtanh.pop %v2197
        %v2202 = vadd.f32 %v2198, 1.0
        %v2203 = vadd.f32 %v2199, 1.0
        %v2204 = vadd.f32 %v2200, 1.0
        %v2205 = vadd.f32 %v2201, 1.0
        %v2206 = vmul.f32 %v2174, %v2202
        %v2207 = vmul.f32 %v2175, %v2203
        %v2208 = vmul.f32 %v2176, %v2204
        %v2209 = vmul.f32 %v2177, %v2205
        %v2210 = vpack.c.bf16 %v2208, %v2206
        %v2211 = vpack.c.bf16 %v2209, %v2207
        %v2212 = vld [vmem:[%s549] sm:$0xf]
        %v2213 = vld [vmem:[%s549 + $0x4] sm:$0xf]
        %v2214 = vld [vmem:[%s549 + $0x8] sm:$0xf]
        %v2215 = vld [vmem:[%s549 + $0xc] sm:$0xf]
        %v2216 = vld [vmem:[%s549 + $0x10] sm:$0xf]
        %v2217 = vld [vmem:[%s549 + $0x14] sm:$0xf]
        %v2218 = vld [vmem:[%s549 + $0x18] sm:$0xf]
        %v2219 = vld [vmem:[%s549 + $0x1c] sm:$0xf]
        %v2220 = vld [vmem:[%s549 + $0x20] sm:$0xf]
        %v2221 = vld [vmem:[%s549 + $0x24] sm:$0xf]
        %v2222 = vld [vmem:[%s549 + $0x28] sm:$0xf]
        %v2223 = vld [vmem:[%s549 + $0x2c] sm:$0xf]
        %v2224 = vld [vmem:[%s549 + $0x30] sm:$0xf]
        %v2225 = vld [vmem:[%s549 + $0x34] sm:$0xf]
        %v2226 = vld [vmem:[%s549 + $0x38] sm:$0xf]
        %v2227 = vld [vmem:[%s549 + $0x3c] sm:$0xf]
        %v2228 = vld [vmem:[%s549 + $0x40] sm:$0xf]
        %v2229 = vld [vmem:[%s549 + $0x44] sm:$0xf]
        %v2230 = vld [vmem:[%s549 + $0x48] sm:$0xf]
        %v2231 = vld [vmem:[%s549 + $0x4c] sm:$0xf]
        %v2232 = vld [vmem:[%s549 + $0x50] sm:$0xf]
        %v2233 = vld [vmem:[%s549 + $0x54] sm:$0xf]
        %v2234 = vld [vmem:[%s549 + $0x58] sm:$0xf]
        %v2235 = vld [vmem:[%s549 + $0x5c] sm:$0xf]
        %v2236 = vld [vmem:[%s549 + $0x60] sm:$0xf]
        %v2237 = vld [vmem:[%s549 + $0x64] sm:$0xf]
        %v2238 = vld [vmem:[%s549 + $0x68] sm:$0xf]
        %v2239 = vld [vmem:[%s549 + $0x6c] sm:$0xf]
        %v2240 = vld [vmem:[%s549 + $0x70] sm:$0xf]
        %v2241 = vld [vmem:[%s549 + $0x74] sm:$0xf]
        %v2242 = vld [vmem:[%s549 + $0x78] sm:$0xf]
        %v2243 = vld [vmem:[%s549 + $0x7c] sm:$0xf]
        %v2244 = vlaneseq
        %v2245 = vshrl.u32 %v2244, 7
        %v2246 = vsub.s32 3, %v2245
        %v2247 = vrot.slane %v690, %v2246
        %v2280 = vunpack.c.l.b16 %v2212
        %v2281 = vunpack.c.l.b16 %v2213
        %v2282 = vunpack.c.l.b16 %v2214
        %v2283 = vunpack.c.l.b16 %v2215
        %v2284 = vunpack.c.l.b16 %v2216
        %v2285 = vunpack.c.l.b16 %v2217
        %v2286 = vunpack.c.l.b16 %v2218
        %v2287 = vunpack.c.l.b16 %v2219
        %v2288 = vunpack.c.l.b16 %v2220
        %v2289 = vunpack.c.l.b16 %v2221
        %v2290 = vunpack.c.l.b16 %v2222
        %v2291 = vunpack.c.l.b16 %v2223
        %v2292 = vunpack.c.l.b16 %v2224
        %v2293 = vunpack.c.l.b16 %v2225
        %v2294 = vunpack.c.l.b16 %v2226
        %v2295 = vunpack.c.l.b16 %v2227
        %v2296 = vunpack.c.l.b16 %v2228
        %v2297 = vunpack.c.l.b16 %v2229
        %v2298 = vunpack.c.l.b16 %v2230
        %v2299 = vunpack.c.l.b16 %v2231
        %v2300 = vunpack.c.l.b16 %v2232
        %v2301 = vunpack.c.l.b16 %v2233
        %v2302 = vunpack.c.l.b16 %v2234
        %v2303 = vunpack.c.l.b16 %v2235
        %v2304 = vunpack.c.l.b16 %v2236
        %v2305 = vunpack.c.l.b16 %v2237
        %v2306 = vunpack.c.l.b16 %v2238
        %v2307 = vunpack.c.l.b16 %v2239
        %v2308 = vunpack.c.l.b16 %v2240
        %v2309 = vunpack.c.l.b16 %v2241
        %v2310 = vunpack.c.l.b16 %v2242
        %v2311 = vunpack.c.l.b16 %v2243
        %v2312 = vpack.c.b16 %v2281, %v2280
        %v2313 = vpack.c.b16 %v2283, %v2282
        %v2314 = vpack.c.b16 %v2285, %v2284
        %v2315 = vpack.c.b16 %v2287, %v2286
        %v2316 = vpack.c.b16 %v2289, %v2288
        %v2317 = vpack.c.b16 %v2291, %v2290
        %v2318 = vpack.c.b16 %v2293, %v2292
        %v2319 = vpack.c.b16 %v2295, %v2294
        %v2320 = vpack.c.b16 %v2297, %v2296
        %v2321 = vpack.c.b16 %v2299, %v2298
        %v2322 = vpack.c.b16 %v2301, %v2300
        %v2323 = vpack.c.b16 %v2303, %v2302
        %v2324 = vpack.c.b16 %v2305, %v2304
        %v2325 = vpack.c.b16 %v2307, %v2306
        %v2326 = vpack.c.b16 %v2309, %v2308
        %v2327 = vpack.c.b16 %v2311, %v2310
        %2344 = vmatprep.subr.bf16.mxu0 0
        %2345 = vmatpush1.bf16.msra.mxu0 %v2312
        %2346 = vmatprep.subr.bf16.mxu0 0
        %2347 = vmatpush1.bf16.msra.mxu0 %v2313
        %2348 = vmatprep.subr.bf16.mxu0 0
        %2349 = vmatpush1.bf16.msra.mxu0 %v2314
        %2350 = vmatprep.subr.bf16.mxu0 0
        %2351 = vmatpush1.bf16.msra.mxu0 %v2315
        %2352 = vmatprep.subr.bf16.mxu0 0
        %2353 = vmatpush1.bf16.msra.mxu0 %v2316
        %2354 = vmatprep.subr.bf16.mxu0 0
        %2355 = vmatpush1.bf16.msra.mxu0 %v2317
        %2356 = vmatprep.subr.bf16.mxu0 0
        %2357 = vmatpush1.bf16.msra.mxu0 %v2318
        %2358 = vmatprep.subr.bf16.mxu0 0
        %2359 = vmatpush1.bf16.msra.mxu0 %v2319
        %2360 = vmatprep.subr.bf16.mxu0 0
        %2361 = vmatpush1.bf16.msra.mxu0 %v2320
        %2362 = vmatprep.subr.bf16.mxu0 0
        %2363 = vmatpush1.bf16.msra.mxu0 %v2321
        %2364 = vmatprep.subr.bf16.mxu0 0
        %2365 = vmatpush1.bf16.msra.mxu0 %v2322
        %2366 = vmatprep.subr.bf16.mxu0 0
        %2367 = vmatpush1.bf16.msra.mxu0 %v2323
        %2368 = vmatprep.subr.bf16.mxu0 0
        %2369 = vmatpush1.bf16.msra.mxu0 %v2324
        %2370 = vmatprep.subr.bf16.mxu0 0
        %2371 = vmatpush1.bf16.msra.mxu0 %v2325
        %2372 = vmatprep.subr.bf16.mxu0 0
        %2373 = vmatpush1.bf16.msra.mxu0 %v2326
        %2374 = vmatprep.subr.bf16.mxu0 0
        %2375 = vmatpush1.bf16.msra.mxu0 %v2327
        %2376 = vmatprep.mubr.bf16.mxu0 %v2211
        %2377 = vmatmul.mubr.bf16.gmra.mrb[0].mxu0 %v2210
        %v2378 = vpop.f32.mrb[0].mxu0
        %v2379 = vadd.f32 %v2247, %v2378
        %v2380 = vpop.f32.mrb[0].mxu0
        %v2381 = vpop.f32.mrb[0].mxu0
        %v2382 = vadd.f32 %v2247, %v2381
        %v2383 = vpop.f32.mrb[0].mxu0
        %2384 = vdwg.mxu0
        %v2385 = vadd.f32 %v2020, %v2379
        %v2386 = vadd.f32 %v2021, %v2382
        %2387 = vadd.xlane.f32.xlu0 %v2385
        %v2388 = vpop.xlane.xlu0 %2387
        %2389 = vadd.xlane.f32.xlu0 %v2386
        %v2390 = vpop.xlane.xlu0 %2389
        %v2391 = vmul.f32 %v2388, %v1991
        %v2392 = vmul.f32 %v2390, %v1991
        %v2393 = vsub.f32 %v2385, %v2391
        %v2394 = vsub.f32 %v2386, %v2392
        %v2395 = vmul.f32 %v2393, %v2393
        %v2396 = vmul.f32 %v2394, %v2394
        %2397 = vadd.xlane.f32.xlu0 %v2395
        %v2398 = vpop.xlane.xlu0 %2397
        %2399 = vadd.xlane.f32.xlu0 %v2396
        %v2400 = vpop.xlane.xlu0 %2399
        %v2401 = vmul.f32 %v2398, %v1991
        %v2402 = vmul.f32 %v2400, %v1991
        %v2403 = vadd.f32 %v2401, 1e-05
        %v2404 = vadd.f32 %v2402, 1e-05
        %v2405 = vrsqrt.pop %v2403
        %v2406 = vrsqrt.pop %v2404
        %v2407 = vmul.f32 %v2393, %v2405
        %v2408 = vmul.f32 %v2394, %v2406
        %v2409 = vlaneseq
        %v2410 = vshrl.u32 %v2409, 7
        %v2411 = vsub.s32 4, %v2410
        %v2412 = vrot.slane %v690, %v2411
        %v2413 = vmul.f32 %v2407, %v2412
        %v2414 = vmul.f32 %v2408, %v2412
        %v2415 = vlaneseq
        %v2416 = vshrl.u32 %v2415, 7
        %v2417 = vsub.s32 5, %v2416
        %v2418 = vrot.slane %v690, %v2417
        %v2419 = vadd.f32 %v2413, %v2418
        %v2420 = vadd.f32 %v2414, %v2418
        %2421 = vst [vmem:[#allocation2] sm:$0xff] %v2419
        %2422 = vst [vmem:[#allocation2 + $0x8] sm:$0xff] %v2420
        %p2423 = scmp.eq.s32.totalorder %s33, 1
        // Predicated region
        $region97: #{roberta_forward.1} parent=75 // pred_check
          %p2424 = pneg %p2423
        $region98: #{roberta_forward.1} parent=75 // pred_check_branch
          %2426 = sbr.rel (%p2424) target = $region100
        $region99: #{roberta_forward.1} parent=75 // pred_region
          %v2427 = vpack.c.bf16 %v2419, %v2419
          %v2428 = vpack.c.bf16 %v2420, %v2420
          %v2429 = vld [vmem:[%s10] sm:$0xf]
          %v2430 = vld [vmem:[%s10 + $0x4] sm:$0xf]
          %v2431 = vld [vmem:[%s10 + $0x8] sm:$0xf]
          %v2432 = vld [vmem:[%s10 + $0xc] sm:$0xf]
          %v2433 = vld [vmem:[%s10 + $0x10] sm:$0xf]
          %v2434 = vld [vmem:[%s10 + $0x14] sm:$0xf]
          %v2435 = vld [vmem:[%s10 + $0x18] sm:$0xf]
          %v2436 = vld [vmem:[%s10 + $0x1c] sm:$0xf]
          %v2437 = vld [vmem:[%s10 + $0x20] sm:$0xf]
          %v2438 = vld [vmem:[%s10 + $0x24] sm:$0xf]
          %v2439 = vld [vmem:[%s10 + $0x28] sm:$0xf]
          %v2440 = vld [vmem:[%s10 + $0x2c] sm:$0xf]
          %v2441 = vld [vmem:[%s10 + $0x30] sm:$0xf]
          %v2442 = vld [vmem:[%s10 + $0x34] sm:$0xf]
          %v2443 = vld [vmem:[%s10 + $0x38] sm:$0xf]
          %v2444 = vld [vmem:[%s10 + $0x3c] sm:$0xf]
          %v2445 = vld [vmem:[%s11] sm:$0x1]
          %v2447 = vlaneseq
          %v2448 = vshrl.u32 %v2447, 7
          %v2449 = vsub.s32 0, %v2448
          %v2450 = vrot.slane %v2445, %v2449
          %v2454 = vunpack.c.l.b16 %v2427
          %v2455 = vunpack.c.l.b16 %v2428
          %v2456 = vrot.slane %v2455, 7
          %vm2457 = vcmask 1041409
          %v2458 = vsel %vm2457, %v2456, %v2454
          %v2459 = vpack.c.b16 %v2458, %v2458
          %v2477 = vunpack.c.l.b16 %v2429
          %v2478 = vunpack.c.l.b16 %v2430
          %v2479 = vunpack.c.l.b16 %v2431
          %v2480 = vunpack.c.l.b16 %v2432
          %v2481 = vunpack.c.l.b16 %v2433
          %v2482 = vunpack.c.l.b16 %v2434
          %v2483 = vunpack.c.l.b16 %v2435
          %v2484 = vunpack.c.l.b16 %v2436
          %v2485 = vunpack.c.l.b16 %v2437
          %v2486 = vunpack.c.l.b16 %v2438
          %v2487 = vunpack.c.l.b16 %v2439
          %v2488 = vunpack.c.l.b16 %v2440
          %v2489 = vunpack.c.l.b16 %v2441
          %v2490 = vunpack.c.l.b16 %v2442
          %v2491 = vunpack.c.l.b16 %v2443
          %v2492 = vunpack.c.l.b16 %v2444
          %v2493 = vpack.c.b16 %v2478, %v2477
          %v2494 = vpack.c.b16 %v2480, %v2479
          %v2495 = vpack.c.b16 %v2482, %v2481
          %v2496 = vpack.c.b16 %v2484, %v2483
          %v2497 = vpack.c.b16 %v2486, %v2485
          %v2498 = vpack.c.b16 %v2488, %v2487
          %v2499 = vpack.c.b16 %v2490, %v2489
          %v2500 = vpack.c.b16 %v2492, %v2491
          %2509 = vmatprep.subr.bf16.mxu0 0
          %2510 = vmatpush1.bf16.msra.mxu0 %v2493
          %2511 = vmatprep.subr.bf16.mxu0 0
          %2512 = vmatpush1.bf16.msra.mxu0 %v2494
          %2513 = vmatprep.subr.bf16.mxu0 0
          %2514 = vmatpush1.bf16.msra.mxu0 %v2495
          %2515 = vmatprep.subr.bf16.mxu0 0
          %2516 = vmatpush1.bf16.msra.mxu0 %v2496
          %2517 = vmatprep.subr.bf16.mxu0 0
          %2518 = vmatpush1.bf16.msra.mxu0 %v2497
          %2519 = vmatprep.subr.bf16.mxu0 0
          %2520 = vmatpush1.bf16.msra.mxu0 %v2498
          %2521 = vmatprep.subr.bf16.mxu0 0
          %2522 = vmatpush1.bf16.msra.mxu0 %v2499
          %2523 = vmatprep.subr.bf16.mxu0 0
          %2524 = vmatpush1.bf16.msra.mxu0 %v2500
          %2525 = vmatprep.subr.bf16.mxu0 0
          %2526 = vmatpush1.bf16.msra.mxu0 0
          %2527 = vmatprep.subr.bf16.mxu0 0
          %2528 = vmatpush1.bf16.msra.mxu0 0
          %2529 = vmatprep.subr.bf16.mxu0 0
          %2530 = vmatpush1.bf16.msra.mxu0 0
          %2531 = vmatprep.subr.bf16.mxu0 0
          %2532 = vmatpush1.bf16.msra.mxu0 0
          %2533 = vmatprep.subr.bf16.mxu0 0
          %2534 = vmatpush1.bf16.msra.mxu0 0
          %2535 = vmatprep.subr.bf16.mxu0 0
          %2536 = vmatpush1.bf16.msra.mxu0 0
          %2537 = vmatprep.subr.bf16.mxu0 0
          %2538 = vmatpush1.bf16.msra.mxu0 0
          %2539 = vmatprep.subr.bf16.mxu0 0
          %2540 = vmatpush1.bf16.msra.mxu0 0
          %2541 = vmatprep.mubr.bf16.mxu0 0
          %2542 = vmatmul.mubr.bf16.gmra.mrb[0].mxu0 %v2459
          %v2543 = vpop.f32.mrb[0].mxu0
          %v2544 = vadd.f32 %v2450, %v2543
          %v2545 = vpop.f32.mrb[0].mxu0
          %v2546 = vpop.f32.mrb[0].mxu0
          %v2547 = vpop.f32.mrb[0].mxu0
          %2548 = vdwg.mxu0
          %v2549 = vtanh.pop %v2544
          %v2550 = vpack.c.bf16 %v2549, %v2549
          %v2551 = vld [vmem:[#allocation9] sm:$0xf]
          %v2552 = vld [vmem:[#allocation9 + $0x4] sm:$0xf]
          %v2553 = vld [vmem:[#allocation9 + $0x8] sm:$0xf]
          %v2554 = vld [vmem:[#allocation9 + $0xc] sm:$0xf]
          %v2555 = vld [vmem:[#allocation9 + $0x10] sm:$0xf]
          %v2556 = vld [vmem:[#allocation9 + $0x14] sm:$0xf]
          %v2557 = vld [vmem:[#allocation9 + $0x18] sm:$0xf]
          %v2558 = vld [vmem:[#allocation9 + $0x1c] sm:$0xf]
          %v2559 = vld [vmem:[#allocation9 + $0x20] sm:$0xf]
          %v2560 = vld [vmem:[#allocation9 + $0x24] sm:$0xf]
          %v2561 = vld [vmem:[#allocation9 + $0x28] sm:$0xf]
          %v2562 = vld [vmem:[#allocation9 + $0x2c] sm:$0xf]
          %v2563 = vld [vmem:[#allocation9 + $0x30] sm:$0xf]
          %v2564 = vld [vmem:[#allocation9 + $0x34] sm:$0xf]
          %v2565 = vld [vmem:[#allocation9 + $0x38] sm:$0xf]
          %v2566 = vld [vmem:[#allocation9 + $0x3c] sm:$0xf]
          %v2567 = vld [vmem:[%s13] sm:$0x1]
          %v2569 = vlaneseq
          %v2570 = vshrl.u32 %v2569, 7
          %v2571 = vsub.s32 0, %v2570
          %v2572 = vrot.slane %v2567, %v2571
          %v2590 = vunpack.c.l.b16 %v2551
          %v2591 = vunpack.c.l.b16 %v2552
          %v2592 = vunpack.c.l.b16 %v2553
          %v2593 = vunpack.c.l.b16 %v2554
          %v2594 = vunpack.c.l.b16 %v2555
          %v2595 = vunpack.c.l.b16 %v2556
          %v2596 = vunpack.c.l.b16 %v2557
          %v2597 = vunpack.c.l.b16 %v2558
          %v2598 = vunpack.c.l.b16 %v2559
          %v2599 = vunpack.c.l.b16 %v2560
          %v2600 = vunpack.c.l.b16 %v2561
          %v2601 = vunpack.c.l.b16 %v2562
          %v2602 = vunpack.c.l.b16 %v2563
          %v2603 = vunpack.c.l.b16 %v2564
          %v2604 = vunpack.c.l.b16 %v2565
          %v2605 = vunpack.c.l.b16 %v2566
          %v2606 = vpack.c.b16 %v2591, %v2590
          %v2607 = vpack.c.b16 %v2593, %v2592
          %v2608 = vpack.c.b16 %v2595, %v2594
          %v2609 = vpack.c.b16 %v2597, %v2596
          %v2610 = vpack.c.b16 %v2599, %v2598
          %v2611 = vpack.c.b16 %v2601, %v2600
          %v2612 = vpack.c.b16 %v2603, %v2602
          %v2613 = vpack.c.b16 %v2605, %v2604
          %2622 = vmatprep.subr.bf16.mxu0 0
          %2623 = vmatpush1.bf16.msra.mxu0 %v2606
          %2624 = vmatprep.subr.bf16.mxu0 0
          %2625 = vmatpush1.bf16.msra.mxu0 %v2607
          %2626 = vmatprep.subr.bf16.mxu0 0
          %2627 = vmatpush1.bf16.msra.mxu0 %v2608
          %2628 = vmatprep.subr.bf16.mxu0 0
          %2629 = vmatpush1.bf16.msra.mxu0 %v2609
          %2630 = vmatprep.subr.bf16.mxu0 0
          %2631 = vmatpush1.bf16.msra.mxu0 %v2610
          %2632 = vmatprep.subr.bf16.mxu0 0
          %2633 = vmatpush1.bf16.msra.mxu0 %v2611
          %2634 = vmatprep.subr.bf16.mxu0 0
          %2635 = vmatpush1.bf16.msra.mxu0 %v2612
          %2636 = vmatprep.subr.bf16.mxu0 0
          %2637 = vmatpush1.bf16.msra.mxu0 %v2613
          %2638 = vmatprep.subr.bf16.mxu0 0
          %2639 = vmatpush1.bf16.msra.mxu0 0
          %2640 = vmatprep.subr.bf16.mxu0 0
          %2641 = vmatpush1.bf16.msra.mxu0 0
          %2642 = vmatprep.subr.bf16.mxu0 0
          %2643 = vmatpush1.bf16.msra.mxu0 0
          %2644 = vmatprep.subr.bf16.mxu0 0
          %2645 = vmatpush1.bf16.msra.mxu0 0
          %2646 = vmatprep.subr.bf16.mxu0 0
          %2647 = vmatpush1.bf16.msra.mxu0 0
          %2648 = vmatprep.subr.bf16.mxu0 0
          %2649 = vmatpush1.bf16.msra.mxu0 0
          %2650 = vmatprep.subr.bf16.mxu0 0
          %2651 = vmatpush1.bf16.msra.mxu0 0
          %2652 = vmatprep.subr.bf16.mxu0 0
          %2653 = vmatpush1.bf16.msra.mxu0 0
          %2654 = vmatprep.mubr.bf16.mxu0 0
          %2655 = vmatmul.mubr.bf16.gmra.mrb[0].mxu0 %v2550
          %v2656 = vpop.f32.mrb[0].mxu0
          %v2657 = vadd.f32 %v2572, %v2656
          %v2658 = vpop.f32.mrb[0].mxu0
          %v2659 = vpop.f32.mrb[0].mxu0
          %v2660 = vpop.f32.mrb[0].mxu0
          %2661 = vdwg.mxu0
          %2662 = vst [vmem:[#allocation11] sm:$0x3] %v2657
        $region100: #{roberta_forward.1} parent=75 // pred_fallthru
          _
        // Predicated region
        $region101: #{roberta_forward.1} parent=75 // pred_check
          %p2663 = pneg %p375
        $region102: #{roberta_forward.1} parent=75 // pred_check_branch
          %2665 = sbr.rel (%p2663) target = $region104
        $region103: #{roberta_forward.1} parent=75 // pred_region
          %s2667 = ssub.s32 32, 32
          %2668 = vsyncadd [#allocation5], %s2667
          %s2670 = sshll.u32 [#allocation11], 4
          %s2671 = int_to_ptr.vmem [resolvable:$true] %s2670
          %2673 = dma.vmem_to_hbm [thread:$0]  %s2671, 32, %s14, [#allocation5]
        $region104: #{roberta_forward.1} parent=75 // pred_fallthru
          _
        // Predicated region
        $region105: #{roberta_forward.1} parent=75 // pred_check
          %p2674 = pneg %p375
        $region106: #{roberta_forward.1} parent=75 // pred_check_branch
          %2676 = sbr.rel (%p2674) target = $region108
        $region107: #{roberta_forward.1} parent=75 // pred_region
          %2677 = dma.done [#allocation5], 32
        $region108: #{roberta_forward.1} parent=75 // pred_fallthru
          _
      $region76: #{roberta_forward.1} parent=5 // pred_fallthru
        _
      %p2678 = scmp.le.s32.totalorder 2, %s28
      // Predicated region
      $region109: #{roberta_forward.1} parent=5 // pred_check
        %p2679 = pneg %p2678
      $region110: #{roberta_forward.1} parent=5 // pred_check_branch
        %2681 = sbr.rel (%p2679) target = $region112
      $region111: #{roberta_forward.1} parent=5 // pred_region
        %s2682 = ssub.s32 %s28, 2
      $region112: #{roberta_forward.1} parent=5 // pred_fallthru
        _
    $region6: #{roberta_forward.1} parent=1 // loop_footer
      %s32 = sadd.s32 1, %s28
    $region7: #{roberta_forward.1} parent=1 // loop_footer_branch
      %27 = sbr.rel target = $region3
    $region8: #{roberta_forward.1} parent=1 // loop_exit
      _
    %2683 = vsyncpa [#allocation4], 1
    %s2684 = scalar_lea.sflag [#allocation4], 1
    %2685 = vsyncpa %s2684, 1
    %2686 = vsyncpa [#allocation7], 1
    %s2687 = scalar_lea.sflag [#allocation7], 1
    %2688 = vsyncpa %s2687, 1
    %2689 = vsyncpa [#allocation10], 1
    %2690 = vsyncpa [#allocation5], 1
    %s2691 = scalar_lea.sflag [#allocation5], 1
    %2692 = vsyncpa %s2691, 1

</llo_original>
